<compile_context>
chip_gen: v5e
topology: v5e:2x2
jax: 0.10.0
libtpu: 0.0.40
codegen_flags: <defaults>
</compile_context>

<pallas_src>
import functools

import jax
import jax.numpy as jnp
from jax.experimental import pallas as pl
from jax.experimental.pallas import tpu as pltpu

# ---- model dims (from nn.Linear shapes in __init__) -------------------------
D_IN, D1, D2, D3, D_OUT = 429, 1024, 512, 128, 39
D_IN_PAD, D_OUT_PAD = 512, 128          # lane-dense padded feature / output dims

_SELU_ALPHA = 1.6732632423543772
_SELU_SCALE = 1.0507009873554805


def _selu_unscaled(h):
    # SELU with the leading `scale` folded into the next layer's packed weights.
    # No clamp: exp(h) overflow for h > 0 lives only in the discarded where-branch.
    return jnp.where(h > 0, h, _SELU_ALPHA * (jnp.exp(h) - 1.0))


def classifier_kernel(x_ref,
                      w1_ref, b1_ref,
                      w2_ref, b2_ref,
                      w3_ref, b3_ref,
                      w4_ref, b4_ref,
                      o_ref):
    x = x_ref[...]  # bf16 [TB, 512]

    # layer1 + (dropout as identity) + SELU   (bf16 operands, f32 accumulate)
    h = jnp.dot(x, w1_ref[...], preferred_element_type=jnp.float32) + b1_ref[...]
    h = _selu_unscaled(h).astype(jnp.bfloat16)

    # layer2 + (dropout as identity) + SELU   (SELU scale pre-folded into w2)
    h = jnp.dot(h, w2_ref[...], preferred_element_type=jnp.float32) + b2_ref[...]
    h = _selu_unscaled(h).astype(jnp.bfloat16)

    # layer3 + (dropout as identity) + SELU   (SELU scale pre-folded into w3)
    h = jnp.dot(h, w3_ref[...], preferred_element_type=jnp.float32) + b3_ref[...]
    h = _selu_unscaled(h).astype(jnp.bfloat16)

    # out (lane-dense padded to 128 columns; SELU scale pre-folded into w4)
    o_ref[...] = (jnp.dot(h, w4_ref[...], preferred_element_type=jnp.float32)
                  + b4_ref[...]).astype(o_ref.dtype)


def pack_params(params):
    """One-time packing: bf16 weights, lane-dense padding, SELU scale folded in."""
    scale = jnp.float32(_SELU_SCALE)
    w1 = jnp.pad(params["w1"], ((0, D_IN_PAD - D_IN), (0, 0))).astype(jnp.bfloat16)
    w2 = (scale * params["w2"]).astype(jnp.bfloat16)
    w3 = (scale * params["w3"]).astype(jnp.bfloat16)
    w4 = jnp.pad(scale * params["w4"],
                 ((0, 0), (0, D_OUT_PAD - D_OUT))).astype(jnp.bfloat16)
    b1 = params["b1"].astype(jnp.float32)
    b2 = params["b2"].astype(jnp.float32)
    b3 = params["b3"].astype(jnp.float32)
    b4 = jnp.pad(params["b4"],
                 ((0, 0), (0, D_OUT_PAD - D_OUT))).astype(jnp.float32)
    return {"w1": w1, "b1": b1, "w2": w2, "b2": b2,
            "w3": w3, "b3": b3, "w4": w4, "b4": b4}


def _choose_tb(B):
    """Batch tile: >=16 (bf16 sublane pair); one tile for small B; for large B use
    big tiles (amortize grid-step overhead) but keep >= 2 grid steps so v7x's
    second TensorCore gets work via the 'parallel' batch axis."""
    B16 = max(16, ((B + 15) // 16) * 16)
    if B16 <= 256:
        return B16
    half = pl.cdiv(B16, 2)
    return min(1024, ((half + 255) // 256) * 256)


@functools.partial(jax.jit, static_argnums=(2,))
def _forward_padded(x, packed, TB):
    B = x.shape[0]
    B_pad = pl.cdiv(B, TB) * TB

    # pack input: cast to bf16, pad batch + feature dims (zeros are harmless:
    # w1's padded rows are zero too)
    x_p = jnp.pad(x.astype(jnp.bfloat16),
                  ((0, B_pad - B), (0, D_IN_PAD - D_IN)))

    grid = (B_pad // TB,)

    # weights/biases: resident, DMA'd once, single-buffered (saves ~2.3 MiB VMEM)
    def resident(shape):
        return pl.BlockSpec(shape, lambda i: (0,) * len(shape),
                            pipeline_mode=pl.Buffered(1))

    w1, b1 = packed["w1"], packed["b1"]
    w2, b2 = packed["w2"], packed["b2"]
    w3, b3 = packed["w3"], packed["b3"]
    w4, b4 = packed["w4"], packed["b4"]

    flops = 2 * B_pad * (D_IN_PAD * D1 + D1 * D2 + D2 * D3 + D3 * D_OUT_PAD)
    transcendentals = B_pad * (D1 + D2 + D3)
    bytes_accessed = (x_p.size * 2
                      + (w1.size + w2.size + w3.size + w4.size) * 2
                      + (b1.size + b2.size + b3.size + b4.size) * 4
                      + B_pad * D_OUT_PAD * 4)

    out = pl.pallas_call(
        classifier_kernel,
        out_shape=jax.ShapeDtypeStruct((B_pad, D_OUT_PAD), jnp.float32),
        grid=grid,
        in_specs=[
            pl.BlockSpec((TB, D_IN_PAD), lambda i: (i, 0)),   # x: batch-tiled
            resident(w1.shape), resident(b1.shape),
            resident(w2.shape), resident(b2.shape),
            resident(w3.shape), resident(b3.shape),
            resident(w4.shape), resident(b4.shape),
        ],
        out_specs=pl.BlockSpec((TB, D_OUT_PAD), lambda i: (i, 0)),
        compiler_params=pltpu.CompilerParams(
            dimension_semantics=("parallel",),
            vmem_limit_bytes=48 * 1024 * 1024,
        ),
        cost_estimate=pl.CostEstimate(
            flops=flops,
            transcendentals=transcendentals,
            bytes_accessed=bytes_accessed,
        ),
    )(x_p, w1, b1, w2, b2, w3, b3, w4, b4)

    return out[:B, :D_OUT]


def classifier_forward(x, packed_params):
    """x: [B, 429] float32. packed_params: output of pack_params()."""
    TB = _choose_tb(x.shape[0])
    return _forward_padded(x, packed_params, TB)


def init_params(key):
    """Deterministic synthetic init (PyTorch-like uniform fan-in scaling)."""
    dims = [(D_IN, D1), (D1, D2), (D2, D3), (D3, D_OUT)]
    params = {}
    for idx, (fan_in, fan_out) in enumerate(dims, start=1):
        key, kw, kb = jax.random.split(key, 3)
        bound = 1.0 / jnp.sqrt(jnp.float32(fan_in))
        params[f"w{idx}"] = jax.random.uniform(
            kw, (fan_in, fan_out), jnp.float32, -bound, bound)
        params[f"b{idx}"] = jax.random.uniform(
            kb, (1, fan_out), jnp.float32, -bound, bound)
    return params


def reference_forward(x, params):
    """Mirrors the kernel precision (bf16 weights/activations, f32 accumulation),
    standard (un-folded) SELU."""
    h = x.astype(jnp.bfloat16)
    for idx in range(1, 4):
        w = params[f"w{idx}"].astype(jnp.bfloat16)
        z = jnp.dot(h, w, preferred_element_type=jnp.float32) + params[f"b{idx}"]
        z = _SELU_SCALE * jnp.where(
            z > 0, z, _SELU_ALPHA * (jnp.exp(jnp.minimum(z, 0.0)) - 1.0))
        h = z.astype(jnp.bfloat16)
    w4 = params["w4"].astype(jnp.bfloat16)
    return jnp.dot(h, w4, preferred_element_type=jnp.float32) + params["b4"]


if __name__ == "__main__":
    key = jax.random.PRNGKey(0)
    params = init_params(key)
    packed = pack_params(params)

    # small batch (single tile, TB rounded to 16)
    key, kx = jax.random.split(key)
    B = 8
    x = jax.random.normal(kx, (B, D_IN), dtype=jnp.float32)
    out = jax.block_until_ready(classifier_forward(x, packed))
    ref = reference_forward(x, params)
    assert out.shape == (B, D_OUT), out.shape
    assert jnp.allclose(out, ref, atol=2e-2, rtol=2e-2), "mismatch vs reference (B=8)"

    # medium batch (exercises the multi-step grid / padding path: TB=256, 2 steps)
    key, kx2 = jax.random.split(key)
    B2 = 300
    x2 = jax.random.normal(kx2, (B2, D_IN), dtype=jnp.float32)
    out2 = jax.block_until_ready(classifier_forward(x2, packed))
    ref2 = reference_forward(x2, params)
    assert out2.shape == (B2, D_OUT), out2.shape
    assert jnp.allclose(out2, ref2, atol=2e-2, rtol=2e-2), "mismatch vs reference (B=300)"

    print("KERNEL_OK")
</pallas_src>

<mosaic_0001>
module attributes {stable_mosaic.version = 11 : i64} {
  func.func @classifier_kernel(%arg0: i32, %arg1: memref<16x512xbf16, #tpu.memory_space<vmem>>, %arg2: memref<512x1024xbf16, #tpu.memory_space<vmem>>, %arg3: memref<1x1024xf32, #tpu.memory_space<vmem>>, %arg4: memref<1024x512xbf16, #tpu.memory_space<vmem>>, %arg5: memref<1x512xf32, #tpu.memory_space<vmem>>, %arg6: memref<512x128xbf16, #tpu.memory_space<vmem>>, %arg7: memref<1x128xf32, #tpu.memory_space<vmem>>, %arg8: memref<128x128xbf16, #tpu.memory_space<vmem>>, %arg9: memref<1x128xf32, #tpu.memory_space<vmem>>, %arg10: memref<16x128xf32, #tpu.memory_space<vmem>>) attributes {dimension_semantics = [#tpu.dimension_semantics<parallel>], iteration_bounds = array<i64: 1>, scalar_prefetch = 0 : i64, scratch_operands = 0 : i64, tpu.core_type = #tpu.core_type<tc>, window_params = [{transform_indices = @transform_0, window_bounds = array<i64: 16, 512>}, {pipeline_mode = #tpu.pipeline_mode<synchronous>, transform_indices = @transform_1, window_bounds = array<i64: 512, 1024>}, {pipeline_mode = #tpu.pipeline_mode<synchronous>, transform_indices = @transform_2, window_bounds = array<i64: 1, 1024>}, {pipeline_mode = #tpu.pipeline_mode<synchronous>, transform_indices = @transform_3, window_bounds = array<i64: 1024, 512>}, {pipeline_mode = #tpu.pipeline_mode<synchronous>, transform_indices = @transform_4, window_bounds = array<i64: 1, 512>}, {pipeline_mode = #tpu.pipeline_mode<synchronous>, transform_indices = @transform_5, window_bounds = array<i64: 512, 128>}, {pipeline_mode = #tpu.pipeline_mode<synchronous>, transform_indices = @transform_6, window_bounds = array<i64: 1, 128>}, {pipeline_mode = #tpu.pipeline_mode<synchronous>, transform_indices = @transform_7, window_bounds = array<i64: 128, 128>}, {pipeline_mode = #tpu.pipeline_mode<synchronous>, transform_indices = @transform_8, window_bounds = array<i64: 1, 128>}, {transform_indices = @transform_9, window_bounds = array<i64: 16, 128>}]} {
    %c0 = arith.constant 0 : index
    %c0_0 = arith.constant 0 : index
    %0 = vector.load %arg1[%c0, %c0_0] : memref<16x512xbf16, #tpu.memory_space<vmem>>, vector<16x512xbf16>
    %c0_1 = arith.constant 0 : index
    %c0_2 = arith.constant 0 : index
    %1 = vector.load %arg2[%c0_1, %c0_2] : memref<512x1024xbf16, #tpu.memory_space<vmem>>, vector<512x1024xbf16>
    %cst = arith.constant dense<0.000000e+00> : vector<16x1024xf32>
    %2 = tpu.matmul %0, %1, %cst {dimension_numbers = #tpu.dot_dimension_numbers<[1], [0], [0], [1], [0, 0, 1, 1], [], []>} : vector<16x512xbf16>, vector<512x1024xbf16>, vector<16x1024xf32> -> vector<16x1024xf32>
    %c0_3 = arith.constant 0 : index
    %c0_4 = arith.constant 0 : index
    %3 = vector.load %arg3[%c0_3, %c0_4] : memref<1x1024xf32, #tpu.memory_space<vmem>>, vector<1x1024xf32>
    %4 = vector.broadcast %3 : vector<1x1024xf32> to vector<16x1024xf32>
    %5 = arith.addf %2, %4 : vector<16x1024xf32>
    %cst_5 = arith.constant 0.000000e+00 : f32
    %6 = vector.broadcast %cst_5 : f32 to vector<16x1024xf32>
    %7 = arith.cmpf ogt, %5, %6 : vector<16x1024xf32>
    %8 = math.exp %5 : vector<16x1024xf32>
    %cst_6 = arith.constant 1.000000e+00 : f32
    %9 = vector.broadcast %cst_6 : f32 to vector<16x1024xf32>
    %10 = arith.subf %8, %9 : vector<16x1024xf32>
    %cst_7 = arith.constant 1.67326319 : f32
    %11 = vector.broadcast %cst_7 : f32 to vector<16x1024xf32>
    %12 = arith.mulf %11, %10 : vector<16x1024xf32>
    %13 = arith.select %7, %5, %12 : vector<16x1024xi1>, vector<16x1024xf32>
    %14 = arith.truncf %13 : vector<16x1024xf32> to vector<16x1024xbf16>
    %c0_8 = arith.constant 0 : index
    %c0_9 = arith.constant 0 : index
    %15 = vector.load %arg4[%c0_8, %c0_9] : memref<1024x512xbf16, #tpu.memory_space<vmem>>, vector<1024x512xbf16>
    %cst_10 = arith.constant dense<0.000000e+00> : vector<16x512xf32>
    %16 = tpu.matmul %14, %15, %cst_10 {dimension_numbers = #tpu.dot_dimension_numbers<[1], [0], [0], [1], [0, 0, 1, 1], [], []>} : vector<16x1024xbf16>, vector<1024x512xbf16>, vector<16x512xf32> -> vector<16x512xf32>
    %c0_11 = arith.constant 0 : index
    %c0_12 = arith.constant 0 : index
    %17 = vector.load %arg5[%c0_11, %c0_12] : memref<1x512xf32, #tpu.memory_space<vmem>>, vector<1x512xf32>
    %18 = vector.broadcast %17 : vector<1x512xf32> to vector<16x512xf32>
    %19 = arith.addf %16, %18 : vector<16x512xf32>
    %cst_13 = arith.constant 0.000000e+00 : f32
    %20 = vector.broadcast %cst_13 : f32 to vector<16x512xf32>
    %21 = arith.cmpf ogt, %19, %20 : vector<16x512xf32>
    %22 = math.exp %19 : vector<16x512xf32>
    %cst_14 = arith.constant 1.000000e+00 : f32
    %23 = vector.broadcast %cst_14 : f32 to vector<16x512xf32>
    %24 = arith.subf %22, %23 : vector<16x512xf32>
    %cst_15 = arith.constant 1.67326319 : f32
    %25 = vector.broadcast %cst_15 : f32 to vector<16x512xf32>
    %26 = arith.mulf %25, %24 : vector<16x512xf32>
    %27 = arith.select %21, %19, %26 : vector<16x512xi1>, vector<16x512xf32>
    %28 = arith.truncf %27 : vector<16x512xf32> to vector<16x512xbf16>
    %c0_16 = arith.constant 0 : index
    %c0_17 = arith.constant 0 : index
    %29 = vector.load %arg6[%c0_16, %c0_17] : memref<512x128xbf16, #tpu.memory_space<vmem>>, vector<512x128xbf16>
    %cst_18 = arith.constant dense<0.000000e+00> : vector<16x128xf32>
    %30 = tpu.matmul %28, %29, %cst_18 {dimension_numbers = #tpu.dot_dimension_numbers<[1], [0], [0], [1], [0, 0, 1, 1], [], []>} : vector<16x512xbf16>, vector<512x128xbf16>, vector<16x128xf32> -> vector<16x128xf32>
    %c0_19 = arith.constant 0 : index
    %c0_20 = arith.constant 0 : index
    %31 = vector.load %arg7[%c0_19, %c0_20] : memref<1x128xf32, #tpu.memory_space<vmem>>, vector<1x128xf32>
    %32 = vector.broadcast %31 : vector<1x128xf32> to vector<16x128xf32>
    %33 = arith.addf %30, %32 : vector<16x128xf32>
    %cst_21 = arith.constant 0.000000e+00 : f32
    %34 = vector.broadcast %cst_21 : f32 to vector<16x128xf32>
    %35 = arith.cmpf ogt, %33, %34 : vector<16x128xf32>
    %36 = math.exp %33 : vector<16x128xf32>
    %cst_22 = arith.constant 1.000000e+00 : f32
    %37 = vector.broadcast %cst_22 : f32 to vector<16x128xf32>
    %38 = arith.subf %36, %37 : vector<16x128xf32>
    %cst_23 = arith.constant 1.67326319 : f32
    %39 = vector.broadcast %cst_23 : f32 to vector<16x128xf32>
    %40 = arith.mulf %39, %38 : vector<16x128xf32>
    %41 = arith.select %35, %33, %40 : vector<16x128xi1>, vector<16x128xf32>
    %42 = arith.truncf %41 : vector<16x128xf32> to vector<16x128xbf16>
    %c0_24 = arith.constant 0 : index
    %c0_25 = arith.constant 0 : index
    %43 = vector.load %arg8[%c0_24, %c0_25] : memref<128x128xbf16, #tpu.memory_space<vmem>>, vector<128x128xbf16>
    %cst_26 = arith.constant dense<0.000000e+00> : vector<16x128xf32>
    %44 = tpu.matmul %42, %43, %cst_26 {dimension_numbers = #tpu.dot_dimension_numbers<[1], [0], [0], [1], [0, 0, 1, 1], [], []>} : vector<16x128xbf16>, vector<128x128xbf16>, vector<16x128xf32> -> vector<16x128xf32>
    %c0_27 = arith.constant 0 : index
    %c0_28 = arith.constant 0 : index
    %45 = vector.load %arg9[%c0_27, %c0_28] : memref<1x128xf32, #tpu.memory_space<vmem>>, vector<1x128xf32>
    %46 = vector.broadcast %45 : vector<1x128xf32> to vector<16x128xf32>
    %47 = arith.addf %44, %46 : vector<16x128xf32>
    %c0_29 = arith.constant 0 : index
    %c0_30 = arith.constant 0 : index
    %48 = vector.load %arg10[%c0_29, %c0_30] : memref<16x128xf32, #tpu.memory_space<vmem>>, vector<16x128xf32>
    tpu.vector_store %arg10[%c0_29, %c0_30], %47 {strides = array<i32>} : memref<16x128xf32, #tpu.memory_space<vmem>>, vector<16x128xf32>,
    return
  }
  func.func @transform_0(%arg0: i32) -> (i32, i32) {
    %c0_i32 = arith.constant 0 : i32
    %c0_i32_0 = arith.constant 0 : i32
    return %arg0, %c0_i32 : i32, i32
  }
  func.func @transform_1(%arg0: i32) -> (i32, i32) {
    %c0_i32 = arith.constant 0 : i32
    %c0_i32_0 = arith.constant 0 : i32
    %c0_i32_1 = arith.constant 0 : i32
    return %c0_i32, %c0_i32_0 : i32, i32
  }
  func.func @transform_2(%arg0: i32) -> (i32, i32) {
    %c0_i32 = arith.constant 0 : i32
    %c0_i32_0 = arith.constant 0 : i32
    %c0_i32_1 = arith.constant 0 : i32
    return %c0_i32, %c0_i32_0 : i32, i32
  }
  func.func @transform_3(%arg0: i32) -> (i32, i32) {
    %c0_i32 = arith.constant 0 : i32
    %c0_i32_0 = arith.constant 0 : i32
    %c0_i32_1 = arith.constant 0 : i32
    return %c0_i32, %c0_i32_0 : i32, i32
  }
  func.func @transform_4(%arg0: i32) -> (i32, i32) {
    %c0_i32 = arith.constant 0 : i32
    %c0_i32_0 = arith.constant 0 : i32
    %c0_i32_1 = arith.constant 0 : i32
    return %c0_i32, %c0_i32_0 : i32, i32
  }
  func.func @transform_5(%arg0: i32) -> (i32, i32) {
    %c0_i32 = arith.constant 0 : i32
    %c0_i32_0 = arith.constant 0 : i32
    %c0_i32_1 = arith.constant 0 : i32
    return %c0_i32, %c0_i32_0 : i32, i32
  }
  func.func @transform_6(%arg0: i32) -> (i32, i32) {
    %c0_i32 = arith.constant 0 : i32
    %c0_i32_0 = arith.constant 0 : i32
    %c0_i32_1 = arith.constant 0 : i32
    return %c0_i32, %c0_i32_0 : i32, i32
  }
  func.func @transform_7(%arg0: i32) -> (i32, i32) {
    %c0_i32 = arith.constant 0 : i32
    %c0_i32_0 = arith.constant 0 : i32
    %c0_i32_1 = arith.constant 0 : i32
    return %c0_i32, %c0_i32_0 : i32, i32
  }
  func.func @transform_8(%arg0: i32) -> (i32, i32) {
    %c0_i32 = arith.constant 0 : i32
    %c0_i32_0 = arith.constant 0 : i32
    %c0_i32_1 = arith.constant 0 : i32
    return %c0_i32, %c0_i32_0 : i32, i32
  }
  func.func @transform_9(%arg0: i32) -> (i32, i32) {
    %c0_i32 = arith.constant 0 : i32
    %c0_i32_0 = arith.constant 0 : i32
    return %arg0, %c0_i32 : i32, i32
  }
}

</mosaic_0001>

<llo_original>
// kernel: _forward_padded.1
$region0: #{_forward_padded.1}
  #allocation0 [shape = 'u32[]', space=smem, size = 0x4, offset = 0x4, fixed_abs, tag = 'smem constant byte address 0x4 - core index']
  #allocation1 [shape = 'u32[72,128]{1,0:T(1,128)}', space=vmem, size = 0x9000, scoped, tag = 'internal scratch']
  %s0 = inlined_call_operand.vmem [shape: bf16[16,512], index: 0, kind: input, shape index: {}]
  %s1 = inlined_call_operand.hbm [shape: bf16[512,1024], index: 1, kind: input, shape index: {}]
  %s2 = inlined_call_operand.vmem [shape: f32[1,1024], index: 2, kind: input, shape index: {}]
  %s3 = inlined_call_operand.hbm [shape: bf16[1024,512], index: 3, kind: input, shape index: {}]
  %s4 = inlined_call_operand.vmem [shape: f32[1,512], index: 4, kind: input, shape index: {}]
  %s5 = inlined_call_operand.hbm [shape: bf16[512,128], index: 5, kind: input, shape index: {}]
  %s6 = inlined_call_operand.vmem [shape: f32[1,128], index: 6, kind: input, shape index: {}]
  %s7 = inlined_call_operand.vmem [shape: bf16[128,128], index: 7, kind: input, shape index: {}]
  %s8 = inlined_call_operand.vmem [shape: f32[1,128], index: 8, kind: input, shape index: {}]
  %s9 = inlined_call_operand.vmem [shape: f32[16,128], index: 9, kind: output, shape index: {}]
  %s10 = sld [smem:[#allocation0]]
  $region58: #{_forward_padded.1} parent=0
    _
  %s12 = ssub.s32 1, %s10
  %s13 = scalar_select 0, %s12, %s10
  $region1: #{_forward_padded.1} parent=0
    #allocation2 [shape = 'u8[1048576]{0}', space=vmem, size = 0x100000, scoped, tag = 'input window, operand 1, single buffered']
    #allocation3 [shape = 's32[1]{0}', space=sflag, size = 0x4, scoped, tag = 'scoped memory for _forward_padded.1']
    #allocation4 [shape = 'u8[1048576]{0}', space=vmem, size = 0x100000, scoped, tag = 'input window, operand 3, single buffered']
    #allocation5 [shape = 's32[1]{0}', space=sflag, size = 0x4, scoped, tag = 'scoped memory for _forward_padded.1']
    #allocation6 [shape = 'u8[131072]{0}', space=vmem, size = 0x20000, scoped, tag = 'input window, operand 5, single buffered']
    %14 = vsyncpa [#allocation3], 0
    %15 = vsyncpa [#allocation5], 0
    // Predicated region
    $region2: #{_forward_padded.1} parent=1 // pred_check
      _
    $region3: #{_forward_padded.1} parent=1 // pred_check_branch
      %17 = sbr.rel (0) target = $region5
    $region4: #{_forward_padded.1} parent=1 // pred_region
      _
    $region5: #{_forward_padded.1} parent=1 // pred_fallthru
      _
    // Predicated region
    $region6: #{_forward_padded.1} parent=1 // pred_check
      _
    $region7: #{_forward_padded.1} parent=1 // pred_check_branch
      %19 = sbr.rel (0) target = $region9
    $region8: #{_forward_padded.1} parent=1 // pred_region
      %21 = vsyncadd [#allocation3], 0
      %s22 = sshll.u32 %s1, 4
      %s23 = int_to_ptr.hbm [resolvable:$true] %s22
      %s24 = sshll.u32 [#allocation2], 4
      %s25 = int_to_ptr.vmem [resolvable:$true] %s24
      %30 = dma.hbm_to_vmem [thread:$0]  %s23, 32768, %s25, [#allocation3], 512, 512, 32
    $region9: #{_forward_padded.1} parent=1 // pred_fallthru
      _
    // Predicated region
    $region10: #{_forward_padded.1} parent=1 // pred_check
      _
    $region11: #{_forward_padded.1} parent=1 // pred_check_branch
      %32 = sbr.rel (0) target = $region13
    $region12: #{_forward_padded.1} parent=1 // pred_region
      _
    $region13: #{_forward_padded.1} parent=1 // pred_fallthru
      _
    // Predicated region
    $region14: #{_forward_padded.1} parent=1 // pred_check
      _
    $region15: #{_forward_padded.1} parent=1 // pred_check_branch
      %34 = sbr.rel (0) target = $region17
    $region16: #{_forward_padded.1} parent=1 // pred_region
      %36 = vsyncadd [#allocation5], 0
      %s37 = sshll.u32 %s3, 4
      %s38 = int_to_ptr.hbm [resolvable:$true] %s37
      %s39 = sshll.u32 [#allocation4], 4
      %s40 = int_to_ptr.vmem [resolvable:$true] %s39
      %45 = dma.hbm_to_vmem [thread:$0]  %s38, 32768, %s40, [#allocation5], 256, 256, 16
    $region17: #{_forward_padded.1} parent=1 // pred_fallthru
      _
    // Predicated region
    $region18: #{_forward_padded.1} parent=1 // pred_check
      _
    $region19: #{_forward_padded.1} parent=1 // pred_check_branch
      %47 = sbr.rel (0) target = $region21
    $region20: #{_forward_padded.1} parent=1 // pred_region
      _
    $region21: #{_forward_padded.1} parent=1 // pred_fallthru
      _
    // Predicated region
    $region22: #{_forward_padded.1} parent=1 // pred_check
      _
    $region23: #{_forward_padded.1} parent=1 // pred_check_branch
      %49 = sbr.rel (0) target = $region25
    $region24: #{_forward_padded.1} parent=1 // pred_region
      %51 = vsyncadd [#allocation5], 0
      %s52 = sshll.u32 %s5, 4
      %s53 = int_to_ptr.hbm [resolvable:$true] %s52
      %s54 = sshll.u32 [#allocation6], 4
      %s55 = int_to_ptr.vmem [resolvable:$true] %s54
      %60 = dma.hbm_to_vmem [thread:$0]  %s53, 4096, %s55, [#allocation5], 64, 64, 4
    $region25: #{_forward_padded.1} parent=1 // pred_fallthru
      _
    // Predicated region
    $region26: #{_forward_padded.1} parent=1 // pred_check
      _
    $region27: #{_forward_padded.1} parent=1 // pred_check_branch
      %62 = sbr.rel (0) target = $region29
    $region28: #{_forward_padded.1} parent=1 // pred_region
      _
    $region29: #{_forward_padded.1} parent=1 // pred_fallthru
      _
    // Predicated region
    $region30: #{_forward_padded.1} parent=1 // pred_check
      _
    $region31: #{_forward_padded.1} parent=1 // pred_check_branch
      %64 = sbr.rel (0) target = $region33
    $region32: #{_forward_padded.1} parent=1 // pred_region
      _
    $region33: #{_forward_padded.1} parent=1 // pred_fallthru
      _
    // Predicated region
    $region34: #{_forward_padded.1} parent=1 // pred_check
      _
    $region35: #{_forward_padded.1} parent=1 // pred_check_branch
      %66 = sbr.rel (0) target = $region37
    $region36: #{_forward_padded.1} parent=1 // pred_region
      _
    $region37: #{_forward_padded.1} parent=1 // pred_fallthru
      _
    // Predicated region
    $region38: #{_forward_padded.1} parent=1 // pred_check
      _
    $region39: #{_forward_padded.1} parent=1 // pred_check_branch
      %68 = sbr.rel (0) target = $region41
    $region40: #{_forward_padded.1} parent=1 // pred_region
      %70 = dma.done [#allocation3], 32768
    $region41: #{_forward_padded.1} parent=1 // pred_fallthru
      _
    // Predicated region
    $region42: #{_forward_padded.1} parent=1 // pred_check
      _
    $region43: #{_forward_padded.1} parent=1 // pred_check_branch
      %72 = sbr.rel (0) target = $region45
    $region44: #{_forward_padded.1} parent=1 // pred_region
      %74 = dma.done [#allocation5], 32768
    $region45: #{_forward_padded.1} parent=1 // pred_fallthru
      _
    // Predicated region
    $region46: #{_forward_padded.1} parent=1 // pred_check
      _
    $region47: #{_forward_padded.1} parent=1 // pred_check_branch
      %76 = sbr.rel (0) target = $region49
    $region48: #{_forward_padded.1} parent=1 // pred_region
      %78 = dma.done [#allocation5], 4096
    $region49: #{_forward_padded.1} parent=1 // pred_fallthru
      _
    %v79 = vld [vmem:[%s0] sm:$0xff]
    %v80 = vld [vmem:[%s0 + $0x8] sm:$0xff]
    %v81 = vld [vmem:[%s0 + $0x10] sm:$0xff]
    %v82 = vld [vmem:[%s0 + $0x18] sm:$0xff]
    %v83 = vld [vmem:[#allocation2] sm:$0xff]
    %v84 = vld [vmem:[#allocation2 + $0x8] sm:$0xff]
    %v85 = vld [vmem:[#allocation2 + $0x10] sm:$0xff]
    %v86 = vld [vmem:[#allocation2 + $0x18] sm:$0xff]
    %v87 = vld [vmem:[#allocation2 + $0x20] sm:$0xff]
    %v88 = vld [vmem:[#allocation2 + $0x28] sm:$0xff]
    %v89 = vld [vmem:[#allocation2 + $0x30] sm:$0xff]
    %v90 = vld [vmem:[#allocation2 + $0x38] sm:$0xff]
    %v91 = vld [vmem:[#allocation2 + $0x40] sm:$0xff]
    %v92 = vld [vmem:[#allocation2 + $0x48] sm:$0xff]
    %v93 = vld [vmem:[#allocation2 + $0x50] sm:$0xff]
    %v94 = vld [vmem:[#allocation2 + $0x58] sm:$0xff]
    %v95 = vld [vmem:[#allocation2 + $0x60] sm:$0xff]
    %v96 = vld [vmem:[#allocation2 + $0x68] sm:$0xff]
    %v97 = vld [vmem:[#allocation2 + $0x70] sm:$0xff]
    %v98 = vld [vmem:[#allocation2 + $0x78] sm:$0xff]
    %v99 = vld [vmem:[#allocation2 + $0x80] sm:$0xff]
    %v100 = vld [vmem:[#allocation2 + $0x88] sm:$0xff]
    %v101 = vld [vmem:[#allocation2 + $0x90] sm:$0xff]
    %v102 = vld [vmem:[#allocation2 + $0x98] sm:$0xff]
    %v103 = vld [vmem:[#allocation2 + $0xa0] sm:$0xff]
    %v104 = vld [vmem:[#allocation2 + $0xa8] sm:$0xff]
    %v105 = vld [vmem:[#allocation2 + $0xb0] sm:$0xff]
    %v106 = vld [vmem:[#allocation2 + $0xb8] sm:$0xff]
    %v107 = vld [vmem:[#allocation2 + $0xc0] sm:$0xff]
    %v108 = vld [vmem:[#allocation2 + $0xc8] sm:$0xff]
    %v109 = vld [vmem:[#allocation2 + $0xd0] sm:$0xff]
    %v110 = vld [vmem:[#allocation2 + $0xd8] sm:$0xff]
    %v111 = vld [vmem:[#allocation2 + $0xe0] sm:$0xff]
    %v112 = vld [vmem:[#allocation2 + $0xe8] sm:$0xff]
    %v113 = vld [vmem:[#allocation2 + $0xf0] sm:$0xff]
    %v114 = vld [vmem:[#allocation2 + $0xf8] sm:$0xff]
    %v115 = vld [vmem:[#allocation2 + $0x100] sm:$0xff]
    %v116 = vld [vmem:[#allocation2 + $0x108] sm:$0xff]
    %v117 = vld [vmem:[#allocation2 + $0x110] sm:$0xff]
    %v118 = vld [vmem:[#allocation2 + $0x118] sm:$0xff]
    %v119 = vld [vmem:[#allocation2 + $0x120] sm:$0xff]
    %v120 = vld [vmem:[#allocation2 + $0x128] sm:$0xff]
    %v121 = vld [vmem:[#allocation2 + $0x130] sm:$0xff]
    %v122 = vld [vmem:[#allocation2 + $0x138] sm:$0xff]
    %v123 = vld [vmem:[#allocation2 + $0x140] sm:$0xff]
    %v124 = vld [vmem:[#allocation2 + $0x148] sm:$0xff]
    %v125 = vld [vmem:[#allocation2 + $0x150] sm:$0xff]
    %v126 = vld [vmem:[#allocation2 + $0x158] sm:$0xff]
    %v127 = vld [vmem:[#allocation2 + $0x160] sm:$0xff]
    %v128 = vld [vmem:[#allocation2 + $0x168] sm:$0xff]
    %v129 = vld [vmem:[#allocation2 + $0x170] sm:$0xff]
    %v130 = vld [vmem:[#allocation2 + $0x178] sm:$0xff]
    %v131 = vld [vmem:[#allocation2 + $0x180] sm:$0xff]
    %v132 = vld [vmem:[#allocation2 + $0x188] sm:$0xff]
    %v133 = vld [vmem:[#allocation2 + $0x190] sm:$0xff]
    %v134 = vld [vmem:[#allocation2 + $0x198] sm:$0xff]
    %v135 = vld [vmem:[#allocation2 + $0x1a0] sm:$0xff]
    %v136 = vld [vmem:[#allocation2 + $0x1a8] sm:$0xff]
    %v137 = vld [vmem:[#allocation2 + $0x1b0] sm:$0xff]
    %v138 = vld [vmem:[#allocation2 + $0x1b8] sm:$0xff]
    %v139 = vld [vmem:[#allocation2 + $0x1c0] sm:$0xff]
    %v140 = vld [vmem:[#allocation2 + $0x1c8] sm:$0xff]
    %v141 = vld [vmem:[#allocation2 + $0x1d0] sm:$0xff]
    %v142 = vld [vmem:[#allocation2 + $0x1d8] sm:$0xff]
    %v143 = vld [vmem:[#allocation2 + $0x1e0] sm:$0xff]
    %v144 = vld [vmem:[#allocation2 + $0x1e8] sm:$0xff]
    %v145 = vld [vmem:[#allocation2 + $0x1f0] sm:$0xff]
    %v146 = vld [vmem:[#allocation2 + $0x1f8] sm:$0xff]
    %v147 = vld [vmem:[#allocation2 + $0x200] sm:$0xff]
    %v148 = vld [vmem:[#allocation2 + $0x208] sm:$0xff]
    %v149 = vld [vmem:[#allocation2 + $0x210] sm:$0xff]
    %v150 = vld [vmem:[#allocation2 + $0x218] sm:$0xff]
    %v151 = vld [vmem:[#allocation2 + $0x220] sm:$0xff]
    %v152 = vld [vmem:[#allocation2 + $0x228] sm:$0xff]
    %v153 = vld [vmem:[#allocation2 + $0x230] sm:$0xff]
    %v154 = vld [vmem:[#allocation2 + $0x238] sm:$0xff]
    %v155 = vld [vmem:[#allocation2 + $0x240] sm:$0xff]
    %v156 = vld [vmem:[#allocation2 + $0x248] sm:$0xff]
    %v157 = vld [vmem:[#allocation2 + $0x250] sm:$0xff]
    %v158 = vld [vmem:[#allocation2 + $0x258] sm:$0xff]
    %v159 = vld [vmem:[#allocation2 + $0x260] sm:$0xff]
    %v160 = vld [vmem:[#allocation2 + $0x268] sm:$0xff]
    %v161 = vld [vmem:[#allocation2 + $0x270] sm:$0xff]
    %v162 = vld [vmem:[#allocation2 + $0x278] sm:$0xff]
    %v163 = vld [vmem:[#allocation2 + $0x280] sm:$0xff]
    %v164 = vld [vmem:[#allocation2 + $0x288] sm:$0xff]
    %v165 = vld [vmem:[#allocation2 + $0x290] sm:$0xff]
    %v166 = vld [vmem:[#allocation2 + $0x298] sm:$0xff]
    %v167 = vld [vmem:[#allocation2 + $0x2a0] sm:$0xff]
    %v168 = vld [vmem:[#allocation2 + $0x2a8] sm:$0xff]
    %v169 = vld [vmem:[#allocation2 + $0x2b0] sm:$0xff]
    %v170 = vld [vmem:[#allocation2 + $0x2b8] sm:$0xff]
    %v171 = vld [vmem:[#allocation2 + $0x2c0] sm:$0xff]
    %v172 = vld [vmem:[#allocation2 + $0x2c8] sm:$0xff]
    %v173 = vld [vmem:[#allocation2 + $0x2d0] sm:$0xff]
    %v174 = vld [vmem:[#allocation2 + $0x2d8] sm:$0xff]
    %v175 = vld [vmem:[#allocation2 + $0x2e0] sm:$0xff]
    %v176 = vld [vmem:[#allocation2 + $0x2e8] sm:$0xff]
    %v177 = vld [vmem:[#allocation2 + $0x2f0] sm:$0xff]
    %v178 = vld [vmem:[#allocation2 + $0x2f8] sm:$0xff]
    %v179 = vld [vmem:[#allocation2 + $0x300] sm:$0xff]
    %v180 = vld [vmem:[#allocation2 + $0x308] sm:$0xff]
    %v181 = vld [vmem:[#allocation2 + $0x310] sm:$0xff]
    %v182 = vld [vmem:[#allocation2 + $0x318] sm:$0xff]
    %v183 = vld [vmem:[#allocation2 + $0x320] sm:$0xff]
    %v184 = vld [vmem:[#allocation2 + $0x328] sm:$0xff]
    %v185 = vld [vmem:[#allocation2 + $0x330] sm:$0xff]
    %v186 = vld [vmem:[#allocation2 + $0x338] sm:$0xff]
    %v187 = vld [vmem:[#allocation2 + $0x340] sm:$0xff]
    %v188 = vld [vmem:[#allocation2 + $0x348] sm:$0xff]
    %v189 = vld [vmem:[#allocation2 + $0x350] sm:$0xff]
    %v190 = vld [vmem:[#allocation2 + $0x358] sm:$0xff]
    %v191 = vld [vmem:[#allocation2 + $0x360] sm:$0xff]
    %v192 = vld [vmem:[#allocation2 + $0x368] sm:$0xff]
    %v193 = vld [vmem:[#allocation2 + $0x370] sm:$0xff]
    %v194 = vld [vmem:[#allocation2 + $0x378] sm:$0xff]
    %v195 = vld [vmem:[#allocation2 + $0x380] sm:$0xff]
    %v196 = vld [vmem:[#allocation2 + $0x388] sm:$0xff]
    %v197 = vld [vmem:[#allocation2 + $0x390] sm:$0xff]
    %v198 = vld [vmem:[#allocation2 + $0x398] sm:$0xff]
    %v199 = vld [vmem:[#allocation2 + $0x3a0] sm:$0xff]
    %v200 = vld [vmem:[#allocation2 + $0x3a8] sm:$0xff]
    %v201 = vld [vmem:[#allocation2 + $0x3b0] sm:$0xff]
    %v202 = vld [vmem:[#allocation2 + $0x3b8] sm:$0xff]
    %v203 = vld [vmem:[#allocation2 + $0x3c0] sm:$0xff]
    %v204 = vld [vmem:[#allocation2 + $0x3c8] sm:$0xff]
    %v205 = vld [vmem:[#allocation2 + $0x3d0] sm:$0xff]
    %v206 = vld [vmem:[#allocation2 + $0x3d8] sm:$0xff]
    %v207 = vld [vmem:[#allocation2 + $0x3e0] sm:$0xff]
    %v208 = vld [vmem:[#allocation2 + $0x3e8] sm:$0xff]
    %v209 = vld [vmem:[#allocation2 + $0x3f0] sm:$0xff]
    %v210 = vld [vmem:[#allocation2 + $0x3f8] sm:$0xff]
    %v211 = vld [vmem:[#allocation2 + $0x400] sm:$0xff]
    %v212 = vld [vmem:[#allocation2 + $0x408] sm:$0xff]
    %v213 = vld [vmem:[#allocation2 + $0x410] sm:$0xff]
    %v214 = vld [vmem:[#allocation2 + $0x418] sm:$0xff]
    %v215 = vld [vmem:[#allocation2 + $0x420] sm:$0xff]
    %v216 = vld [vmem:[#allocation2 + $0x428] sm:$0xff]
    %v217 = vld [vmem:[#allocation2 + $0x430] sm:$0xff]
    %v218 = vld [vmem:[#allocation2 + $0x438] sm:$0xff]
    %v219 = vld [vmem:[#allocation2 + $0x440] sm:$0xff]
    %v220 = vld [vmem:[#allocation2 + $0x448] sm:$0xff]
    %v221 = vld [vmem:[#allocation2 + $0x450] sm:$0xff]
    %v222 = vld [vmem:[#allocation2 + $0x458] sm:$0xff]
    %v223 = vld [vmem:[#allocation2 + $0x460] sm:$0xff]
    %v224 = vld [vmem:[#allocation2 + $0x468] sm:$0xff]
    %v225 = vld [vmem:[#allocation2 + $0x470] sm:$0xff]
    %v226 = vld [vmem:[#allocation2 + $0x478] sm:$0xff]
    %v227 = vld [vmem:[#allocation2 + $0x480] sm:$0xff]
    %v228 = vld [vmem:[#allocation2 + $0x488] sm:$0xff]
    %v229 = vld [vmem:[#allocation2 + $0x490] sm:$0xff]
    %v230 = vld [vmem:[#allocation2 + $0x498] sm:$0xff]
    %v231 = vld [vmem:[#allocation2 + $0x4a0] sm:$0xff]
    %v232 = vld [vmem:[#allocation2 + $0x4a8] sm:$0xff]
    %v233 = vld [vmem:[#allocation2 + $0x4b0] sm:$0xff]
    %v234 = vld [vmem:[#allocation2 + $0x4b8] sm:$0xff]
    %v235 = vld [vmem:[#allocation2 + $0x4c0] sm:$0xff]
    %v236 = vld [vmem:[#allocation2 + $0x4c8] sm:$0xff]
    %v237 = vld [vmem:[#allocation2 + $0x4d0] sm:$0xff]
    %v238 = vld [vmem:[#allocation2 + $0x4d8] sm:$0xff]
    %v239 = vld [vmem:[#allocation2 + $0x4e0] sm:$0xff]
    %v240 = vld [vmem:[#allocation2 + $0x4e8] sm:$0xff]
    %v241 = vld [vmem:[#allocation2 + $0x4f0] sm:$0xff]
    %v242 = vld [vmem:[#allocation2 + $0x4f8] sm:$0xff]
    %v243 = vld [vmem:[#allocation2 + $0x500] sm:$0xff]
    %v244 = vld [vmem:[#allocation2 + $0x508] sm:$0xff]
    %v245 = vld [vmem:[#allocation2 + $0x510] sm:$0xff]
    %v246 = vld [vmem:[#allocation2 + $0x518] sm:$0xff]
    %v247 = vld [vmem:[#allocation2 + $0x520] sm:$0xff]
    %v248 = vld [vmem:[#allocation2 + $0x528] sm:$0xff]
    %v249 = vld [vmem:[#allocation2 + $0x530] sm:$0xff]
    %v250 = vld [vmem:[#allocation2 + $0x538] sm:$0xff]
    %v251 = vld [vmem:[#allocation2 + $0x540] sm:$0xff]
    %v252 = vld [vmem:[#allocation2 + $0x548] sm:$0xff]
    %v253 = vld [vmem:[#allocation2 + $0x550] sm:$0xff]
    %v254 = vld [vmem:[#allocation2 + $0x558] sm:$0xff]
    %v255 = vld [vmem:[#allocation2 + $0x560] sm:$0xff]
    %v256 = vld [vmem:[#allocation2 + $0x568] sm:$0xff]
    %v257 = vld [vmem:[#allocation2 + $0x570] sm:$0xff]
    %v258 = vld [vmem:[#allocation2 + $0x578] sm:$0xff]
    %v259 = vld [vmem:[#allocation2 + $0x580] sm:$0xff]
    %v260 = vld [vmem:[#allocation2 + $0x588] sm:$0xff]
    %v261 = vld [vmem:[#allocation2 + $0x590] sm:$0xff]
    %v262 = vld [vmem:[#allocation2 + $0x598] sm:$0xff]
    %v263 = vld [vmem:[#allocation2 + $0x5a0] sm:$0xff]
    %v264 = vld [vmem:[#allocation2 + $0x5a8] sm:$0xff]
    %v265 = vld [vmem:[#allocation2 + $0x5b0] sm:$0xff]
    %v266 = vld [vmem:[#allocation2 + $0x5b8] sm:$0xff]
    %v267 = vld [vmem:[#allocation2 + $0x5c0] sm:$0xff]
    %v268 = vld [vmem:[#allocation2 + $0x5c8] sm:$0xff]
    %v269 = vld [vmem:[#allocation2 + $0x5d0] sm:$0xff]
    %v270 = vld [vmem:[#allocation2 + $0x5d8] sm:$0xff]
    %v271 = vld [vmem:[#allocation2 + $0x5e0] sm:$0xff]
    %v272 = vld [vmem:[#allocation2 + $0x5e8] sm:$0xff]
    %v273 = vld [vmem:[#allocation2 + $0x5f0] sm:$0xff]
    %v274 = vld [vmem:[#allocation2 + $0x5f8] sm:$0xff]
    %v275 = vld [vmem:[#allocation2 + $0x600] sm:$0xff]
    %v276 = vld [vmem:[#allocation2 + $0x608] sm:$0xff]
    %v277 = vld [vmem:[#allocation2 + $0x610] sm:$0xff]
    %v278 = vld [vmem:[#allocation2 + $0x618] sm:$0xff]
    %v279 = vld [vmem:[#allocation2 + $0x620] sm:$0xff]
    %v280 = vld [vmem:[#allocation2 + $0x628] sm:$0xff]
    %v281 = vld [vmem:[#allocation2 + $0x630] sm:$0xff]
    %v282 = vld [vmem:[#allocation2 + $0x638] sm:$0xff]
    %v283 = vld [vmem:[#allocation2 + $0x640] sm:$0xff]
    %v284 = vld [vmem:[#allocation2 + $0x648] sm:$0xff]
    %v285 = vld [vmem:[#allocation2 + $0x650] sm:$0xff]
    %v286 = vld [vmem:[#allocation2 + $0x658] sm:$0xff]
    %v287 = vld [vmem:[#allocation2 + $0x660] sm:$0xff]
    %v288 = vld [vmem:[#allocation2 + $0x668] sm:$0xff]
    %v289 = vld [vmem:[#allocation2 + $0x670] sm:$0xff]
    %v290 = vld [vmem:[#allocation2 + $0x678] sm:$0xff]
    %v291 = vld [vmem:[#allocation2 + $0x680] sm:$0xff]
    %v292 = vld [vmem:[#allocation2 + $0x688] sm:$0xff]
    %v293 = vld [vmem:[#allocation2 + $0x690] sm:$0xff]
    %v294 = vld [vmem:[#allocation2 + $0x698] sm:$0xff]
    %v295 = vld [vmem:[#allocation2 + $0x6a0] sm:$0xff]
    %v296 = vld [vmem:[#allocation2 + $0x6a8] sm:$0xff]
    %v297 = vld [vmem:[#allocation2 + $0x6b0] sm:$0xff]
    %v298 = vld [vmem:[#allocation2 + $0x6b8] sm:$0xff]
    %v299 = vld [vmem:[#allocation2 + $0x6c0] sm:$0xff]
    %v300 = vld [vmem:[#allocation2 + $0x6c8] sm:$0xff]
    %v301 = vld [vmem:[#allocation2 + $0x6d0] sm:$0xff]
    %v302 = vld [vmem:[#allocation2 + $0x6d8] sm:$0xff]
    %v303 = vld [vmem:[#allocation2 + $0x6e0] sm:$0xff]
    %v304 = vld [vmem:[#allocation2 + $0x6e8] sm:$0xff]
    %v305 = vld [vmem:[#allocation2 + $0x6f0] sm:$0xff]
    %v306 = vld [vmem:[#allocation2 + $0x6f8] sm:$0xff]
    %v307 = vld [vmem:[#allocation2 + $0x700] sm:$0xff]
    %v308 = vld [vmem:[#allocation2 + $0x708] sm:$0xff]
    %v309 = vld [vmem:[#allocation2 + $0x710] sm:$0xff]
    %v310 = vld [vmem:[#allocation2 + $0x718] sm:$0xff]
    %v311 = vld [vmem:[#allocation2 + $0x720] sm:$0xff]
    %v312 = vld [vmem:[#allocation2 + $0x728] sm:$0xff]
    %v313 = vld [vmem:[#allocation2 + $0x730] sm:$0xff]
    %v314 = vld [vmem:[#allocation2 + $0x738] sm:$0xff]
    %v315 = vld [vmem:[#allocation2 + $0x740] sm:$0xff]
    %v316 = vld [vmem:[#allocation2 + $0x748] sm:$0xff]
    %v317 = vld [vmem:[#allocation2 + $0x750] sm:$0xff]
    %v318 = vld [vmem:[#allocation2 + $0x758] sm:$0xff]
    %v319 = vld [vmem:[#allocation2 + $0x760] sm:$0xff]
    %v320 = vld [vmem:[#allocation2 + $0x768] sm:$0xff]
    %v321 = vld [vmem:[#allocation2 + $0x770] sm:$0xff]
    %v322 = vld [vmem:[#allocation2 + $0x778] sm:$0xff]
    %v323 = vld [vmem:[#allocation2 + $0x780] sm:$0xff]
    %v324 = vld [vmem:[#allocation2 + $0x788] sm:$0xff]
    %v325 = vld [vmem:[#allocation2 + $0x790] sm:$0xff]
    %v326 = vld [vmem:[#allocation2 + $0x798] sm:$0xff]
    %v327 = vld [vmem:[#allocation2 + $0x7a0] sm:$0xff]
    %v328 = vld [vmem:[#allocation2 + $0x7a8] sm:$0xff]
    %v329 = vld [vmem:[#allocation2 + $0x7b0] sm:$0xff]
    %v330 = vld [vmem:[#allocation2 + $0x7b8] sm:$0xff]
    %v331 = vld [vmem:[#allocation2 + $0x7c0] sm:$0xff]
    %v332 = vld [vmem:[#allocation2 + $0x7c8] sm:$0xff]
    %v333 = vld [vmem:[#allocation2 + $0x7d0] sm:$0xff]
    %v334 = vld [vmem:[#allocation2 + $0x7d8] sm:$0xff]
    %v335 = vld [vmem:[#allocation2 + $0x7e0] sm:$0xff]
    %v336 = vld [vmem:[#allocation2 + $0x7e8] sm:$0xff]
    %v337 = vld [vmem:[#allocation2 + $0x7f0] sm:$0xff]
    %v338 = vld [vmem:[#allocation2 + $0x7f8] sm:$0xff]
    %v339 = vld [vmem:[%s2] sm:$0xff]
    %v341 = vperm.slane %v339, 0
    %v342 = vperm.slane %v339, 1
    %v343 = vperm.slane %v339, 2
    %v344 = vperm.slane %v339, 3
    %v345 = vperm.slane %v339, 4
    %v346 = vperm.slane %v339, 5
    %v347 = vperm.slane %v339, 6
    %v348 = vperm.slane %v339, 7
    %v361 = vunpack.c.l.b16 %v79
    %v362 = vunpack.c.h.b16 %v79
    %v363 = vunpack.c.l.b16 %v80
    %v364 = vunpack.c.h.b16 %v80
    %v365 = vunpack.c.l.b16 %v81
    %v366 = vunpack.c.h.b16 %v81
    %v367 = vunpack.c.l.b16 %v82
    %v368 = vunpack.c.h.b16 %v82
    %v369 = vpack.c.b16 %v365, %v361
    %v370 = vpack.c.b16 %v366, %v362
    %v371 = vpack.c.b16 %v367, %v363
    %v372 = vpack.c.b16 %v368, %v364
    %v633 = vunpack.c.l.b16 %v83
    %v634 = vunpack.c.h.b16 %v83
    %v635 = vunpack.c.l.b16 %v84
    %v636 = vunpack.c.h.b16 %v84
    %v637 = vunpack.c.l.b16 %v85
    %v638 = vunpack.c.h.b16 %v85
    %v639 = vunpack.c.l.b16 %v86
    %v640 = vunpack.c.h.b16 %v86
    %v641 = vunpack.c.l.b16 %v87
    %v642 = vunpack.c.h.b16 %v87
    %v643 = vunpack.c.l.b16 %v88
    %v644 = vunpack.c.h.b16 %v88
    %v645 = vunpack.c.l.b16 %v89
    %v646 = vunpack.c.h.b16 %v89
    %v647 = vunpack.c.l.b16 %v90
    %v648 = vunpack.c.h.b16 %v90
    %v649 = vunpack.c.l.b16 %v91
    %v650 = vunpack.c.h.b16 %v91
    %v651 = vunpack.c.l.b16 %v92
    %v652 = vunpack.c.h.b16 %v92
    %v653 = vunpack.c.l.b16 %v93
    %v654 = vunpack.c.h.b16 %v93
    %v655 = vunpack.c.l.b16 %v94
    %v656 = vunpack.c.h.b16 %v94
    %v657 = vunpack.c.l.b16 %v95
    %v658 = vunpack.c.h.b16 %v95
    %v659 = vunpack.c.l.b16 %v96
    %v660 = vunpack.c.h.b16 %v96
    %v661 = vunpack.c.l.b16 %v97
    %v662 = vunpack.c.h.b16 %v97
    %v663 = vunpack.c.l.b16 %v98
    %v664 = vunpack.c.h.b16 %v98
    %v665 = vunpack.c.l.b16 %v99
    %v666 = vunpack.c.h.b16 %v99
    %v667 = vunpack.c.l.b16 %v100
    %v668 = vunpack.c.h.b16 %v100
    %v669 = vunpack.c.l.b16 %v101
    %v670 = vunpack.c.h.b16 %v101
    %v671 = vunpack.c.l.b16 %v102
    %v672 = vunpack.c.h.b16 %v102
    %v673 = vunpack.c.l.b16 %v103
    %v674 = vunpack.c.h.b16 %v103
    %v675 = vunpack.c.l.b16 %v104
    %v676 = vunpack.c.h.b16 %v104
    %v677 = vunpack.c.l.b16 %v105
    %v678 = vunpack.c.h.b16 %v105
    %v679 = vunpack.c.l.b16 %v106
    %v680 = vunpack.c.h.b16 %v106
    %v681 = vunpack.c.l.b16 %v107
    %v682 = vunpack.c.h.b16 %v107
    %v683 = vunpack.c.l.b16 %v108
    %v684 = vunpack.c.h.b16 %v108
    %v685 = vunpack.c.l.b16 %v109
    %v686 = vunpack.c.h.b16 %v109
    %v687 = vunpack.c.l.b16 %v110
    %v688 = vunpack.c.h.b16 %v110
    %v689 = vunpack.c.l.b16 %v111
    %v690 = vunpack.c.h.b16 %v111
    %v691 = vunpack.c.l.b16 %v112
    %v692 = vunpack.c.h.b16 %v112
    %v693 = vunpack.c.l.b16 %v113
    %v694 = vunpack.c.h.b16 %v113
    %v695 = vunpack.c.l.b16 %v114
    %v696 = vunpack.c.h.b16 %v114
    %v697 = vunpack.c.l.b16 %v115
    %v698 = vunpack.c.h.b16 %v115
    %v699 = vunpack.c.l.b16 %v116
    %v700 = vunpack.c.h.b16 %v116
    %v701 = vunpack.c.l.b16 %v117
    %v702 = vunpack.c.h.b16 %v117
    %v703 = vunpack.c.l.b16 %v118
    %v704 = vunpack.c.h.b16 %v118
    %v705 = vunpack.c.l.b16 %v119
    %v706 = vunpack.c.h.b16 %v119
    %v707 = vunpack.c.l.b16 %v120
    %v708 = vunpack.c.h.b16 %v120
    %v709 = vunpack.c.l.b16 %v121
    %v710 = vunpack.c.h.b16 %v121
    %v711 = vunpack.c.l.b16 %v122
    %v712 = vunpack.c.h.b16 %v122
    %v713 = vunpack.c.l.b16 %v123
    %v714 = vunpack.c.h.b16 %v123
    %v715 = vunpack.c.l.b16 %v124
    %v716 = vunpack.c.h.b16 %v124
    %v717 = vunpack.c.l.b16 %v125
    %v718 = vunpack.c.h.b16 %v125
    %v719 = vunpack.c.l.b16 %v126
    %v720 = vunpack.c.h.b16 %v126
    %v721 = vunpack.c.l.b16 %v127
    %v722 = vunpack.c.h.b16 %v127
    %v723 = vunpack.c.l.b16 %v128
    %v724 = vunpack.c.h.b16 %v128
    %v725 = vunpack.c.l.b16 %v129
    %v726 = vunpack.c.h.b16 %v129
    %v727 = vunpack.c.l.b16 %v130
    %v728 = vunpack.c.h.b16 %v130
    %v729 = vunpack.c.l.b16 %v131
    %v730 = vunpack.c.h.b16 %v131
    %v731 = vunpack.c.l.b16 %v132
    %v732 = vunpack.c.h.b16 %v132
    %v733 = vunpack.c.l.b16 %v133
    %v734 = vunpack.c.h.b16 %v133
    %v735 = vunpack.c.l.b16 %v134
    %v736 = vunpack.c.h.b16 %v134
    %v737 = vunpack.c.l.b16 %v135
    %v738 = vunpack.c.h.b16 %v135
    %v739 = vunpack.c.l.b16 %v136
    %v740 = vunpack.c.h.b16 %v136
    %v741 = vunpack.c.l.b16 %v137
    %v742 = vunpack.c.h.b16 %v137
    %v743 = vunpack.c.l.b16 %v138
    %v744 = vunpack.c.h.b16 %v138
    %v745 = vunpack.c.l.b16 %v139
    %v746 = vunpack.c.h.b16 %v139
    %v747 = vunpack.c.l.b16 %v140
    %v748 = vunpack.c.h.b16 %v140
    %v749 = vunpack.c.l.b16 %v141
    %v750 = vunpack.c.h.b16 %v141
    %v751 = vunpack.c.l.b16 %v142
    %v752 = vunpack.c.h.b16 %v142
    %v753 = vunpack.c.l.b16 %v143
    %v754 = vunpack.c.h.b16 %v143
    %v755 = vunpack.c.l.b16 %v144
    %v756 = vunpack.c.h.b16 %v144
    %v757 = vunpack.c.l.b16 %v145
    %v758 = vunpack.c.h.b16 %v145
    %v759 = vunpack.c.l.b16 %v146
    %v760 = vunpack.c.h.b16 %v146
    %v761 = vunpack.c.l.b16 %v147
    %v762 = vunpack.c.h.b16 %v147
    %v763 = vunpack.c.l.b16 %v148
    %v764 = vunpack.c.h.b16 %v148
    %v765 = vunpack.c.l.b16 %v149
    %v766 = vunpack.c.h.b16 %v149
    %v767 = vunpack.c.l.b16 %v150
    %v768 = vunpack.c.h.b16 %v150
    %v769 = vunpack.c.l.b16 %v151
    %v770 = vunpack.c.h.b16 %v151
    %v771 = vunpack.c.l.b16 %v152
    %v772 = vunpack.c.h.b16 %v152
    %v773 = vunpack.c.l.b16 %v153
    %v774 = vunpack.c.h.b16 %v153
    %v775 = vunpack.c.l.b16 %v154
    %v776 = vunpack.c.h.b16 %v154
    %v777 = vunpack.c.l.b16 %v155
    %v778 = vunpack.c.h.b16 %v155
    %v779 = vunpack.c.l.b16 %v156
    %v780 = vunpack.c.h.b16 %v156
    %v781 = vunpack.c.l.b16 %v157
    %v782 = vunpack.c.h.b16 %v157
    %v783 = vunpack.c.l.b16 %v158
    %v784 = vunpack.c.h.b16 %v158
    %v785 = vunpack.c.l.b16 %v159
    %v786 = vunpack.c.h.b16 %v159
    %v787 = vunpack.c.l.b16 %v160
    %v788 = vunpack.c.h.b16 %v160
    %v789 = vunpack.c.l.b16 %v161
    %v790 = vunpack.c.h.b16 %v161
    %v791 = vunpack.c.l.b16 %v162
    %v792 = vunpack.c.h.b16 %v162
    %v793 = vunpack.c.l.b16 %v163
    %v794 = vunpack.c.h.b16 %v163
    %v795 = vunpack.c.l.b16 %v164
    %v796 = vunpack.c.h.b16 %v164
    %v797 = vunpack.c.l.b16 %v165
    %v798 = vunpack.c.h.b16 %v165
    %v799 = vunpack.c.l.b16 %v166
    %v800 = vunpack.c.h.b16 %v166
    %v801 = vunpack.c.l.b16 %v167
    %v802 = vunpack.c.h.b16 %v167
    %v803 = vunpack.c.l.b16 %v168
    %v804 = vunpack.c.h.b16 %v168
    %v805 = vunpack.c.l.b16 %v169
    %v806 = vunpack.c.h.b16 %v169
    %v807 = vunpack.c.l.b16 %v170
    %v808 = vunpack.c.h.b16 %v170
    %v809 = vunpack.c.l.b16 %v171
    %v810 = vunpack.c.h.b16 %v171
    %v811 = vunpack.c.l.b16 %v172
    %v812 = vunpack.c.h.b16 %v172
    %v813 = vunpack.c.l.b16 %v173
    %v814 = vunpack.c.h.b16 %v173
    %v815 = vunpack.c.l.b16 %v174
    %v816 = vunpack.c.h.b16 %v174
    %v817 = vunpack.c.l.b16 %v175
    %v818 = vunpack.c.h.b16 %v175
    %v819 = vunpack.c.l.b16 %v176
    %v820 = vunpack.c.h.b16 %v176
    %v821 = vunpack.c.l.b16 %v177
    %v822 = vunpack.c.h.b16 %v177
    %v823 = vunpack.c.l.b16 %v178
    %v824 = vunpack.c.h.b16 %v178
    %v825 = vunpack.c.l.b16 %v179
    %v826 = vunpack.c.h.b16 %v179
    %v827 = vunpack.c.l.b16 %v180
    %v828 = vunpack.c.h.b16 %v180
    %v829 = vunpack.c.l.b16 %v181
    %v830 = vunpack.c.h.b16 %v181
    %v831 = vunpack.c.l.b16 %v182
    %v832 = vunpack.c.h.b16 %v182
    %v833 = vunpack.c.l.b16 %v183
    %v834 = vunpack.c.h.b16 %v183
    %v835 = vunpack.c.l.b16 %v184
    %v836 = vunpack.c.h.b16 %v184
    %v837 = vunpack.c.l.b16 %v185
    %v838 = vunpack.c.h.b16 %v185
    %v839 = vunpack.c.l.b16 %v186
    %v840 = vunpack.c.h.b16 %v186
    %v841 = vunpack.c.l.b16 %v187
    %v842 = vunpack.c.h.b16 %v187
    %v843 = vunpack.c.l.b16 %v188
    %v844 = vunpack.c.h.b16 %v188
    %v845 = vunpack.c.l.b16 %v189
    %v846 = vunpack.c.h.b16 %v189
    %v847 = vunpack.c.l.b16 %v190
    %v848 = vunpack.c.h.b16 %v190
    %v849 = vunpack.c.l.b16 %v191
    %v850 = vunpack.c.h.b16 %v191
    %v851 = vunpack.c.l.b16 %v192
    %v852 = vunpack.c.h.b16 %v192
    %v853 = vunpack.c.l.b16 %v193
    %v854 = vunpack.c.h.b16 %v193
    %v855 = vunpack.c.l.b16 %v194
    %v856 = vunpack.c.h.b16 %v194
    %v857 = vunpack.c.l.b16 %v195
    %v858 = vunpack.c.h.b16 %v195
    %v859 = vunpack.c.l.b16 %v196
    %v860 = vunpack.c.h.b16 %v196
    %v861 = vunpack.c.l.b16 %v197
    %v862 = vunpack.c.h.b16 %v197
    %v863 = vunpack.c.l.b16 %v198
    %v864 = vunpack.c.h.b16 %v198
    %v865 = vunpack.c.l.b16 %v199
    %v866 = vunpack.c.h.b16 %v199
    %v867 = vunpack.c.l.b16 %v200
    %v868 = vunpack.c.h.b16 %v200
    %v869 = vunpack.c.l.b16 %v201
    %v870 = vunpack.c.h.b16 %v201
    %v871 = vunpack.c.l.b16 %v202
    %v872 = vunpack.c.h.b16 %v202
    %v873 = vunpack.c.l.b16 %v203
    %v874 = vunpack.c.h.b16 %v203
    %v875 = vunpack.c.l.b16 %v204
    %v876 = vunpack.c.h.b16 %v204
    %v877 = vunpack.c.l.b16 %v205
    %v878 = vunpack.c.h.b16 %v205
    %v879 = vunpack.c.l.b16 %v206
    %v880 = vunpack.c.h.b16 %v206
    %v881 = vunpack.c.l.b16 %v207
    %v882 = vunpack.c.h.b16 %v207
    %v883 = vunpack.c.l.b16 %v208
    %v884 = vunpack.c.h.b16 %v208
    %v885 = vunpack.c.l.b16 %v209
    %v886 = vunpack.c.h.b16 %v209
    %v887 = vunpack.c.l.b16 %v210
    %v888 = vunpack.c.h.b16 %v210
    %v889 = vunpack.c.l.b16 %v211
    %v890 = vunpack.c.h.b16 %v211
    %v891 = vunpack.c.l.b16 %v212
    %v892 = vunpack.c.h.b16 %v212
    %v893 = vunpack.c.l.b16 %v213
    %v894 = vunpack.c.h.b16 %v213
    %v895 = vunpack.c.l.b16 %v214
    %v896 = vunpack.c.h.b16 %v214
    %v897 = vunpack.c.l.b16 %v215
    %v898 = vunpack.c.h.b16 %v215
    %v899 = vunpack.c.l.b16 %v216
    %v900 = vunpack.c.h.b16 %v216
    %v901 = vunpack.c.l.b16 %v217
    %v902 = vunpack.c.h.b16 %v217
    %v903 = vunpack.c.l.b16 %v218
    %v904 = vunpack.c.h.b16 %v218
    %v905 = vunpack.c.l.b16 %v219
    %v906 = vunpack.c.h.b16 %v219
    %v907 = vunpack.c.l.b16 %v220
    %v908 = vunpack.c.h.b16 %v220
    %v909 = vunpack.c.l.b16 %v221
    %v910 = vunpack.c.h.b16 %v221
    %v911 = vunpack.c.l.b16 %v222
    %v912 = vunpack.c.h.b16 %v222
    %v913 = vunpack.c.l.b16 %v223
    %v914 = vunpack.c.h.b16 %v223
    %v915 = vunpack.c.l.b16 %v224
    %v916 = vunpack.c.h.b16 %v224
    %v917 = vunpack.c.l.b16 %v225
    %v918 = vunpack.c.h.b16 %v225
    %v919 = vunpack.c.l.b16 %v226
    %v920 = vunpack.c.h.b16 %v226
    %v921 = vunpack.c.l.b16 %v227
    %v922 = vunpack.c.h.b16 %v227
    %v923 = vunpack.c.l.b16 %v228
    %v924 = vunpack.c.h.b16 %v228
    %v925 = vunpack.c.l.b16 %v229
    %v926 = vunpack.c.h.b16 %v229
    %v927 = vunpack.c.l.b16 %v230
    %v928 = vunpack.c.h.b16 %v230
    %v929 = vunpack.c.l.b16 %v231
    %v930 = vunpack.c.h.b16 %v231
    %v931 = vunpack.c.l.b16 %v232
    %v932 = vunpack.c.h.b16 %v232
    %v933 = vunpack.c.l.b16 %v233
    %v934 = vunpack.c.h.b16 %v233
    %v935 = vunpack.c.l.b16 %v234
    %v936 = vunpack.c.h.b16 %v234
    %v937 = vunpack.c.l.b16 %v235
    %v938 = vunpack.c.h.b16 %v235
    %v939 = vunpack.c.l.b16 %v236
    %v940 = vunpack.c.h.b16 %v236
    %v941 = vunpack.c.l.b16 %v237
    %v942 = vunpack.c.h.b16 %v237
    %v943 = vunpack.c.l.b16 %v238
    %v944 = vunpack.c.h.b16 %v238
    %v945 = vunpack.c.l.b16 %v239
    %v946 = vunpack.c.h.b16 %v239
    %v947 = vunpack.c.l.b16 %v240
    %v948 = vunpack.c.h.b16 %v240
    %v949 = vunpack.c.l.b16 %v241
    %v950 = vunpack.c.h.b16 %v241
    %v951 = vunpack.c.l.b16 %v242
    %v952 = vunpack.c.h.b16 %v242
    %v953 = vunpack.c.l.b16 %v243
    %v954 = vunpack.c.h.b16 %v243
    %v955 = vunpack.c.l.b16 %v244
    %v956 = vunpack.c.h.b16 %v244
    %v957 = vunpack.c.l.b16 %v245
    %v958 = vunpack.c.h.b16 %v245
    %v959 = vunpack.c.l.b16 %v246
    %v960 = vunpack.c.h.b16 %v246
    %v961 = vunpack.c.l.b16 %v247
    %v962 = vunpack.c.h.b16 %v247
    %v963 = vunpack.c.l.b16 %v248
    %v964 = vunpack.c.h.b16 %v248
    %v965 = vunpack.c.l.b16 %v249
    %v966 = vunpack.c.h.b16 %v249
    %v967 = vunpack.c.l.b16 %v250
    %v968 = vunpack.c.h.b16 %v250
    %v969 = vunpack.c.l.b16 %v251
    %v970 = vunpack.c.h.b16 %v251
    %v971 = vunpack.c.l.b16 %v252
    %v972 = vunpack.c.h.b16 %v252
    %v973 = vunpack.c.l.b16 %v253
    %v974 = vunpack.c.h.b16 %v253
    %v975 = vunpack.c.l.b16 %v254
    %v976 = vunpack.c.h.b16 %v254
    %v977 = vunpack.c.l.b16 %v255
    %v978 = vunpack.c.h.b16 %v255
    %v979 = vunpack.c.l.b16 %v256
    %v980 = vunpack.c.h.b16 %v256
    %v981 = vunpack.c.l.b16 %v257
    %v982 = vunpack.c.h.b16 %v257
    %v983 = vunpack.c.l.b16 %v258
    %v984 = vunpack.c.h.b16 %v258
    %v985 = vunpack.c.l.b16 %v259
    %v986 = vunpack.c.h.b16 %v259
    %v987 = vunpack.c.l.b16 %v260
    %v988 = vunpack.c.h.b16 %v260
    %v989 = vunpack.c.l.b16 %v261
    %v990 = vunpack.c.h.b16 %v261
    %v991 = vunpack.c.l.b16 %v262
    %v992 = vunpack.c.h.b16 %v262
    %v993 = vunpack.c.l.b16 %v263
    %v994 = vunpack.c.h.b16 %v263
    %v995 = vunpack.c.l.b16 %v264
    %v996 = vunpack.c.h.b16 %v264
    %v997 = vunpack.c.l.b16 %v265
    %v998 = vunpack.c.h.b16 %v265
    %v999 = vunpack.c.l.b16 %v266
    %v1000 = vunpack.c.h.b16 %v266
    %v1001 = vunpack.c.l.b16 %v267
    %v1002 = vunpack.c.h.b16 %v267
    %v1003 = vunpack.c.l.b16 %v268
    %v1004 = vunpack.c.h.b16 %v268
    %v1005 = vunpack.c.l.b16 %v269
    %v1006 = vunpack.c.h.b16 %v269
    %v1007 = vunpack.c.l.b16 %v270
    %v1008 = vunpack.c.h.b16 %v270
    %v1009 = vunpack.c.l.b16 %v271
    %v1010 = vunpack.c.h.b16 %v271
    %v1011 = vunpack.c.l.b16 %v272
    %v1012 = vunpack.c.h.b16 %v272
    %v1013 = vunpack.c.l.b16 %v273
    %v1014 = vunpack.c.h.b16 %v273
    %v1015 = vunpack.c.l.b16 %v274
    %v1016 = vunpack.c.h.b16 %v274
    %v1017 = vunpack.c.l.b16 %v275
    %v1018 = vunpack.c.h.b16 %v275
    %v1019 = vunpack.c.l.b16 %v276
    %v1020 = vunpack.c.h.b16 %v276
    %v1021 = vunpack.c.l.b16 %v277
    %v1022 = vunpack.c.h.b16 %v277
    %v1023 = vunpack.c.l.b16 %v278
    %v1024 = vunpack.c.h.b16 %v278
    %v1025 = vunpack.c.l.b16 %v279
    %v1026 = vunpack.c.h.b16 %v279
    %v1027 = vunpack.c.l.b16 %v280
    %v1028 = vunpack.c.h.b16 %v280
    %v1029 = vunpack.c.l.b16 %v281
    %v1030 = vunpack.c.h.b16 %v281
    %v1031 = vunpack.c.l.b16 %v282
    %v1032 = vunpack.c.h.b16 %v282
    %v1033 = vunpack.c.l.b16 %v283
    %v1034 = vunpack.c.h.b16 %v283
    %v1035 = vunpack.c.l.b16 %v284
    %v1036 = vunpack.c.h.b16 %v284
    %v1037 = vunpack.c.l.b16 %v285
    %v1038 = vunpack.c.h.b16 %v285
    %v1039 = vunpack.c.l.b16 %v286
    %v1040 = vunpack.c.h.b16 %v286
    %v1041 = vunpack.c.l.b16 %v287
    %v1042 = vunpack.c.h.b16 %v287
    %v1043 = vunpack.c.l.b16 %v288
    %v1044 = vunpack.c.h.b16 %v288
    %v1045 = vunpack.c.l.b16 %v289
    %v1046 = vunpack.c.h.b16 %v289
    %v1047 = vunpack.c.l.b16 %v290
    %v1048 = vunpack.c.h.b16 %v290
    %v1049 = vunpack.c.l.b16 %v291
    %v1050 = vunpack.c.h.b16 %v291
    %v1051 = vunpack.c.l.b16 %v292
    %v1052 = vunpack.c.h.b16 %v292
    %v1053 = vunpack.c.l.b16 %v293
    %v1054 = vunpack.c.h.b16 %v293
    %v1055 = vunpack.c.l.b16 %v294
    %v1056 = vunpack.c.h.b16 %v294
    %v1057 = vunpack.c.l.b16 %v295
    %v1058 = vunpack.c.h.b16 %v295
    %v1059 = vunpack.c.l.b16 %v296
    %v1060 = vunpack.c.h.b16 %v296
    %v1061 = vunpack.c.l.b16 %v297
    %v1062 = vunpack.c.h.b16 %v297
    %v1063 = vunpack.c.l.b16 %v298
    %v1064 = vunpack.c.h.b16 %v298
    %v1065 = vunpack.c.l.b16 %v299
    %v1066 = vunpack.c.h.b16 %v299
    %v1067 = vunpack.c.l.b16 %v300
    %v1068 = vunpack.c.h.b16 %v300
    %v1069 = vunpack.c.l.b16 %v301
    %v1070 = vunpack.c.h.b16 %v301
    %v1071 = vunpack.c.l.b16 %v302
    %v1072 = vunpack.c.h.b16 %v302
    %v1073 = vunpack.c.l.b16 %v303
    %v1074 = vunpack.c.h.b16 %v303
    %v1075 = vunpack.c.l.b16 %v304
    %v1076 = vunpack.c.h.b16 %v304
    %v1077 = vunpack.c.l.b16 %v305
    %v1078 = vunpack.c.h.b16 %v305
    %v1079 = vunpack.c.l.b16 %v306
    %v1080 = vunpack.c.h.b16 %v306
    %v1081 = vunpack.c.l.b16 %v307
    %v1082 = vunpack.c.h.b16 %v307
    %v1083 = vunpack.c.l.b16 %v308
    %v1084 = vunpack.c.h.b16 %v308
    %v1085 = vunpack.c.l.b16 %v309
    %v1086 = vunpack.c.h.b16 %v309
    %v1087 = vunpack.c.l.b16 %v310
    %v1088 = vunpack.c.h.b16 %v310
    %v1089 = vunpack.c.l.b16 %v311
    %v1090 = vunpack.c.h.b16 %v311
    %v1091 = vunpack.c.l.b16 %v312
    %v1092 = vunpack.c.h.b16 %v312
    %v1093 = vunpack.c.l.b16 %v313
    %v1094 = vunpack.c.h.b16 %v313
    %v1095 = vunpack.c.l.b16 %v314
    %v1096 = vunpack.c.h.b16 %v314
    %v1097 = vunpack.c.l.b16 %v315
    %v1098 = vunpack.c.h.b16 %v315
    %v1099 = vunpack.c.l.b16 %v316
    %v1100 = vunpack.c.h.b16 %v316
    %v1101 = vunpack.c.l.b16 %v317
    %v1102 = vunpack.c.h.b16 %v317
    %v1103 = vunpack.c.l.b16 %v318
    %v1104 = vunpack.c.h.b16 %v318
    %v1105 = vunpack.c.l.b16 %v319
    %v1106 = vunpack.c.h.b16 %v319
    %v1107 = vunpack.c.l.b16 %v320
    %v1108 = vunpack.c.h.b16 %v320
    %v1109 = vunpack.c.l.b16 %v321
    %v1110 = vunpack.c.h.b16 %v321
    %v1111 = vunpack.c.l.b16 %v322
    %v1112 = vunpack.c.h.b16 %v322
    %v1113 = vunpack.c.l.b16 %v323
    %v1114 = vunpack.c.h.b16 %v323
    %v1115 = vunpack.c.l.b16 %v324
    %v1116 = vunpack.c.h.b16 %v324
    %v1117 = vunpack.c.l.b16 %v325
    %v1118 = vunpack.c.h.b16 %v325
    %v1119 = vunpack.c.l.b16 %v326
    %v1120 = vunpack.c.h.b16 %v326
    %v1121 = vunpack.c.l.b16 %v327
    %v1122 = vunpack.c.h.b16 %v327
    %v1123 = vunpack.c.l.b16 %v328
    %v1124 = vunpack.c.h.b16 %v328
    %v1125 = vunpack.c.l.b16 %v329
    %v1126 = vunpack.c.h.b16 %v329
    %v1127 = vunpack.c.l.b16 %v330
    %v1128 = vunpack.c.h.b16 %v330
    %v1129 = vunpack.c.l.b16 %v331
    %v1130 = vunpack.c.h.b16 %v331
    %v1131 = vunpack.c.l.b16 %v332
    %v1132 = vunpack.c.h.b16 %v332
    %v1133 = vunpack.c.l.b16 %v333
    %v1134 = vunpack.c.h.b16 %v333
    %v1135 = vunpack.c.l.b16 %v334
    %v1136 = vunpack.c.h.b16 %v334
    %v1137 = vunpack.c.l.b16 %v335
    %v1138 = vunpack.c.h.b16 %v335
    %v1139 = vunpack.c.l.b16 %v336
    %v1140 = vunpack.c.h.b16 %v336
    %v1141 = vunpack.c.l.b16 %v337
    %v1142 = vunpack.c.h.b16 %v337
    %v1143 = vunpack.c.l.b16 %v338
    %v1144 = vunpack.c.h.b16 %v338
    %v1145 = vpack.c.b16 %v641, %v633
    %v1146 = vpack.c.b16 %v642, %v634
    %v1147 = vpack.c.b16 %v643, %v635
    %v1148 = vpack.c.b16 %v644, %v636
    %v1149 = vpack.c.b16 %v645, %v637
    %v1150 = vpack.c.b16 %v646, %v638
    %v1151 = vpack.c.b16 %v647, %v639
    %v1152 = vpack.c.b16 %v648, %v640
    %v1153 = vpack.c.b16 %v657, %v649
    %v1154 = vpack.c.b16 %v658, %v650
    %v1155 = vpack.c.b16 %v659, %v651
    %v1156 = vpack.c.b16 %v660, %v652
    %v1157 = vpack.c.b16 %v661, %v653
    %v1158 = vpack.c.b16 %v662, %v654
    %v1159 = vpack.c.b16 %v663, %v655
    %v1160 = vpack.c.b16 %v664, %v656
    %v1161 = vpack.c.b16 %v673, %v665
    %v1162 = vpack.c.b16 %v674, %v666
    %v1163 = vpack.c.b16 %v675, %v667
    %v1164 = vpack.c.b16 %v676, %v668
    %v1165 = vpack.c.b16 %v677, %v669
    %v1166 = vpack.c.b16 %v678, %v670
    %v1167 = vpack.c.b16 %v679, %v671
    %v1168 = vpack.c.b16 %v680, %v672
    %v1169 = vpack.c.b16 %v689, %v681
    %v1170 = vpack.c.b16 %v690, %v682
    %v1171 = vpack.c.b16 %v691, %v683
    %v1172 = vpack.c.b16 %v692, %v684
    %v1173 = vpack.c.b16 %v693, %v685
    %v1174 = vpack.c.b16 %v694, %v686
    %v1175 = vpack.c.b16 %v695, %v687
    %v1176 = vpack.c.b16 %v696, %v688
    %v1177 = vpack.c.b16 %v705, %v697
    %v1178 = vpack.c.b16 %v706, %v698
    %v1179 = vpack.c.b16 %v707, %v699
    %v1180 = vpack.c.b16 %v708, %v700
    %v1181 = vpack.c.b16 %v709, %v701
    %v1182 = vpack.c.b16 %v710, %v702
    %v1183 = vpack.c.b16 %v711, %v703
    %v1184 = vpack.c.b16 %v712, %v704
    %v1185 = vpack.c.b16 %v721, %v713
    %v1186 = vpack.c.b16 %v722, %v714
    %v1187 = vpack.c.b16 %v723, %v715
    %v1188 = vpack.c.b16 %v724, %v716
    %v1189 = vpack.c.b16 %v725, %v717
    %v1190 = vpack.c.b16 %v726, %v718
    %v1191 = vpack.c.b16 %v727, %v719
    %v1192 = vpack.c.b16 %v728, %v720
    %v1193 = vpack.c.b16 %v737, %v729
    %v1194 = vpack.c.b16 %v738, %v730
    %v1195 = vpack.c.b16 %v739, %v731
    %v1196 = vpack.c.b16 %v740, %v732
    %v1197 = vpack.c.b16 %v741, %v733
    %v1198 = vpack.c.b16 %v742, %v734
    %v1199 = vpack.c.b16 %v743, %v735
    %v1200 = vpack.c.b16 %v744, %v736
    %v1201 = vpack.c.b16 %v753, %v745
    %v1202 = vpack.c.b16 %v754, %v746
    %v1203 = vpack.c.b16 %v755, %v747
    %v1204 = vpack.c.b16 %v756, %v748
    %v1205 = vpack.c.b16 %v757, %v749
    %v1206 = vpack.c.b16 %v758, %v750
    %v1207 = vpack.c.b16 %v759, %v751
    %v1208 = vpack.c.b16 %v760, %v752
    %v1209 = vpack.c.b16 %v769, %v761
    %v1210 = vpack.c.b16 %v770, %v762
    %v1211 = vpack.c.b16 %v771, %v763
    %v1212 = vpack.c.b16 %v772, %v764
    %v1213 = vpack.c.b16 %v773, %v765
    %v1214 = vpack.c.b16 %v774, %v766
    %v1215 = vpack.c.b16 %v775, %v767
    %v1216 = vpack.c.b16 %v776, %v768
    %v1217 = vpack.c.b16 %v785, %v777
    %v1218 = vpack.c.b16 %v786, %v778
    %v1219 = vpack.c.b16 %v787, %v779
    %v1220 = vpack.c.b16 %v788, %v780
    %v1221 = vpack.c.b16 %v789, %v781
    %v1222 = vpack.c.b16 %v790, %v782
    %v1223 = vpack.c.b16 %v791, %v783
    %v1224 = vpack.c.b16 %v792, %v784
    %v1225 = vpack.c.b16 %v801, %v793
    %v1226 = vpack.c.b16 %v802, %v794
    %v1227 = vpack.c.b16 %v803, %v795
    %v1228 = vpack.c.b16 %v804, %v796
    %v1229 = vpack.c.b16 %v805, %v797
    %v1230 = vpack.c.b16 %v806, %v798
    %v1231 = vpack.c.b16 %v807, %v799
    %v1232 = vpack.c.b16 %v808, %v800
    %v1233 = vpack.c.b16 %v817, %v809
    %v1234 = vpack.c.b16 %v818, %v810
    %v1235 = vpack.c.b16 %v819, %v811
    %v1236 = vpack.c.b16 %v820, %v812
    %v1237 = vpack.c.b16 %v821, %v813
    %v1238 = vpack.c.b16 %v822, %v814
    %v1239 = vpack.c.b16 %v823, %v815
    %v1240 = vpack.c.b16 %v824, %v816
    %v1241 = vpack.c.b16 %v833, %v825
    %v1242 = vpack.c.b16 %v834, %v826
    %v1243 = vpack.c.b16 %v835, %v827
    %v1244 = vpack.c.b16 %v836, %v828
    %v1245 = vpack.c.b16 %v837, %v829
    %v1246 = vpack.c.b16 %v838, %v830
    %v1247 = vpack.c.b16 %v839, %v831
    %v1248 = vpack.c.b16 %v840, %v832
    %v1249 = vpack.c.b16 %v849, %v841
    %v1250 = vpack.c.b16 %v850, %v842
    %v1251 = vpack.c.b16 %v851, %v843
    %v1252 = vpack.c.b16 %v852, %v844
    %v1253 = vpack.c.b16 %v853, %v845
    %v1254 = vpack.c.b16 %v854, %v846
    %v1255 = vpack.c.b16 %v855, %v847
    %v1256 = vpack.c.b16 %v856, %v848
    %v1257 = vpack.c.b16 %v865, %v857
    %v1258 = vpack.c.b16 %v866, %v858
    %v1259 = vpack.c.b16 %v867, %v859
    %v1260 = vpack.c.b16 %v868, %v860
    %v1261 = vpack.c.b16 %v869, %v861
    %v1262 = vpack.c.b16 %v870, %v862
    %v1263 = vpack.c.b16 %v871, %v863
    %v1264 = vpack.c.b16 %v872, %v864
    %v1265 = vpack.c.b16 %v881, %v873
    %v1266 = vpack.c.b16 %v882, %v874
    %v1267 = vpack.c.b16 %v883, %v875
    %v1268 = vpack.c.b16 %v884, %v876
    %v1269 = vpack.c.b16 %v885, %v877
    %v1270 = vpack.c.b16 %v886, %v878
    %v1271 = vpack.c.b16 %v887, %v879
    %v1272 = vpack.c.b16 %v888, %v880
    %v1273 = vpack.c.b16 %v897, %v889
    %v1274 = vpack.c.b16 %v898, %v890
    %v1275 = vpack.c.b16 %v899, %v891
    %v1276 = vpack.c.b16 %v900, %v892
    %v1277 = vpack.c.b16 %v901, %v893
    %v1278 = vpack.c.b16 %v902, %v894
    %v1279 = vpack.c.b16 %v903, %v895
    %v1280 = vpack.c.b16 %v904, %v896
    %v1281 = vpack.c.b16 %v913, %v905
    %v1282 = vpack.c.b16 %v914, %v906
    %v1283 = vpack.c.b16 %v915, %v907
    %v1284 = vpack.c.b16 %v916, %v908
    %v1285 = vpack.c.b16 %v917, %v909
    %v1286 = vpack.c.b16 %v918, %v910
    %v1287 = vpack.c.b16 %v919, %v911
    %v1288 = vpack.c.b16 %v920, %v912
    %v1289 = vpack.c.b16 %v929, %v921
    %v1290 = vpack.c.b16 %v930, %v922
    %v1291 = vpack.c.b16 %v931, %v923
    %v1292 = vpack.c.b16 %v932, %v924
    %v1293 = vpack.c.b16 %v933, %v925
    %v1294 = vpack.c.b16 %v934, %v926
    %v1295 = vpack.c.b16 %v935, %v927
    %v1296 = vpack.c.b16 %v936, %v928
    %v1297 = vpack.c.b16 %v945, %v937
    %v1298 = vpack.c.b16 %v946, %v938
    %v1299 = vpack.c.b16 %v947, %v939
    %v1300 = vpack.c.b16 %v948, %v940
    %v1301 = vpack.c.b16 %v949, %v941
    %v1302 = vpack.c.b16 %v950, %v942
    %v1303 = vpack.c.b16 %v951, %v943
    %v1304 = vpack.c.b16 %v952, %v944
    %v1305 = vpack.c.b16 %v961, %v953
    %v1306 = vpack.c.b16 %v962, %v954
    %v1307 = vpack.c.b16 %v963, %v955
    %v1308 = vpack.c.b16 %v964, %v956
    %v1309 = vpack.c.b16 %v965, %v957
    %v1310 = vpack.c.b16 %v966, %v958
    %v1311 = vpack.c.b16 %v967, %v959
    %v1312 = vpack.c.b16 %v968, %v960
    %v1313 = vpack.c.b16 %v977, %v969
    %v1314 = vpack.c.b16 %v978, %v970
    %v1315 = vpack.c.b16 %v979, %v971
    %v1316 = vpack.c.b16 %v980, %v972
    %v1317 = vpack.c.b16 %v981, %v973
    %v1318 = vpack.c.b16 %v982, %v974
    %v1319 = vpack.c.b16 %v983, %v975
    %v1320 = vpack.c.b16 %v984, %v976
    %v1321 = vpack.c.b16 %v993, %v985
    %v1322 = vpack.c.b16 %v994, %v986
    %v1323 = vpack.c.b16 %v995, %v987
    %v1324 = vpack.c.b16 %v996, %v988
    %v1325 = vpack.c.b16 %v997, %v989
    %v1326 = vpack.c.b16 %v998, %v990
    %v1327 = vpack.c.b16 %v999, %v991
    %v1328 = vpack.c.b16 %v1000, %v992
    %v1329 = vpack.c.b16 %v1009, %v1001
    %v1330 = vpack.c.b16 %v1010, %v1002
    %v1331 = vpack.c.b16 %v1011, %v1003
    %v1332 = vpack.c.b16 %v1012, %v1004
    %v1333 = vpack.c.b16 %v1013, %v1005
    %v1334 = vpack.c.b16 %v1014, %v1006
    %v1335 = vpack.c.b16 %v1015, %v1007
    %v1336 = vpack.c.b16 %v1016, %v1008
    %v1337 = vpack.c.b16 %v1025, %v1017
    %v1338 = vpack.c.b16 %v1026, %v1018
    %v1339 = vpack.c.b16 %v1027, %v1019
    %v1340 = vpack.c.b16 %v1028, %v1020
    %v1341 = vpack.c.b16 %v1029, %v1021
    %v1342 = vpack.c.b16 %v1030, %v1022
    %v1343 = vpack.c.b16 %v1031, %v1023
    %v1344 = vpack.c.b16 %v1032, %v1024
    %v1345 = vpack.c.b16 %v1041, %v1033
    %v1346 = vpack.c.b16 %v1042, %v1034
    %v1347 = vpack.c.b16 %v1043, %v1035
    %v1348 = vpack.c.b16 %v1044, %v1036
    %v1349 = vpack.c.b16 %v1045, %v1037
    %v1350 = vpack.c.b16 %v1046, %v1038
    %v1351 = vpack.c.b16 %v1047, %v1039
    %v1352 = vpack.c.b16 %v1048, %v1040
    %v1353 = vpack.c.b16 %v1057, %v1049
    %v1354 = vpack.c.b16 %v1058, %v1050
    %v1355 = vpack.c.b16 %v1059, %v1051
    %v1356 = vpack.c.b16 %v1060, %v1052
    %v1357 = vpack.c.b16 %v1061, %v1053
    %v1358 = vpack.c.b16 %v1062, %v1054
    %v1359 = vpack.c.b16 %v1063, %v1055
    %v1360 = vpack.c.b16 %v1064, %v1056
    %v1361 = vpack.c.b16 %v1073, %v1065
    %v1362 = vpack.c.b16 %v1074, %v1066
    %v1363 = vpack.c.b16 %v1075, %v1067
    %v1364 = vpack.c.b16 %v1076, %v1068
    %v1365 = vpack.c.b16 %v1077, %v1069
    %v1366 = vpack.c.b16 %v1078, %v1070
    %v1367 = vpack.c.b16 %v1079, %v1071
    %v1368 = vpack.c.b16 %v1080, %v1072
    %v1369 = vpack.c.b16 %v1089, %v1081
    %v1370 = vpack.c.b16 %v1090, %v1082
    %v1371 = vpack.c.b16 %v1091, %v1083
    %v1372 = vpack.c.b16 %v1092, %v1084
    %v1373 = vpack.c.b16 %v1093, %v1085
    %v1374 = vpack.c.b16 %v1094, %v1086
    %v1375 = vpack.c.b16 %v1095, %v1087
    %v1376 = vpack.c.b16 %v1096, %v1088
    %v1377 = vpack.c.b16 %v1105, %v1097
    %v1378 = vpack.c.b16 %v1106, %v1098
    %v1379 = vpack.c.b16 %v1107, %v1099
    %v1380 = vpack.c.b16 %v1108, %v1100
    %v1381 = vpack.c.b16 %v1109, %v1101
    %v1382 = vpack.c.b16 %v1110, %v1102
    %v1383 = vpack.c.b16 %v1111, %v1103
    %v1384 = vpack.c.b16 %v1112, %v1104
    %v1385 = vpack.c.b16 %v1121, %v1113
    %v1386 = vpack.c.b16 %v1122, %v1114
    %v1387 = vpack.c.b16 %v1123, %v1115
    %v1388 = vpack.c.b16 %v1124, %v1116
    %v1389 = vpack.c.b16 %v1125, %v1117
    %v1390 = vpack.c.b16 %v1126, %v1118
    %v1391 = vpack.c.b16 %v1127, %v1119
    %v1392 = vpack.c.b16 %v1128, %v1120
    %v1393 = vpack.c.b16 %v1137, %v1129
    %v1394 = vpack.c.b16 %v1138, %v1130
    %v1395 = vpack.c.b16 %v1139, %v1131
    %v1396 = vpack.c.b16 %v1140, %v1132
    %v1397 = vpack.c.b16 %v1141, %v1133
    %v1398 = vpack.c.b16 %v1142, %v1134
    %v1399 = vpack.c.b16 %v1143, %v1135
    %v1400 = vpack.c.b16 %v1144, %v1136
    %1657 = vmatpush.bf16.msra.mxu0 %v1201
    %1658 = vmatpush.bf16.msra.mxu0 %v1193
    %1659 = vmatpush.bf16.msra.mxu0 %v1185
    %1660 = vmatpush.bf16.msra.mxu0 %v1177
    %1661 = vmatpush.bf16.msra.mxu0 %v1169
    %1662 = vmatpush.bf16.msra.mxu0 %v1161
    %1663 = vmatpush.bf16.msra.mxu0 %v1153
    %1664 = vmatpush.bf16.msra.mxu0 %v1145
    %1665 = vmatmul.bf16.gmra.mxu0 %v369
    %v1666 = vpop.f32.mrf.mxu0
    %v1667 = vadd.f32 %v341, %v1666
    %v1668 = vpop.f32.mrf.mxu0
    %v1669 = vadd.f32 %v341, %v1668
    %1670 = vdwg.mxu0
    %1671 = vmatpush.bf16.msra.mxu0 %v1265
    %1672 = vmatpush.bf16.msra.mxu0 %v1257
    %1673 = vmatpush.bf16.msra.mxu0 %v1249
    %1674 = vmatpush.bf16.msra.mxu0 %v1241
    %1675 = vmatpush.bf16.msra.mxu0 %v1233
    %1676 = vmatpush.bf16.msra.mxu0 %v1225
    %1677 = vmatpush.bf16.msra.mxu0 %v1217
    %1678 = vmatpush.bf16.msra.mxu0 %v1209
    %1679 = vmatmul.bf16.gmra.mxu0 %v370
    %v1680 = vpop.f32.mrf.mxu0
    %v1681 = vadd.f32 %v1667, %v1680
    %v1682 = vpop.f32.mrf.mxu0
    %v1683 = vadd.f32 %v1669, %v1682
    %1684 = vdwg.mxu0
    %1685 = vmatpush.bf16.msra.mxu0 %v1329
    %1686 = vmatpush.bf16.msra.mxu0 %v1321
    %1687 = vmatpush.bf16.msra.mxu0 %v1313
    %1688 = vmatpush.bf16.msra.mxu0 %v1305
    %1689 = vmatpush.bf16.msra.mxu0 %v1297
    %1690 = vmatpush.bf16.msra.mxu0 %v1289
    %1691 = vmatpush.bf16.msra.mxu0 %v1281
    %1692 = vmatpush.bf16.msra.mxu0 %v1273
    %1693 = vmatmul.bf16.gmra.mxu0 %v371
    %v1694 = vpop.f32.mrf.mxu0
    %v1695 = vadd.f32 %v1681, %v1694
    %v1696 = vpop.f32.mrf.mxu0
    %v1697 = vadd.f32 %v1683, %v1696
    %1698 = vdwg.mxu0
    %1699 = vmatpush.bf16.msra.mxu0 %v1393
    %1700 = vmatpush.bf16.msra.mxu0 %v1385
    %1701 = vmatpush.bf16.msra.mxu0 %v1377
    %1702 = vmatpush.bf16.msra.mxu0 %v1369
    %1703 = vmatpush.bf16.msra.mxu0 %v1361
    %1704 = vmatpush.bf16.msra.mxu0 %v1353
    %1705 = vmatpush.bf16.msra.mxu0 %v1345
    %1706 = vmatpush.bf16.msra.mxu0 %v1337
    %1707 = vmatmul.bf16.gmra.mxu0 %v372
    %v1708 = vpop.f32.mrf.mxu0
    %v1709 = vadd.f32 %v1695, %v1708
    %v1710 = vpop.f32.mrf.mxu0
    %v1711 = vadd.f32 %v1697, %v1710
    %1712 = vdwg.mxu0
    %1713 = vmatpush.bf16.msra.mxu0 %v1202
    %1714 = vmatpush.bf16.msra.mxu0 %v1194
    %1715 = vmatpush.bf16.msra.mxu0 %v1186
    %1716 = vmatpush.bf16.msra.mxu0 %v1178
    %1717 = vmatpush.bf16.msra.mxu0 %v1170
    %1718 = vmatpush.bf16.msra.mxu0 %v1162
    %1719 = vmatpush.bf16.msra.mxu0 %v1154
    %1720 = vmatpush.bf16.msra.mxu0 %v1146
    %1721 = vmatmul.bf16.gmra.mxu0 %v369
    %v1722 = vpop.f32.mrf.mxu0
    %v1723 = vadd.f32 %v342, %v1722
    %v1724 = vpop.f32.mrf.mxu0
    %v1725 = vadd.f32 %v342, %v1724
    %1726 = vdwg.mxu0
    %1727 = vmatpush.bf16.msra.mxu0 %v1266
    %1728 = vmatpush.bf16.msra.mxu0 %v1258
    %1729 = vmatpush.bf16.msra.mxu0 %v1250
    %1730 = vmatpush.bf16.msra.mxu0 %v1242
    %1731 = vmatpush.bf16.msra.mxu0 %v1234
    %1732 = vmatpush.bf16.msra.mxu0 %v1226
    %1733 = vmatpush.bf16.msra.mxu0 %v1218
    %1734 = vmatpush.bf16.msra.mxu0 %v1210
    %1735 = vmatmul.bf16.gmra.mxu0 %v370
    %v1736 = vpop.f32.mrf.mxu0
    %v1737 = vadd.f32 %v1723, %v1736
    %v1738 = vpop.f32.mrf.mxu0
    %v1739 = vadd.f32 %v1725, %v1738
    %1740 = vdwg.mxu0
    %1741 = vmatpush.bf16.msra.mxu0 %v1330
    %1742 = vmatpush.bf16.msra.mxu0 %v1322
    %1743 = vmatpush.bf16.msra.mxu0 %v1314
    %1744 = vmatpush.bf16.msra.mxu0 %v1306
    %1745 = vmatpush.bf16.msra.mxu0 %v1298
    %1746 = vmatpush.bf16.msra.mxu0 %v1290
    %1747 = vmatpush.bf16.msra.mxu0 %v1282
    %1748 = vmatpush.bf16.msra.mxu0 %v1274
    %1749 = vmatmul.bf16.gmra.mxu0 %v371
    %v1750 = vpop.f32.mrf.mxu0
    %v1751 = vadd.f32 %v1737, %v1750
    %v1752 = vpop.f32.mrf.mxu0
    %v1753 = vadd.f32 %v1739, %v1752
    %1754 = vdwg.mxu0
    %1755 = vmatpush.bf16.msra.mxu0 %v1394
    %1756 = vmatpush.bf16.msra.mxu0 %v1386
    %1757 = vmatpush.bf16.msra.mxu0 %v1378
    %1758 = vmatpush.bf16.msra.mxu0 %v1370
    %1759 = vmatpush.bf16.msra.mxu0 %v1362
    %1760 = vmatpush.bf16.msra.mxu0 %v1354
    %1761 = vmatpush.bf16.msra.mxu0 %v1346
    %1762 = vmatpush.bf16.msra.mxu0 %v1338
    %1763 = vmatmul.bf16.gmra.mxu0 %v372
    %v1764 = vpop.f32.mrf.mxu0
    %v1765 = vadd.f32 %v1751, %v1764
    %v1766 = vpop.f32.mrf.mxu0
    %v1767 = vadd.f32 %v1753, %v1766
    %1768 = vdwg.mxu0
    %1769 = vmatpush.bf16.msra.mxu0 %v1203
    %1770 = vmatpush.bf16.msra.mxu0 %v1195
    %1771 = vmatpush.bf16.msra.mxu0 %v1187
    %1772 = vmatpush.bf16.msra.mxu0 %v1179
    %1773 = vmatpush.bf16.msra.mxu0 %v1171
    %1774 = vmatpush.bf16.msra.mxu0 %v1163
    %1775 = vmatpush.bf16.msra.mxu0 %v1155
    %1776 = vmatpush.bf16.msra.mxu0 %v1147
    %1777 = vmatmul.bf16.gmra.mxu0 %v369
    %v1778 = vpop.f32.mrf.mxu0
    %v1779 = vadd.f32 %v343, %v1778
    %v1780 = vpop.f32.mrf.mxu0
    %v1781 = vadd.f32 %v343, %v1780
    %1782 = vdwg.mxu0
    %1783 = vmatpush.bf16.msra.mxu0 %v1267
    %1784 = vmatpush.bf16.msra.mxu0 %v1259
    %1785 = vmatpush.bf16.msra.mxu0 %v1251
    %1786 = vmatpush.bf16.msra.mxu0 %v1243
    %1787 = vmatpush.bf16.msra.mxu0 %v1235
    %1788 = vmatpush.bf16.msra.mxu0 %v1227
    %1789 = vmatpush.bf16.msra.mxu0 %v1219
    %1790 = vmatpush.bf16.msra.mxu0 %v1211
    %1791 = vmatmul.bf16.gmra.mxu0 %v370
    %v1792 = vpop.f32.mrf.mxu0
    %v1793 = vadd.f32 %v1779, %v1792
    %v1794 = vpop.f32.mrf.mxu0
    %v1795 = vadd.f32 %v1781, %v1794
    %1796 = vdwg.mxu0
    %1797 = vmatpush.bf16.msra.mxu0 %v1331
    %1798 = vmatpush.bf16.msra.mxu0 %v1323
    %1799 = vmatpush.bf16.msra.mxu0 %v1315
    %1800 = vmatpush.bf16.msra.mxu0 %v1307
    %1801 = vmatpush.bf16.msra.mxu0 %v1299
    %1802 = vmatpush.bf16.msra.mxu0 %v1291
    %1803 = vmatpush.bf16.msra.mxu0 %v1283
    %1804 = vmatpush.bf16.msra.mxu0 %v1275
    %1805 = vmatmul.bf16.gmra.mxu0 %v371
    %v1806 = vpop.f32.mrf.mxu0
    %v1807 = vadd.f32 %v1793, %v1806
    %v1808 = vpop.f32.mrf.mxu0
    %v1809 = vadd.f32 %v1795, %v1808
    %1810 = vdwg.mxu0
    %1811 = vmatpush.bf16.msra.mxu0 %v1395
    %1812 = vmatpush.bf16.msra.mxu0 %v1387
    %1813 = vmatpush.bf16.msra.mxu0 %v1379
    %1814 = vmatpush.bf16.msra.mxu0 %v1371
    %1815 = vmatpush.bf16.msra.mxu0 %v1363
    %1816 = vmatpush.bf16.msra.mxu0 %v1355
    %1817 = vmatpush.bf16.msra.mxu0 %v1347
    %1818 = vmatpush.bf16.msra.mxu0 %v1339
    %1819 = vmatmul.bf16.gmra.mxu0 %v372
    %v1820 = vpop.f32.mrf.mxu0
    %v1821 = vadd.f32 %v1807, %v1820
    %v1822 = vpop.f32.mrf.mxu0
    %v1823 = vadd.f32 %v1809, %v1822
    %1824 = vdwg.mxu0
    %1825 = vmatpush.bf16.msra.mxu0 %v1204
    %1826 = vmatpush.bf16.msra.mxu0 %v1196
    %1827 = vmatpush.bf16.msra.mxu0 %v1188
    %1828 = vmatpush.bf16.msra.mxu0 %v1180
    %1829 = vmatpush.bf16.msra.mxu0 %v1172
    %1830 = vmatpush.bf16.msra.mxu0 %v1164
    %1831 = vmatpush.bf16.msra.mxu0 %v1156
    %1832 = vmatpush.bf16.msra.mxu0 %v1148
    %1833 = vmatmul.bf16.gmra.mxu0 %v369
    %v1834 = vpop.f32.mrf.mxu0
    %v1835 = vadd.f32 %v344, %v1834
    %v1836 = vpop.f32.mrf.mxu0
    %v1837 = vadd.f32 %v344, %v1836
    %1838 = vdwg.mxu0
    %1839 = vmatpush.bf16.msra.mxu0 %v1268
    %1840 = vmatpush.bf16.msra.mxu0 %v1260
    %1841 = vmatpush.bf16.msra.mxu0 %v1252
    %1842 = vmatpush.bf16.msra.mxu0 %v1244
    %1843 = vmatpush.bf16.msra.mxu0 %v1236
    %1844 = vmatpush.bf16.msra.mxu0 %v1228
    %1845 = vmatpush.bf16.msra.mxu0 %v1220
    %1846 = vmatpush.bf16.msra.mxu0 %v1212
    %1847 = vmatmul.bf16.gmra.mxu0 %v370
    %v1848 = vpop.f32.mrf.mxu0
    %v1849 = vadd.f32 %v1835, %v1848
    %v1850 = vpop.f32.mrf.mxu0
    %v1851 = vadd.f32 %v1837, %v1850
    %1852 = vdwg.mxu0
    %1853 = vmatpush.bf16.msra.mxu0 %v1332
    %1854 = vmatpush.bf16.msra.mxu0 %v1324
    %1855 = vmatpush.bf16.msra.mxu0 %v1316
    %1856 = vmatpush.bf16.msra.mxu0 %v1308
    %1857 = vmatpush.bf16.msra.mxu0 %v1300
    %1858 = vmatpush.bf16.msra.mxu0 %v1292
    %1859 = vmatpush.bf16.msra.mxu0 %v1284
    %1860 = vmatpush.bf16.msra.mxu0 %v1276
    %1861 = vmatmul.bf16.gmra.mxu0 %v371
    %v1862 = vpop.f32.mrf.mxu0
    %v1863 = vadd.f32 %v1849, %v1862
    %v1864 = vpop.f32.mrf.mxu0
    %v1865 = vadd.f32 %v1851, %v1864
    %1866 = vdwg.mxu0
    %1867 = vmatpush.bf16.msra.mxu0 %v1396
    %1868 = vmatpush.bf16.msra.mxu0 %v1388
    %1869 = vmatpush.bf16.msra.mxu0 %v1380
    %1870 = vmatpush.bf16.msra.mxu0 %v1372
    %1871 = vmatpush.bf16.msra.mxu0 %v1364
    %1872 = vmatpush.bf16.msra.mxu0 %v1356
    %1873 = vmatpush.bf16.msra.mxu0 %v1348
    %1874 = vmatpush.bf16.msra.mxu0 %v1340
    %1875 = vmatmul.bf16.gmra.mxu0 %v372
    %v1876 = vpop.f32.mrf.mxu0
    %v1877 = vadd.f32 %v1863, %v1876
    %v1878 = vpop.f32.mrf.mxu0
    %v1879 = vadd.f32 %v1865, %v1878
    %1880 = vdwg.mxu0
    %1881 = vmatpush.bf16.msra.mxu0 %v1205
    %1882 = vmatpush.bf16.msra.mxu0 %v1197
    %1883 = vmatpush.bf16.msra.mxu0 %v1189
    %1884 = vmatpush.bf16.msra.mxu0 %v1181
    %1885 = vmatpush.bf16.msra.mxu0 %v1173
    %1886 = vmatpush.bf16.msra.mxu0 %v1165
    %1887 = vmatpush.bf16.msra.mxu0 %v1157
    %1888 = vmatpush.bf16.msra.mxu0 %v1149
    %1889 = vmatmul.bf16.gmra.mxu0 %v369
    %v1890 = vpop.f32.mrf.mxu0
    %v1891 = vadd.f32 %v345, %v1890
    %v1892 = vpop.f32.mrf.mxu0
    %v1893 = vadd.f32 %v345, %v1892
    %1894 = vdwg.mxu0
    %1895 = vmatpush.bf16.msra.mxu0 %v1269
    %1896 = vmatpush.bf16.msra.mxu0 %v1261
    %1897 = vmatpush.bf16.msra.mxu0 %v1253
    %1898 = vmatpush.bf16.msra.mxu0 %v1245
    %1899 = vmatpush.bf16.msra.mxu0 %v1237
    %1900 = vmatpush.bf16.msra.mxu0 %v1229
    %1901 = vmatpush.bf16.msra.mxu0 %v1221
    %1902 = vmatpush.bf16.msra.mxu0 %v1213
    %1903 = vmatmul.bf16.gmra.mxu0 %v370
    %v1904 = vpop.f32.mrf.mxu0
    %v1905 = vadd.f32 %v1891, %v1904
    %v1906 = vpop.f32.mrf.mxu0
    %v1907 = vadd.f32 %v1893, %v1906
    %1908 = vdwg.mxu0
    %1909 = vmatpush.bf16.msra.mxu0 %v1333
    %1910 = vmatpush.bf16.msra.mxu0 %v1325
    %1911 = vmatpush.bf16.msra.mxu0 %v1317
    %1912 = vmatpush.bf16.msra.mxu0 %v1309
    %1913 = vmatpush.bf16.msra.mxu0 %v1301
    %1914 = vmatpush.bf16.msra.mxu0 %v1293
    %1915 = vmatpush.bf16.msra.mxu0 %v1285
    %1916 = vmatpush.bf16.msra.mxu0 %v1277
    %1917 = vmatmul.bf16.gmra.mxu0 %v371
    %v1918 = vpop.f32.mrf.mxu0
    %v1919 = vadd.f32 %v1905, %v1918
    %v1920 = vpop.f32.mrf.mxu0
    %v1921 = vadd.f32 %v1907, %v1920
    %1922 = vdwg.mxu0
    %1923 = vmatpush.bf16.msra.mxu0 %v1397
    %1924 = vmatpush.bf16.msra.mxu0 %v1389
    %1925 = vmatpush.bf16.msra.mxu0 %v1381
    %1926 = vmatpush.bf16.msra.mxu0 %v1373
    %1927 = vmatpush.bf16.msra.mxu0 %v1365
    %1928 = vmatpush.bf16.msra.mxu0 %v1357
    %1929 = vmatpush.bf16.msra.mxu0 %v1349
    %1930 = vmatpush.bf16.msra.mxu0 %v1341
    %1931 = vmatmul.bf16.gmra.mxu0 %v372
    %v1932 = vpop.f32.mrf.mxu0
    %v1933 = vadd.f32 %v1919, %v1932
    %v1934 = vpop.f32.mrf.mxu0
    %v1935 = vadd.f32 %v1921, %v1934
    %1936 = vdwg.mxu0
    %1937 = vmatpush.bf16.msra.mxu0 %v1206
    %1938 = vmatpush.bf16.msra.mxu0 %v1198
    %1939 = vmatpush.bf16.msra.mxu0 %v1190
    %1940 = vmatpush.bf16.msra.mxu0 %v1182
    %1941 = vmatpush.bf16.msra.mxu0 %v1174
    %1942 = vmatpush.bf16.msra.mxu0 %v1166
    %1943 = vmatpush.bf16.msra.mxu0 %v1158
    %1944 = vmatpush.bf16.msra.mxu0 %v1150
    %1945 = vmatmul.bf16.gmra.mxu0 %v369
    %v1946 = vpop.f32.mrf.mxu0
    %v1947 = vadd.f32 %v346, %v1946
    %v1948 = vpop.f32.mrf.mxu0
    %v1949 = vadd.f32 %v346, %v1948
    %1950 = vdwg.mxu0
    %1951 = vmatpush.bf16.msra.mxu0 %v1270
    %1952 = vmatpush.bf16.msra.mxu0 %v1262
    %1953 = vmatpush.bf16.msra.mxu0 %v1254
    %1954 = vmatpush.bf16.msra.mxu0 %v1246
    %1955 = vmatpush.bf16.msra.mxu0 %v1238
    %1956 = vmatpush.bf16.msra.mxu0 %v1230
    %1957 = vmatpush.bf16.msra.mxu0 %v1222
    %1958 = vmatpush.bf16.msra.mxu0 %v1214
    %1959 = vmatmul.bf16.gmra.mxu0 %v370
    %v1960 = vpop.f32.mrf.mxu0
    %v1961 = vadd.f32 %v1947, %v1960
    %v1962 = vpop.f32.mrf.mxu0
    %v1963 = vadd.f32 %v1949, %v1962
    %1964 = vdwg.mxu0
    %1965 = vmatpush.bf16.msra.mxu0 %v1334
    %1966 = vmatpush.bf16.msra.mxu0 %v1326
    %1967 = vmatpush.bf16.msra.mxu0 %v1318
    %1968 = vmatpush.bf16.msra.mxu0 %v1310
    %1969 = vmatpush.bf16.msra.mxu0 %v1302
    %1970 = vmatpush.bf16.msra.mxu0 %v1294
    %1971 = vmatpush.bf16.msra.mxu0 %v1286
    %1972 = vmatpush.bf16.msra.mxu0 %v1278
    %1973 = vmatmul.bf16.gmra.mxu0 %v371
    %v1974 = vpop.f32.mrf.mxu0
    %v1975 = vadd.f32 %v1961, %v1974
    %v1976 = vpop.f32.mrf.mxu0
    %v1977 = vadd.f32 %v1963, %v1976
    %1978 = vdwg.mxu0
    %1979 = vmatpush.bf16.msra.mxu0 %v1398
    %1980 = vmatpush.bf16.msra.mxu0 %v1390
    %1981 = vmatpush.bf16.msra.mxu0 %v1382
    %1982 = vmatpush.bf16.msra.mxu0 %v1374
    %1983 = vmatpush.bf16.msra.mxu0 %v1366
    %1984 = vmatpush.bf16.msra.mxu0 %v1358
    %1985 = vmatpush.bf16.msra.mxu0 %v1350
    %1986 = vmatpush.bf16.msra.mxu0 %v1342
    %1987 = vmatmul.bf16.gmra.mxu0 %v372
    %v1988 = vpop.f32.mrf.mxu0
    %v1989 = vadd.f32 %v1975, %v1988
    %v1990 = vpop.f32.mrf.mxu0
    %v1991 = vadd.f32 %v1977, %v1990
    %1992 = vdwg.mxu0
    %1993 = vmatpush.bf16.msra.mxu0 %v1207
    %1994 = vmatpush.bf16.msra.mxu0 %v1199
    %1995 = vmatpush.bf16.msra.mxu0 %v1191
    %1996 = vmatpush.bf16.msra.mxu0 %v1183
    %1997 = vmatpush.bf16.msra.mxu0 %v1175
    %1998 = vmatpush.bf16.msra.mxu0 %v1167
    %1999 = vmatpush.bf16.msra.mxu0 %v1159
    %2000 = vmatpush.bf16.msra.mxu0 %v1151
    %2001 = vmatmul.bf16.gmra.mxu0 %v369
    %v2002 = vpop.f32.mrf.mxu0
    %v2003 = vadd.f32 %v347, %v2002
    %v2004 = vpop.f32.mrf.mxu0
    %v2005 = vadd.f32 %v347, %v2004
    %2006 = vdwg.mxu0
    %2007 = vmatpush.bf16.msra.mxu0 %v1271
    %2008 = vmatpush.bf16.msra.mxu0 %v1263
    %2009 = vmatpush.bf16.msra.mxu0 %v1255
    %2010 = vmatpush.bf16.msra.mxu0 %v1247
    %2011 = vmatpush.bf16.msra.mxu0 %v1239
    %2012 = vmatpush.bf16.msra.mxu0 %v1231
    %2013 = vmatpush.bf16.msra.mxu0 %v1223
    %2014 = vmatpush.bf16.msra.mxu0 %v1215
    %2015 = vmatmul.bf16.gmra.mxu0 %v370
    %v2016 = vpop.f32.mrf.mxu0
    %v2017 = vadd.f32 %v2003, %v2016
    %v2018 = vpop.f32.mrf.mxu0
    %v2019 = vadd.f32 %v2005, %v2018
    %2020 = vdwg.mxu0
    %2021 = vmatpush.bf16.msra.mxu0 %v1335
    %2022 = vmatpush.bf16.msra.mxu0 %v1327
    %2023 = vmatpush.bf16.msra.mxu0 %v1319
    %2024 = vmatpush.bf16.msra.mxu0 %v1311
    %2025 = vmatpush.bf16.msra.mxu0 %v1303
    %2026 = vmatpush.bf16.msra.mxu0 %v1295
    %2027 = vmatpush.bf16.msra.mxu0 %v1287
    %2028 = vmatpush.bf16.msra.mxu0 %v1279
    %2029 = vmatmul.bf16.gmra.mxu0 %v371
    %v2030 = vpop.f32.mrf.mxu0
    %v2031 = vadd.f32 %v2017, %v2030
    %v2032 = vpop.f32.mrf.mxu0
    %v2033 = vadd.f32 %v2019, %v2032
    %2034 = vdwg.mxu0
    %2035 = vmatpush.bf16.msra.mxu0 %v1399
    %2036 = vmatpush.bf16.msra.mxu0 %v1391
    %2037 = vmatpush.bf16.msra.mxu0 %v1383
    %2038 = vmatpush.bf16.msra.mxu0 %v1375
    %2039 = vmatpush.bf16.msra.mxu0 %v1367
    %2040 = vmatpush.bf16.msra.mxu0 %v1359
    %2041 = vmatpush.bf16.msra.mxu0 %v1351
    %2042 = vmatpush.bf16.msra.mxu0 %v1343
    %2043 = vmatmul.bf16.gmra.mxu0 %v372
    %v2044 = vpop.f32.mrf.mxu0
    %v2045 = vadd.f32 %v2031, %v2044
    %v2046 = vpop.f32.mrf.mxu0
    %v2047 = vadd.f32 %v2033, %v2046
    %2048 = vdwg.mxu0
    %2049 = vmatpush.bf16.msra.mxu0 %v1208
    %2050 = vmatpush.bf16.msra.mxu0 %v1200
    %2051 = vmatpush.bf16.msra.mxu0 %v1192
    %2052 = vmatpush.bf16.msra.mxu0 %v1184
    %2053 = vmatpush.bf16.msra.mxu0 %v1176
    %2054 = vmatpush.bf16.msra.mxu0 %v1168
    %2055 = vmatpush.bf16.msra.mxu0 %v1160
    %2056 = vmatpush.bf16.msra.mxu0 %v1152
    %2057 = vmatmul.bf16.gmra.mxu0 %v369
    %v2058 = vpop.f32.mrf.mxu0
    %v2059 = vadd.f32 %v348, %v2058
    %v2060 = vpop.f32.mrf.mxu0
    %v2061 = vadd.f32 %v348, %v2060
    %2062 = vdwg.mxu0
    %2063 = vmatpush.bf16.msra.mxu0 %v1272
    %2064 = vmatpush.bf16.msra.mxu0 %v1264
    %2065 = vmatpush.bf16.msra.mxu0 %v1256
    %2066 = vmatpush.bf16.msra.mxu0 %v1248
    %2067 = vmatpush.bf16.msra.mxu0 %v1240
    %2068 = vmatpush.bf16.msra.mxu0 %v1232
    %2069 = vmatpush.bf16.msra.mxu0 %v1224
    %2070 = vmatpush.bf16.msra.mxu0 %v1216
    %2071 = vmatmul.bf16.gmra.mxu0 %v370
    %v2072 = vpop.f32.mrf.mxu0
    %v2073 = vadd.f32 %v2059, %v2072
    %v2074 = vpop.f32.mrf.mxu0
    %v2075 = vadd.f32 %v2061, %v2074
    %2076 = vdwg.mxu0
    %2077 = vmatpush.bf16.msra.mxu0 %v1336
    %2078 = vmatpush.bf16.msra.mxu0 %v1328
    %2079 = vmatpush.bf16.msra.mxu0 %v1320
    %2080 = vmatpush.bf16.msra.mxu0 %v1312
    %2081 = vmatpush.bf16.msra.mxu0 %v1304
    %2082 = vmatpush.bf16.msra.mxu0 %v1296
    %2083 = vmatpush.bf16.msra.mxu0 %v1288
    %2084 = vmatpush.bf16.msra.mxu0 %v1280
    %2085 = vmatmul.bf16.gmra.mxu0 %v371
    %v2086 = vpop.f32.mrf.mxu0
    %v2087 = vadd.f32 %v2073, %v2086
    %v2088 = vpop.f32.mrf.mxu0
    %v2089 = vadd.f32 %v2075, %v2088
    %2090 = vdwg.mxu0
    %2091 = vmatpush.bf16.msra.mxu0 %v1400
    %2092 = vmatpush.bf16.msra.mxu0 %v1392
    %2093 = vmatpush.bf16.msra.mxu0 %v1384
    %2094 = vmatpush.bf16.msra.mxu0 %v1376
    %2095 = vmatpush.bf16.msra.mxu0 %v1368
    %2096 = vmatpush.bf16.msra.mxu0 %v1360
    %2097 = vmatpush.bf16.msra.mxu0 %v1352
    %2098 = vmatpush.bf16.msra.mxu0 %v1344
    %2099 = vmatmul.bf16.gmra.mxu0 %v372
    %v2100 = vpop.f32.mrf.mxu0
    %v2101 = vadd.f32 %v2087, %v2100
    %v2102 = vpop.f32.mrf.mxu0
    %v2103 = vadd.f32 %v2089, %v2102
    %2104 = vdwg.mxu0
    %vm2105 = vcmp.gt.f32.partialorder %v1709, 0.0
    %vm2106 = vcmp.gt.f32.partialorder %v1765, 0.0
    %vm2107 = vcmp.gt.f32.partialorder %v1821, 0.0
    %vm2108 = vcmp.gt.f32.partialorder %v1877, 0.0
    %vm2109 = vcmp.gt.f32.partialorder %v1933, 0.0
    %vm2110 = vcmp.gt.f32.partialorder %v1989, 0.0
    %vm2111 = vcmp.gt.f32.partialorder %v2045, 0.0
    %vm2112 = vcmp.gt.f32.partialorder %v2101, 0.0
    %vm2113 = vcmp.gt.f32.partialorder %v1711, 0.0
    %vm2114 = vcmp.gt.f32.partialorder %v1767, 0.0
    %vm2115 = vcmp.gt.f32.partialorder %v1823, 0.0
    %vm2116 = vcmp.gt.f32.partialorder %v1879, 0.0
    %vm2117 = vcmp.gt.f32.partialorder %v1935, 0.0
    %vm2118 = vcmp.gt.f32.partialorder %v1991, 0.0
    %vm2119 = vcmp.gt.f32.partialorder %v2047, 0.0
    %vm2120 = vcmp.gt.f32.partialorder %v2103, 0.0
    %v2121 = vmul.f32 %v1709, 1.442695
    %v2122 = vpow.pop %v2121
    %v2123 = vmul.f32 %v1765, 1.442695
    %v2124 = vpow.pop %v2123
    %v2125 = vmul.f32 %v1821, 1.442695
    %v2126 = vpow.pop %v2125
    %v2127 = vmul.f32 %v1877, 1.442695
    %v2128 = vpow.pop %v2127
    %v2129 = vmul.f32 %v1933, 1.442695
    %v2130 = vpow.pop %v2129
    %v2131 = vmul.f32 %v1989, 1.442695
    %v2132 = vpow.pop %v2131
    %v2133 = vmul.f32 %v2045, 1.442695
    %v2134 = vpow.pop %v2133
    %v2135 = vmul.f32 %v2101, 1.442695
    %v2136 = vpow.pop %v2135
    %v2137 = vmul.f32 %v1711, 1.442695
    %v2138 = vpow.pop %v2137
    %v2139 = vmul.f32 %v1767, 1.442695
    %v2140 = vpow.pop %v2139
    %v2141 = vmul.f32 %v1823, 1.442695
    %v2142 = vpow.pop %v2141
    %v2143 = vmul.f32 %v1879, 1.442695
    %v2144 = vpow.pop %v2143
    %v2145 = vmul.f32 %v1935, 1.442695
    %v2146 = vpow.pop %v2145
    %v2147 = vmul.f32 %v1991, 1.442695
    %v2148 = vpow.pop %v2147
    %v2149 = vmul.f32 %v2047, 1.442695
    %v2150 = vpow.pop %v2149
    %v2151 = vmul.f32 %v2103, 1.442695
    %v2152 = vpow.pop %v2151
    %v2153 = vsub.f32 %v2122, 1.0
    %v2154 = vsub.f32 %v2124, 1.0
    %v2155 = vsub.f32 %v2126, 1.0
    %v2156 = vsub.f32 %v2128, 1.0
    %v2157 = vsub.f32 %v2130, 1.0
    %v2158 = vsub.f32 %v2132, 1.0
    %v2159 = vsub.f32 %v2134, 1.0
    %v2160 = vsub.f32 %v2136, 1.0
    %v2161 = vsub.f32 %v2138, 1.0
    %v2162 = vsub.f32 %v2140, 1.0
    %v2163 = vsub.f32 %v2142, 1.0
    %v2164 = vsub.f32 %v2144, 1.0
    %v2165 = vsub.f32 %v2146, 1.0
    %v2166 = vsub.f32 %v2148, 1.0
    %v2167 = vsub.f32 %v2150, 1.0
    %v2168 = vsub.f32 %v2152, 1.0
    %v2169 = vmul.f32 %v2153, 1.6732632
    %v2170 = vmul.f32 %v2154, 1.6732632
    %v2171 = vmul.f32 %v2155, 1.6732632
    %v2172 = vmul.f32 %v2156, 1.6732632
    %v2173 = vmul.f32 %v2157, 1.6732632
    %v2174 = vmul.f32 %v2158, 1.6732632
    %v2175 = vmul.f32 %v2159, 1.6732632
    %v2176 = vmul.f32 %v2160, 1.6732632
    %v2177 = vmul.f32 %v2161, 1.6732632
    %v2178 = vmul.f32 %v2162, 1.6732632
    %v2179 = vmul.f32 %v2163, 1.6732632
    %v2180 = vmul.f32 %v2164, 1.6732632
    %v2181 = vmul.f32 %v2165, 1.6732632
    %v2182 = vmul.f32 %v2166, 1.6732632
    %v2183 = vmul.f32 %v2167, 1.6732632
    %v2184 = vmul.f32 %v2168, 1.6732632
    %v2185 = vsel %vm2105, %v1709, %v2169
    %v2186 = vsel %vm2106, %v1765, %v2170
    %v2187 = vsel %vm2107, %v1821, %v2171
    %v2188 = vsel %vm2108, %v1877, %v2172
    %v2189 = vsel %vm2109, %v1933, %v2173
    %v2190 = vsel %vm2110, %v1989, %v2174
    %v2191 = vsel %vm2111, %v2045, %v2175
    %v2192 = vsel %vm2112, %v2101, %v2176
    %v2193 = vsel %vm2113, %v1711, %v2177
    %v2194 = vsel %vm2114, %v1767, %v2178
    %v2195 = vsel %vm2115, %v1823, %v2179
    %v2196 = vsel %vm2116, %v1879, %v2180
    %v2197 = vsel %vm2117, %v1935, %v2181
    %v2198 = vsel %vm2118, %v1991, %v2182
    %v2199 = vsel %vm2119, %v2047, %v2183
    %v2200 = vsel %vm2120, %v2103, %v2184
    %v2201 = vpack.c.bf16 %v2193, %v2185
    %v2202 = vpack.c.bf16 %v2194, %v2186
    %v2203 = vpack.c.bf16 %v2195, %v2187
    %v2204 = vpack.c.bf16 %v2196, %v2188
    %v2205 = vpack.c.bf16 %v2197, %v2189
    %v2206 = vpack.c.bf16 %v2198, %v2190
    %v2207 = vpack.c.bf16 %v2199, %v2191
    %v2208 = vpack.c.bf16 %v2200, %v2192
    %v2209 = vld [vmem:[#allocation4] sm:$0xff]
    %v2210 = vld [vmem:[#allocation4 + $0x8] sm:$0xff]
    %v2211 = vld [vmem:[#allocation4 + $0x10] sm:$0xff]
    %v2212 = vld [vmem:[#allocation4 + $0x18] sm:$0xff]
    %v2213 = vld [vmem:[#allocation4 + $0x20] sm:$0xff]
    %v2214 = vld [vmem:[#allocation4 + $0x28] sm:$0xff]
    %v2215 = vld [vmem:[#allocation4 + $0x30] sm:$0xff]
    %v2216 = vld [vmem:[#allocation4 + $0x38] sm:$0xff]
    %v2217 = vld [vmem:[#allocation4 + $0x40] sm:$0xff]
    %v2218 = vld [vmem:[#allocation4 + $0x48] sm:$0xff]
    %v2219 = vld [vmem:[#allocation4 + $0x50] sm:$0xff]
    %v2220 = vld [vmem:[#allocation4 + $0x58] sm:$0xff]
    %v2221 = vld [vmem:[#allocation4 + $0x60] sm:$0xff]
    %v2222 = vld [vmem:[#allocation4 + $0x68] sm:$0xff]
    %v2223 = vld [vmem:[#allocation4 + $0x70] sm:$0xff]
    %v2224 = vld [vmem:[#allocation4 + $0x78] sm:$0xff]
    %v2225 = vld [vmem:[#allocation4 + $0x80] sm:$0xff]
    %v2226 = vld [vmem:[#allocation4 + $0x88] sm:$0xff]
    %v2227 = vld [vmem:[#allocation4 + $0x90] sm:$0xff]
    %v2228 = vld [vmem:[#allocation4 + $0x98] sm:$0xff]
    %v2229 = vld [vmem:[#allocation4 + $0xa0] sm:$0xff]
    %v2230 = vld [vmem:[#allocation4 + $0xa8] sm:$0xff]
    %v2231 = vld [vmem:[#allocation4 + $0xb0] sm:$0xff]
    %v2232 = vld [vmem:[#allocation4 + $0xb8] sm:$0xff]
    %v2233 = vld [vmem:[#allocation4 + $0xc0] sm:$0xff]
    %v2234 = vld [vmem:[#allocation4 + $0xc8] sm:$0xff]
    %v2235 = vld [vmem:[#allocation4 + $0xd0] sm:$0xff]
    %v2236 = vld [vmem:[#allocation4 + $0xd8] sm:$0xff]
    %v2237 = vld [vmem:[#allocation4 + $0xe0] sm:$0xff]
    %v2238 = vld [vmem:[#allocation4 + $0xe8] sm:$0xff]
    %v2239 = vld [vmem:[#allocation4 + $0xf0] sm:$0xff]
    %v2240 = vld [vmem:[#allocation4 + $0xf8] sm:$0xff]
    %v2241 = vld [vmem:[#allocation4 + $0x100] sm:$0xff]
    %v2242 = vld [vmem:[#allocation4 + $0x108] sm:$0xff]
    %v2243 = vld [vmem:[#allocation4 + $0x110] sm:$0xff]
    %v2244 = vld [vmem:[#allocation4 + $0x118] sm:$0xff]
    %v2245 = vld [vmem:[#allocation4 + $0x120] sm:$0xff]
    %v2246 = vld [vmem:[#allocation4 + $0x128] sm:$0xff]
    %v2247 = vld [vmem:[#allocation4 + $0x130] sm:$0xff]
    %v2248 = vld [vmem:[#allocation4 + $0x138] sm:$0xff]
    %v2249 = vld [vmem:[#allocation4 + $0x140] sm:$0xff]
    %v2250 = vld [vmem:[#allocation4 + $0x148] sm:$0xff]
    %v2251 = vld [vmem:[#allocation4 + $0x150] sm:$0xff]
    %v2252 = vld [vmem:[#allocation4 + $0x158] sm:$0xff]
    %v2253 = vld [vmem:[#allocation4 + $0x160] sm:$0xff]
    %v2254 = vld [vmem:[#allocation4 + $0x168] sm:$0xff]
    %v2255 = vld [vmem:[#allocation4 + $0x170] sm:$0xff]
    %v2256 = vld [vmem:[#allocation4 + $0x178] sm:$0xff]
    %v2257 = vld [vmem:[#allocation4 + $0x180] sm:$0xff]
    %v2258 = vld [vmem:[#allocation4 + $0x188] sm:$0xff]
    %v2259 = vld [vmem:[#allocation4 + $0x190] sm:$0xff]
    %v2260 = vld [vmem:[#allocation4 + $0x198] sm:$0xff]
    %v2261 = vld [vmem:[#allocation4 + $0x1a0] sm:$0xff]
    %v2262 = vld [vmem:[#allocation4 + $0x1a8] sm:$0xff]
    %v2263 = vld [vmem:[#allocation4 + $0x1b0] sm:$0xff]
    %v2264 = vld [vmem:[#allocation4 + $0x1b8] sm:$0xff]
    %v2265 = vld [vmem:[#allocation4 + $0x1c0] sm:$0xff]
    %v2266 = vld [vmem:[#allocation4 + $0x1c8] sm:$0xff]
    %v2267 = vld [vmem:[#allocation4 + $0x1d0] sm:$0xff]
    %v2268 = vld [vmem:[#allocation4 + $0x1d8] sm:$0xff]
    %v2269 = vld [vmem:[#allocation4 + $0x1e0] sm:$0xff]
    %v2270 = vld [vmem:[#allocation4 + $0x1e8] sm:$0xff]
    %v2271 = vld [vmem:[#allocation4 + $0x1f0] sm:$0xff]
    %v2272 = vld [vmem:[#allocation4 + $0x1f8] sm:$0xff]
    %v2273 = vld [vmem:[#allocation4 + $0x200] sm:$0xff]
    %v2274 = vld [vmem:[#allocation4 + $0x208] sm:$0xff]
    %v2275 = vld [vmem:[#allocation4 + $0x210] sm:$0xff]
    %v2276 = vld [vmem:[#allocation4 + $0x218] sm:$0xff]
    %v2277 = vld [vmem:[#allocation4 + $0x220] sm:$0xff]
    %v2278 = vld [vmem:[#allocation4 + $0x228] sm:$0xff]
    %v2279 = vld [vmem:[#allocation4 + $0x230] sm:$0xff]
    %v2280 = vld [vmem:[#allocation4 + $0x238] sm:$0xff]
    %v2281 = vld [vmem:[#allocation4 + $0x240] sm:$0xff]
    %v2282 = vld [vmem:[#allocation4 + $0x248] sm:$0xff]
    %v2283 = vld [vmem:[#allocation4 + $0x250] sm:$0xff]
    %v2284 = vld [vmem:[#allocation4 + $0x258] sm:$0xff]
    %v2285 = vld [vmem:[#allocation4 + $0x260] sm:$0xff]
    %v2286 = vld [vmem:[#allocation4 + $0x268] sm:$0xff]
    %v2287 = vld [vmem:[#allocation4 + $0x270] sm:$0xff]
    %v2288 = vld [vmem:[#allocation4 + $0x278] sm:$0xff]
    %v2289 = vld [vmem:[#allocation4 + $0x280] sm:$0xff]
    %v2290 = vld [vmem:[#allocation4 + $0x288] sm:$0xff]
    %v2291 = vld [vmem:[#allocation4 + $0x290] sm:$0xff]
    %v2292 = vld [vmem:[#allocation4 + $0x298] sm:$0xff]
    %v2293 = vld [vmem:[#allocation4 + $0x2a0] sm:$0xff]
    %v2294 = vld [vmem:[#allocation4 + $0x2a8] sm:$0xff]
    %v2295 = vld [vmem:[#allocation4 + $0x2b0] sm:$0xff]
    %v2296 = vld [vmem:[#allocation4 + $0x2b8] sm:$0xff]
    %v2297 = vld [vmem:[#allocation4 + $0x2c0] sm:$0xff]
    %v2298 = vld [vmem:[#allocation4 + $0x2c8] sm:$0xff]
    %v2299 = vld [vmem:[#allocation4 + $0x2d0] sm:$0xff]
    %v2300 = vld [vmem:[#allocation4 + $0x2d8] sm:$0xff]
    %v2301 = vld [vmem:[#allocation4 + $0x2e0] sm:$0xff]
    %v2302 = vld [vmem:[#allocation4 + $0x2e8] sm:$0xff]
    %v2303 = vld [vmem:[#allocation4 + $0x2f0] sm:$0xff]
    %v2304 = vld [vmem:[#allocation4 + $0x2f8] sm:$0xff]
    %v2305 = vld [vmem:[#allocation4 + $0x300] sm:$0xff]
    %v2306 = vld [vmem:[#allocation4 + $0x308] sm:$0xff]
    %v2307 = vld [vmem:[#allocation4 + $0x310] sm:$0xff]
    %v2308 = vld [vmem:[#allocation4 + $0x318] sm:$0xff]
    %v2309 = vld [vmem:[#allocation4 + $0x320] sm:$0xff]
    %v2310 = vld [vmem:[#allocation4 + $0x328] sm:$0xff]
    %v2311 = vld [vmem:[#allocation4 + $0x330] sm:$0xff]
    %v2312 = vld [vmem:[#allocation4 + $0x338] sm:$0xff]
    %v2313 = vld [vmem:[#allocation4 + $0x340] sm:$0xff]
    %v2314 = vld [vmem:[#allocation4 + $0x348] sm:$0xff]
    %v2315 = vld [vmem:[#allocation4 + $0x350] sm:$0xff]
    %v2316 = vld [vmem:[#allocation4 + $0x358] sm:$0xff]
    %v2317 = vld [vmem:[#allocation4 + $0x360] sm:$0xff]
    %v2318 = vld [vmem:[#allocation4 + $0x368] sm:$0xff]
    %v2319 = vld [vmem:[#allocation4 + $0x370] sm:$0xff]
    %v2320 = vld [vmem:[#allocation4 + $0x378] sm:$0xff]
    %v2321 = vld [vmem:[#allocation4 + $0x380] sm:$0xff]
    %v2322 = vld [vmem:[#allocation4 + $0x388] sm:$0xff]
    %v2323 = vld [vmem:[#allocation4 + $0x390] sm:$0xff]
    %v2324 = vld [vmem:[#allocation4 + $0x398] sm:$0xff]
    %v2325 = vld [vmem:[#allocation4 + $0x3a0] sm:$0xff]
    %v2326 = vld [vmem:[#allocation4 + $0x3a8] sm:$0xff]
    %v2327 = vld [vmem:[#allocation4 + $0x3b0] sm:$0xff]
    %v2328 = vld [vmem:[#allocation4 + $0x3b8] sm:$0xff]
    %v2329 = vld [vmem:[#allocation4 + $0x3c0] sm:$0xff]
    %v2330 = vld [vmem:[#allocation4 + $0x3c8] sm:$0xff]
    %v2331 = vld [vmem:[#allocation4 + $0x3d0] sm:$0xff]
    %v2332 = vld [vmem:[#allocation4 + $0x3d8] sm:$0xff]
    %v2333 = vld [vmem:[#allocation4 + $0x3e0] sm:$0xff]
    %v2334 = vld [vmem:[#allocation4 + $0x3e8] sm:$0xff]
    %v2335 = vld [vmem:[#allocation4 + $0x3f0] sm:$0xff]
    %v2336 = vld [vmem:[#allocation4 + $0x3f8] sm:$0xff]
    %v2337 = vld [vmem:[#allocation4 + $0x400] sm:$0xff]
    %v2338 = vld [vmem:[#allocation4 + $0x408] sm:$0xff]
    %v2339 = vld [vmem:[#allocation4 + $0x410] sm:$0xff]
    %v2340 = vld [vmem:[#allocation4 + $0x418] sm:$0xff]
    %v2341 = vld [vmem:[#allocation4 + $0x420] sm:$0xff]
    %v2342 = vld [vmem:[#allocation4 + $0x428] sm:$0xff]
    %v2343 = vld [vmem:[#allocation4 + $0x430] sm:$0xff]
    %v2344 = vld [vmem:[#allocation4 + $0x438] sm:$0xff]
    %v2345 = vld [vmem:[#allocation4 + $0x440] sm:$0xff]
    %v2346 = vld [vmem:[#allocation4 + $0x448] sm:$0xff]
    %v2347 = vld [vmem:[#allocation4 + $0x450] sm:$0xff]
    %v2348 = vld [vmem:[#allocation4 + $0x458] sm:$0xff]
    %v2349 = vld [vmem:[#allocation4 + $0x460] sm:$0xff]
    %v2350 = vld [vmem:[#allocation4 + $0x468] sm:$0xff]
    %v2351 = vld [vmem:[#allocation4 + $0x470] sm:$0xff]
    %v2352 = vld [vmem:[#allocation4 + $0x478] sm:$0xff]
    %v2353 = vld [vmem:[#allocation4 + $0x480] sm:$0xff]
    %v2354 = vld [vmem:[#allocation4 + $0x488] sm:$0xff]
    %v2355 = vld [vmem:[#allocation4 + $0x490] sm:$0xff]
    %v2356 = vld [vmem:[#allocation4 + $0x498] sm:$0xff]
    %v2357 = vld [vmem:[#allocation4 + $0x4a0] sm:$0xff]
    %v2358 = vld [vmem:[#allocation4 + $0x4a8] sm:$0xff]
    %v2359 = vld [vmem:[#allocation4 + $0x4b0] sm:$0xff]
    %v2360 = vld [vmem:[#allocation4 + $0x4b8] sm:$0xff]
    %v2361 = vld [vmem:[#allocation4 + $0x4c0] sm:$0xff]
    %v2362 = vld [vmem:[#allocation4 + $0x4c8] sm:$0xff]
    %v2363 = vld [vmem:[#allocation4 + $0x4d0] sm:$0xff]
    %v2364 = vld [vmem:[#allocation4 + $0x4d8] sm:$0xff]
    %v2365 = vld [vmem:[#allocation4 + $0x4e0] sm:$0xff]
    %v2366 = vld [vmem:[#allocation4 + $0x4e8] sm:$0xff]
    %v2367 = vld [vmem:[#allocation4 + $0x4f0] sm:$0xff]
    %v2368 = vld [vmem:[#allocation4 + $0x4f8] sm:$0xff]
    %v2369 = vld [vmem:[#allocation4 + $0x500] sm:$0xff]
    %v2370 = vld [vmem:[#allocation4 + $0x508] sm:$0xff]
    %v2371 = vld [vmem:[#allocation4 + $0x510] sm:$0xff]
    %v2372 = vld [vmem:[#allocation4 + $0x518] sm:$0xff]
    %v2373 = vld [vmem:[#allocation4 + $0x520] sm:$0xff]
    %v2374 = vld [vmem:[#allocation4 + $0x528] sm:$0xff]
    %v2375 = vld [vmem:[#allocation4 + $0x530] sm:$0xff]
    %v2376 = vld [vmem:[#allocation4 + $0x538] sm:$0xff]
    %v2377 = vld [vmem:[#allocation4 + $0x540] sm:$0xff]
    %v2378 = vld [vmem:[#allocation4 + $0x548] sm:$0xff]
    %v2379 = vld [vmem:[#allocation4 + $0x550] sm:$0xff]
    %v2380 = vld [vmem:[#allocation4 + $0x558] sm:$0xff]
    %v2381 = vld [vmem:[#allocation4 + $0x560] sm:$0xff]
    %v2382 = vld [vmem:[#allocation4 + $0x568] sm:$0xff]
    %v2383 = vld [vmem:[#allocation4 + $0x570] sm:$0xff]
    %v2384 = vld [vmem:[#allocation4 + $0x578] sm:$0xff]
    %v2385 = vld [vmem:[#allocation4 + $0x580] sm:$0xff]
    %v2386 = vld [vmem:[#allocation4 + $0x588] sm:$0xff]
    %v2387 = vld [vmem:[#allocation4 + $0x590] sm:$0xff]
    %v2388 = vld [vmem:[#allocation4 + $0x598] sm:$0xff]
    %v2389 = vld [vmem:[#allocation4 + $0x5a0] sm:$0xff]
    %v2390 = vld [vmem:[#allocation4 + $0x5a8] sm:$0xff]
    %v2391 = vld [vmem:[#allocation4 + $0x5b0] sm:$0xff]
    %v2392 = vld [vmem:[#allocation4 + $0x5b8] sm:$0xff]
    %v2393 = vld [vmem:[#allocation4 + $0x5c0] sm:$0xff]
    %v2394 = vld [vmem:[#allocation4 + $0x5c8] sm:$0xff]
    %v2395 = vld [vmem:[#allocation4 + $0x5d0] sm:$0xff]
    %v2396 = vld [vmem:[#allocation4 + $0x5d8] sm:$0xff]
    %v2397 = vld [vmem:[#allocation4 + $0x5e0] sm:$0xff]
    %v2398 = vld [vmem:[#allocation4 + $0x5e8] sm:$0xff]
    %v2399 = vld [vmem:[#allocation4 + $0x5f0] sm:$0xff]
    %v2400 = vld [vmem:[#allocation4 + $0x5f8] sm:$0xff]
    %v2401 = vld [vmem:[#allocation4 + $0x600] sm:$0xff]
    %v2402 = vld [vmem:[#allocation4 + $0x608] sm:$0xff]
    %v2403 = vld [vmem:[#allocation4 + $0x610] sm:$0xff]
    %v2404 = vld [vmem:[#allocation4 + $0x618] sm:$0xff]
    %v2405 = vld [vmem:[#allocation4 + $0x620] sm:$0xff]
    %v2406 = vld [vmem:[#allocation4 + $0x628] sm:$0xff]
    %v2407 = vld [vmem:[#allocation4 + $0x630] sm:$0xff]
    %v2408 = vld [vmem:[#allocation4 + $0x638] sm:$0xff]
    %v2409 = vld [vmem:[#allocation4 + $0x640] sm:$0xff]
    %v2410 = vld [vmem:[#allocation4 + $0x648] sm:$0xff]
    %v2411 = vld [vmem:[#allocation4 + $0x650] sm:$0xff]
    %v2412 = vld [vmem:[#allocation4 + $0x658] sm:$0xff]
    %v2413 = vld [vmem:[#allocation4 + $0x660] sm:$0xff]
    %v2414 = vld [vmem:[#allocation4 + $0x668] sm:$0xff]
    %v2415 = vld [vmem:[#allocation4 + $0x670] sm:$0xff]
    %v2416 = vld [vmem:[#allocation4 + $0x678] sm:$0xff]
    %v2417 = vld [vmem:[#allocation4 + $0x680] sm:$0xff]
    %v2418 = vld [vmem:[#allocation4 + $0x688] sm:$0xff]
    %v2419 = vld [vmem:[#allocation4 + $0x690] sm:$0xff]
    %v2420 = vld [vmem:[#allocation4 + $0x698] sm:$0xff]
    %v2421 = vld [vmem:[#allocation4 + $0x6a0] sm:$0xff]
    %v2422 = vld [vmem:[#allocation4 + $0x6a8] sm:$0xff]
    %v2423 = vld [vmem:[#allocation4 + $0x6b0] sm:$0xff]
    %v2424 = vld [vmem:[#allocation4 + $0x6b8] sm:$0xff]
    %v2425 = vld [vmem:[#allocation4 + $0x6c0] sm:$0xff]
    %v2426 = vld [vmem:[#allocation4 + $0x6c8] sm:$0xff]
    %v2427 = vld [vmem:[#allocation4 + $0x6d0] sm:$0xff]
    %v2428 = vld [vmem:[#allocation4 + $0x6d8] sm:$0xff]
    %v2429 = vld [vmem:[#allocation4 + $0x6e0] sm:$0xff]
    %v2430 = vld [vmem:[#allocation4 + $0x6e8] sm:$0xff]
    %v2431 = vld [vmem:[#allocation4 + $0x6f0] sm:$0xff]
    %v2432 = vld [vmem:[#allocation4 + $0x6f8] sm:$0xff]
    %v2433 = vld [vmem:[#allocation4 + $0x700] sm:$0xff]
    %v2434 = vld [vmem:[#allocation4 + $0x708] sm:$0xff]
    %v2435 = vld [vmem:[#allocation4 + $0x710] sm:$0xff]
    %v2436 = vld [vmem:[#allocation4 + $0x718] sm:$0xff]
    %v2437 = vld [vmem:[#allocation4 + $0x720] sm:$0xff]
    %v2438 = vld [vmem:[#allocation4 + $0x728] sm:$0xff]
    %v2439 = vld [vmem:[#allocation4 + $0x730] sm:$0xff]
    %v2440 = vld [vmem:[#allocation4 + $0x738] sm:$0xff]
    %v2441 = vld [vmem:[#allocation4 + $0x740] sm:$0xff]
    %v2442 = vld [vmem:[#allocation4 + $0x748] sm:$0xff]
    %v2443 = vld [vmem:[#allocation4 + $0x750] sm:$0xff]
    %v2444 = vld [vmem:[#allocation4 + $0x758] sm:$0xff]
    %v2445 = vld [vmem:[#allocation4 + $0x760] sm:$0xff]
    %v2446 = vld [vmem:[#allocation4 + $0x768] sm:$0xff]
    %v2447 = vld [vmem:[#allocation4 + $0x770] sm:$0xff]
    %v2448 = vld [vmem:[#allocation4 + $0x778] sm:$0xff]
    %v2449 = vld [vmem:[#allocation4 + $0x780] sm:$0xff]
    %v2450 = vld [vmem:[#allocation4 + $0x788] sm:$0xff]
    %v2451 = vld [vmem:[#allocation4 + $0x790] sm:$0xff]
    %v2452 = vld [vmem:[#allocation4 + $0x798] sm:$0xff]
    %v2453 = vld [vmem:[#allocation4 + $0x7a0] sm:$0xff]
    %v2454 = vld [vmem:[#allocation4 + $0x7a8] sm:$0xff]
    %v2455 = vld [vmem:[#allocation4 + $0x7b0] sm:$0xff]
    %v2456 = vld [vmem:[#allocation4 + $0x7b8] sm:$0xff]
    %v2457 = vld [vmem:[#allocation4 + $0x7c0] sm:$0xff]
    %v2458 = vld [vmem:[#allocation4 + $0x7c8] sm:$0xff]
    %v2459 = vld [vmem:[#allocation4 + $0x7d0] sm:$0xff]
    %v2460 = vld [vmem:[#allocation4 + $0x7d8] sm:$0xff]
    %v2461 = vld [vmem:[#allocation4 + $0x7e0] sm:$0xff]
    %v2462 = vld [vmem:[#allocation4 + $0x7e8] sm:$0xff]
    %v2463 = vld [vmem:[#allocation4 + $0x7f0] sm:$0xff]
    %v2464 = vld [vmem:[#allocation4 + $0x7f8] sm:$0xff]
    %v2465 = vld [vmem:[%s4] sm:$0xf]
    %v2467 = vperm.slane %v2465, 0
    %v2468 = vperm.slane %v2465, 1
    %v2469 = vperm.slane %v2465, 2
    %v2470 = vperm.slane %v2465, 3
    %v2731 = vunpack.c.l.b16 %v2209
    %v2732 = vunpack.c.h.b16 %v2209
    %v2733 = vunpack.c.l.b16 %v2210
    %v2734 = vunpack.c.h.b16 %v2210
    %v2735 = vunpack.c.l.b16 %v2211
    %v2736 = vunpack.c.h.b16 %v2211
    %v2737 = vunpack.c.l.b16 %v2212
    %v2738 = vunpack.c.h.b16 %v2212
    %v2739 = vunpack.c.l.b16 %v2213
    %v2740 = vunpack.c.h.b16 %v2213
    %v2741 = vunpack.c.l.b16 %v2214
    %v2742 = vunpack.c.h.b16 %v2214
    %v2743 = vunpack.c.l.b16 %v2215
    %v2744 = vunpack.c.h.b16 %v2215
    %v2745 = vunpack.c.l.b16 %v2216
    %v2746 = vunpack.c.h.b16 %v2216
    %v2747 = vunpack.c.l.b16 %v2217
    %v2748 = vunpack.c.h.b16 %v2217
    %v2749 = vunpack.c.l.b16 %v2218
    %v2750 = vunpack.c.h.b16 %v2218
    %v2751 = vunpack.c.l.b16 %v2219
    %v2752 = vunpack.c.h.b16 %v2219
    %v2753 = vunpack.c.l.b16 %v2220
    %v2754 = vunpack.c.h.b16 %v2220
    %v2755 = vunpack.c.l.b16 %v2221
    %v2756 = vunpack.c.h.b16 %v2221
    %v2757 = vunpack.c.l.b16 %v2222
    %v2758 = vunpack.c.h.b16 %v2222
    %v2759 = vunpack.c.l.b16 %v2223
    %v2760 = vunpack.c.h.b16 %v2223
    %v2761 = vunpack.c.l.b16 %v2224
    %v2762 = vunpack.c.h.b16 %v2224
    %v2763 = vunpack.c.l.b16 %v2225
    %v2764 = vunpack.c.h.b16 %v2225
    %v2765 = vunpack.c.l.b16 %v2226
    %v2766 = vunpack.c.h.b16 %v2226
    %v2767 = vunpack.c.l.b16 %v2227
    %v2768 = vunpack.c.h.b16 %v2227
    %v2769 = vunpack.c.l.b16 %v2228
    %v2770 = vunpack.c.h.b16 %v2228
    %v2771 = vunpack.c.l.b16 %v2229
    %v2772 = vunpack.c.h.b16 %v2229
    %v2773 = vunpack.c.l.b16 %v2230
    %v2774 = vunpack.c.h.b16 %v2230
    %v2775 = vunpack.c.l.b16 %v2231
    %v2776 = vunpack.c.h.b16 %v2231
    %v2777 = vunpack.c.l.b16 %v2232
    %v2778 = vunpack.c.h.b16 %v2232
    %v2779 = vunpack.c.l.b16 %v2233
    %v2780 = vunpack.c.h.b16 %v2233
    %v2781 = vunpack.c.l.b16 %v2234
    %v2782 = vunpack.c.h.b16 %v2234
    %v2783 = vunpack.c.l.b16 %v2235
    %v2784 = vunpack.c.h.b16 %v2235
    %v2785 = vunpack.c.l.b16 %v2236
    %v2786 = vunpack.c.h.b16 %v2236
    %v2787 = vunpack.c.l.b16 %v2237
    %v2788 = vunpack.c.h.b16 %v2237
    %v2789 = vunpack.c.l.b16 %v2238
    %v2790 = vunpack.c.h.b16 %v2238
    %v2791 = vunpack.c.l.b16 %v2239
    %v2792 = vunpack.c.h.b16 %v2239
    %v2793 = vunpack.c.l.b16 %v2240
    %v2794 = vunpack.c.h.b16 %v2240
    %v2795 = vunpack.c.l.b16 %v2241
    %v2796 = vunpack.c.h.b16 %v2241
    %v2797 = vunpack.c.l.b16 %v2242
    %v2798 = vunpack.c.h.b16 %v2242
    %v2799 = vunpack.c.l.b16 %v2243
    %v2800 = vunpack.c.h.b16 %v2243
    %v2801 = vunpack.c.l.b16 %v2244
    %v2802 = vunpack.c.h.b16 %v2244
    %v2803 = vunpack.c.l.b16 %v2245
    %v2804 = vunpack.c.h.b16 %v2245
    %v2805 = vunpack.c.l.b16 %v2246
    %v2806 = vunpack.c.h.b16 %v2246
    %v2807 = vunpack.c.l.b16 %v2247
    %v2808 = vunpack.c.h.b16 %v2247
    %v2809 = vunpack.c.l.b16 %v2248
    %v2810 = vunpack.c.h.b16 %v2248
    %v2811 = vunpack.c.l.b16 %v2249
    %v2812 = vunpack.c.h.b16 %v2249
    %v2813 = vunpack.c.l.b16 %v2250
    %v2814 = vunpack.c.h.b16 %v2250
    %v2815 = vunpack.c.l.b16 %v2251
    %v2816 = vunpack.c.h.b16 %v2251
    %v2817 = vunpack.c.l.b16 %v2252
    %v2818 = vunpack.c.h.b16 %v2252
    %v2819 = vunpack.c.l.b16 %v2253
    %v2820 = vunpack.c.h.b16 %v2253
    %v2821 = vunpack.c.l.b16 %v2254
    %v2822 = vunpack.c.h.b16 %v2254
    %v2823 = vunpack.c.l.b16 %v2255
    %v2824 = vunpack.c.h.b16 %v2255
    %v2825 = vunpack.c.l.b16 %v2256
    %v2826 = vunpack.c.h.b16 %v2256
    %v2827 = vunpack.c.l.b16 %v2257
    %v2828 = vunpack.c.h.b16 %v2257
    %v2829 = vunpack.c.l.b16 %v2258
    %v2830 = vunpack.c.h.b16 %v2258
    %v2831 = vunpack.c.l.b16 %v2259
    %v2832 = vunpack.c.h.b16 %v2259
    %v2833 = vunpack.c.l.b16 %v2260
    %v2834 = vunpack.c.h.b16 %v2260
    %v2835 = vunpack.c.l.b16 %v2261
    %v2836 = vunpack.c.h.b16 %v2261
    %v2837 = vunpack.c.l.b16 %v2262
    %v2838 = vunpack.c.h.b16 %v2262
    %v2839 = vunpack.c.l.b16 %v2263
    %v2840 = vunpack.c.h.b16 %v2263
    %v2841 = vunpack.c.l.b16 %v2264
    %v2842 = vunpack.c.h.b16 %v2264
    %v2843 = vunpack.c.l.b16 %v2265
    %v2844 = vunpack.c.h.b16 %v2265
    %v2845 = vunpack.c.l.b16 %v2266
    %v2846 = vunpack.c.h.b16 %v2266
    %v2847 = vunpack.c.l.b16 %v2267
    %v2848 = vunpack.c.h.b16 %v2267
    %v2849 = vunpack.c.l.b16 %v2268
    %v2850 = vunpack.c.h.b16 %v2268
    %v2851 = vunpack.c.l.b16 %v2269
    %v2852 = vunpack.c.h.b16 %v2269
    %v2853 = vunpack.c.l.b16 %v2270
    %v2854 = vunpack.c.h.b16 %v2270
    %v2855 = vunpack.c.l.b16 %v2271
    %v2856 = vunpack.c.h.b16 %v2271
    %v2857 = vunpack.c.l.b16 %v2272
    %v2858 = vunpack.c.h.b16 %v2272
    %v2859 = vunpack.c.l.b16 %v2273
    %v2860 = vunpack.c.h.b16 %v2273
    %v2861 = vunpack.c.l.b16 %v2274
    %v2862 = vunpack.c.h.b16 %v2274
    %v2863 = vunpack.c.l.b16 %v2275
    %v2864 = vunpack.c.h.b16 %v2275
    %v2865 = vunpack.c.l.b16 %v2276
    %v2866 = vunpack.c.h.b16 %v2276
    %v2867 = vunpack.c.l.b16 %v2277
    %v2868 = vunpack.c.h.b16 %v2277
    %v2869 = vunpack.c.l.b16 %v2278
    %v2870 = vunpack.c.h.b16 %v2278
    %v2871 = vunpack.c.l.b16 %v2279
    %v2872 = vunpack.c.h.b16 %v2279
    %v2873 = vunpack.c.l.b16 %v2280
    %v2874 = vunpack.c.h.b16 %v2280
    %v2875 = vunpack.c.l.b16 %v2281
    %v2876 = vunpack.c.h.b16 %v2281
    %v2877 = vunpack.c.l.b16 %v2282
    %v2878 = vunpack.c.h.b16 %v2282
    %v2879 = vunpack.c.l.b16 %v2283
    %v2880 = vunpack.c.h.b16 %v2283
    %v2881 = vunpack.c.l.b16 %v2284
    %v2882 = vunpack.c.h.b16 %v2284
    %v2883 = vunpack.c.l.b16 %v2285
    %v2884 = vunpack.c.h.b16 %v2285
    %v2885 = vunpack.c.l.b16 %v2286
    %v2886 = vunpack.c.h.b16 %v2286
    %v2887 = vunpack.c.l.b16 %v2287
    %v2888 = vunpack.c.h.b16 %v2287
    %v2889 = vunpack.c.l.b16 %v2288
    %v2890 = vunpack.c.h.b16 %v2288
    %v2891 = vunpack.c.l.b16 %v2289
    %v2892 = vunpack.c.h.b16 %v2289
    %v2893 = vunpack.c.l.b16 %v2290
    %v2894 = vunpack.c.h.b16 %v2290
    %v2895 = vunpack.c.l.b16 %v2291
    %v2896 = vunpack.c.h.b16 %v2291
    %v2897 = vunpack.c.l.b16 %v2292
    %v2898 = vunpack.c.h.b16 %v2292
    %v2899 = vunpack.c.l.b16 %v2293
    %v2900 = vunpack.c.h.b16 %v2293
    %v2901 = vunpack.c.l.b16 %v2294
    %v2902 = vunpack.c.h.b16 %v2294
    %v2903 = vunpack.c.l.b16 %v2295
    %v2904 = vunpack.c.h.b16 %v2295
    %v2905 = vunpack.c.l.b16 %v2296
    %v2906 = vunpack.c.h.b16 %v2296
    %v2907 = vunpack.c.l.b16 %v2297
    %v2908 = vunpack.c.h.b16 %v2297
    %v2909 = vunpack.c.l.b16 %v2298
    %v2910 = vunpack.c.h.b16 %v2298
    %v2911 = vunpack.c.l.b16 %v2299
    %v2912 = vunpack.c.h.b16 %v2299
    %v2913 = vunpack.c.l.b16 %v2300
    %v2914 = vunpack.c.h.b16 %v2300
    %v2915 = vunpack.c.l.b16 %v2301
    %v2916 = vunpack.c.h.b16 %v2301
    %v2917 = vunpack.c.l.b16 %v2302
    %v2918 = vunpack.c.h.b16 %v2302
    %v2919 = vunpack.c.l.b16 %v2303
    %v2920 = vunpack.c.h.b16 %v2303
    %v2921 = vunpack.c.l.b16 %v2304
    %v2922 = vunpack.c.h.b16 %v2304
    %v2923 = vunpack.c.l.b16 %v2305
    %v2924 = vunpack.c.h.b16 %v2305
    %v2925 = vunpack.c.l.b16 %v2306
    %v2926 = vunpack.c.h.b16 %v2306
    %v2927 = vunpack.c.l.b16 %v2307
    %v2928 = vunpack.c.h.b16 %v2307
    %v2929 = vunpack.c.l.b16 %v2308
    %v2930 = vunpack.c.h.b16 %v2308
    %v2931 = vunpack.c.l.b16 %v2309
    %v2932 = vunpack.c.h.b16 %v2309
    %v2933 = vunpack.c.l.b16 %v2310
    %v2934 = vunpack.c.h.b16 %v2310
    %v2935 = vunpack.c.l.b16 %v2311
    %v2936 = vunpack.c.h.b16 %v2311
    %v2937 = vunpack.c.l.b16 %v2312
    %v2938 = vunpack.c.h.b16 %v2312
    %v2939 = vunpack.c.l.b16 %v2313
    %v2940 = vunpack.c.h.b16 %v2313
    %v2941 = vunpack.c.l.b16 %v2314
    %v2942 = vunpack.c.h.b16 %v2314
    %v2943 = vunpack.c.l.b16 %v2315
    %v2944 = vunpack.c.h.b16 %v2315
    %v2945 = vunpack.c.l.b16 %v2316
    %v2946 = vunpack.c.h.b16 %v2316
    %v2947 = vunpack.c.l.b16 %v2317
    %v2948 = vunpack.c.h.b16 %v2317
    %v2949 = vunpack.c.l.b16 %v2318
    %v2950 = vunpack.c.h.b16 %v2318
    %v2951 = vunpack.c.l.b16 %v2319
    %v2952 = vunpack.c.h.b16 %v2319
    %v2953 = vunpack.c.l.b16 %v2320
    %v2954 = vunpack.c.h.b16 %v2320
    %v2955 = vunpack.c.l.b16 %v2321
    %v2956 = vunpack.c.h.b16 %v2321
    %v2957 = vunpack.c.l.b16 %v2322
    %v2958 = vunpack.c.h.b16 %v2322
    %v2959 = vunpack.c.l.b16 %v2323
    %v2960 = vunpack.c.h.b16 %v2323
    %v2961 = vunpack.c.l.b16 %v2324
    %v2962 = vunpack.c.h.b16 %v2324
    %v2963 = vunpack.c.l.b16 %v2325
    %v2964 = vunpack.c.h.b16 %v2325
    %v2965 = vunpack.c.l.b16 %v2326
    %v2966 = vunpack.c.h.b16 %v2326
    %v2967 = vunpack.c.l.b16 %v2327
    %v2968 = vunpack.c.h.b16 %v2327
    %v2969 = vunpack.c.l.b16 %v2328
    %v2970 = vunpack.c.h.b16 %v2328
    %v2971 = vunpack.c.l.b16 %v2329
    %v2972 = vunpack.c.h.b16 %v2329
    %v2973 = vunpack.c.l.b16 %v2330
    %v2974 = vunpack.c.h.b16 %v2330
    %v2975 = vunpack.c.l.b16 %v2331
    %v2976 = vunpack.c.h.b16 %v2331
    %v2977 = vunpack.c.l.b16 %v2332
    %v2978 = vunpack.c.h.b16 %v2332
    %v2979 = vunpack.c.l.b16 %v2333
    %v2980 = vunpack.c.h.b16 %v2333
    %v2981 = vunpack.c.l.b16 %v2334
    %v2982 = vunpack.c.h.b16 %v2334
    %v2983 = vunpack.c.l.b16 %v2335
    %v2984 = vunpack.c.h.b16 %v2335
    %v2985 = vunpack.c.l.b16 %v2336
    %v2986 = vunpack.c.h.b16 %v2336
    %v2987 = vunpack.c.l.b16 %v2337
    %v2988 = vunpack.c.h.b16 %v2337
    %v2989 = vunpack.c.l.b16 %v2338
    %v2990 = vunpack.c.h.b16 %v2338
    %v2991 = vunpack.c.l.b16 %v2339
    %v2992 = vunpack.c.h.b16 %v2339
    %v2993 = vunpack.c.l.b16 %v2340
    %v2994 = vunpack.c.h.b16 %v2340
    %v2995 = vunpack.c.l.b16 %v2341
    %v2996 = vunpack.c.h.b16 %v2341
    %v2997 = vunpack.c.l.b16 %v2342
    %v2998 = vunpack.c.h.b16 %v2342
    %v2999 = vunpack.c.l.b16 %v2343
    %v3000 = vunpack.c.h.b16 %v2343
    %v3001 = vunpack.c.l.b16 %v2344
    %v3002 = vunpack.c.h.b16 %v2344
    %v3003 = vunpack.c.l.b16 %v2345
    %v3004 = vunpack.c.h.b16 %v2345
    %v3005 = vunpack.c.l.b16 %v2346
    %v3006 = vunpack.c.h.b16 %v2346
    %v3007 = vunpack.c.l.b16 %v2347
    %v3008 = vunpack.c.h.b16 %v2347
    %v3009 = vunpack.c.l.b16 %v2348
    %v3010 = vunpack.c.h.b16 %v2348
    %v3011 = vunpack.c.l.b16 %v2349
    %v3012 = vunpack.c.h.b16 %v2349
    %v3013 = vunpack.c.l.b16 %v2350
    %v3014 = vunpack.c.h.b16 %v2350
    %v3015 = vunpack.c.l.b16 %v2351
    %v3016 = vunpack.c.h.b16 %v2351
    %v3017 = vunpack.c.l.b16 %v2352
    %v3018 = vunpack.c.h.b16 %v2352
    %v3019 = vunpack.c.l.b16 %v2353
    %v3020 = vunpack.c.h.b16 %v2353
    %v3021 = vunpack.c.l.b16 %v2354
    %v3022 = vunpack.c.h.b16 %v2354
    %v3023 = vunpack.c.l.b16 %v2355
    %v3024 = vunpack.c.h.b16 %v2355
    %v3025 = vunpack.c.l.b16 %v2356
    %v3026 = vunpack.c.h.b16 %v2356
    %v3027 = vunpack.c.l.b16 %v2357
    %v3028 = vunpack.c.h.b16 %v2357
    %v3029 = vunpack.c.l.b16 %v2358
    %v3030 = vunpack.c.h.b16 %v2358
    %v3031 = vunpack.c.l.b16 %v2359
    %v3032 = vunpack.c.h.b16 %v2359
    %v3033 = vunpack.c.l.b16 %v2360
    %v3034 = vunpack.c.h.b16 %v2360
    %v3035 = vunpack.c.l.b16 %v2361
    %v3036 = vunpack.c.h.b16 %v2361
    %v3037 = vunpack.c.l.b16 %v2362
    %v3038 = vunpack.c.h.b16 %v2362
    %v3039 = vunpack.c.l.b16 %v2363
    %v3040 = vunpack.c.h.b16 %v2363
    %v3041 = vunpack.c.l.b16 %v2364
    %v3042 = vunpack.c.h.b16 %v2364
    %v3043 = vunpack.c.l.b16 %v2365
    %v3044 = vunpack.c.h.b16 %v2365
    %v3045 = vunpack.c.l.b16 %v2366
    %v3046 = vunpack.c.h.b16 %v2366
    %v3047 = vunpack.c.l.b16 %v2367
    %v3048 = vunpack.c.h.b16 %v2367
    %v3049 = vunpack.c.l.b16 %v2368
    %v3050 = vunpack.c.h.b16 %v2368
    %v3051 = vunpack.c.l.b16 %v2369
    %v3052 = vunpack.c.h.b16 %v2369
    %v3053 = vunpack.c.l.b16 %v2370
    %v3054 = vunpack.c.h.b16 %v2370
    %v3055 = vunpack.c.l.b16 %v2371
    %v3056 = vunpack.c.h.b16 %v2371
    %v3057 = vunpack.c.l.b16 %v2372
    %v3058 = vunpack.c.h.b16 %v2372
    %v3059 = vunpack.c.l.b16 %v2373
    %v3060 = vunpack.c.h.b16 %v2373
    %v3061 = vunpack.c.l.b16 %v2374
    %v3062 = vunpack.c.h.b16 %v2374
    %v3063 = vunpack.c.l.b16 %v2375
    %v3064 = vunpack.c.h.b16 %v2375
    %v3065 = vunpack.c.l.b16 %v2376
    %v3066 = vunpack.c.h.b16 %v2376
    %v3067 = vunpack.c.l.b16 %v2377
    %v3068 = vunpack.c.h.b16 %v2377
    %v3069 = vunpack.c.l.b16 %v2378
    %v3070 = vunpack.c.h.b16 %v2378
    %v3071 = vunpack.c.l.b16 %v2379
    %v3072 = vunpack.c.h.b16 %v2379
    %v3073 = vunpack.c.l.b16 %v2380
    %v3074 = vunpack.c.h.b16 %v2380
    %v3075 = vunpack.c.l.b16 %v2381
    %v3076 = vunpack.c.h.b16 %v2381
    %v3077 = vunpack.c.l.b16 %v2382
    %v3078 = vunpack.c.h.b16 %v2382
    %v3079 = vunpack.c.l.b16 %v2383
    %v3080 = vunpack.c.h.b16 %v2383
    %v3081 = vunpack.c.l.b16 %v2384
    %v3082 = vunpack.c.h.b16 %v2384
    %v3083 = vunpack.c.l.b16 %v2385
    %v3084 = vunpack.c.h.b16 %v2385
    %v3085 = vunpack.c.l.b16 %v2386
    %v3086 = vunpack.c.h.b16 %v2386
    %v3087 = vunpack.c.l.b16 %v2387
    %v3088 = vunpack.c.h.b16 %v2387
    %v3089 = vunpack.c.l.b16 %v2388
    %v3090 = vunpack.c.h.b16 %v2388
    %v3091 = vunpack.c.l.b16 %v2389
    %v3092 = vunpack.c.h.b16 %v2389
    %v3093 = vunpack.c.l.b16 %v2390
    %v3094 = vunpack.c.h.b16 %v2390
    %v3095 = vunpack.c.l.b16 %v2391
    %v3096 = vunpack.c.h.b16 %v2391
    %v3097 = vunpack.c.l.b16 %v2392
    %v3098 = vunpack.c.h.b16 %v2392
    %v3099 = vunpack.c.l.b16 %v2393
    %v3100 = vunpack.c.h.b16 %v2393
    %v3101 = vunpack.c.l.b16 %v2394
    %v3102 = vunpack.c.h.b16 %v2394
    %v3103 = vunpack.c.l.b16 %v2395
    %v3104 = vunpack.c.h.b16 %v2395
    %v3105 = vunpack.c.l.b16 %v2396
    %v3106 = vunpack.c.h.b16 %v2396
    %v3107 = vunpack.c.l.b16 %v2397
    %v3108 = vunpack.c.h.b16 %v2397
    %v3109 = vunpack.c.l.b16 %v2398
    %v3110 = vunpack.c.h.b16 %v2398
    %v3111 = vunpack.c.l.b16 %v2399
    %v3112 = vunpack.c.h.b16 %v2399
    %v3113 = vunpack.c.l.b16 %v2400
    %v3114 = vunpack.c.h.b16 %v2400
    %v3115 = vunpack.c.l.b16 %v2401
    %v3116 = vunpack.c.h.b16 %v2401
    %v3117 = vunpack.c.l.b16 %v2402
    %v3118 = vunpack.c.h.b16 %v2402
    %v3119 = vunpack.c.l.b16 %v2403
    %v3120 = vunpack.c.h.b16 %v2403
    %v3121 = vunpack.c.l.b16 %v2404
    %v3122 = vunpack.c.h.b16 %v2404
    %v3123 = vunpack.c.l.b16 %v2405
    %v3124 = vunpack.c.h.b16 %v2405
    %v3125 = vunpack.c.l.b16 %v2406
    %v3126 = vunpack.c.h.b16 %v2406
    %v3127 = vunpack.c.l.b16 %v2407
    %v3128 = vunpack.c.h.b16 %v2407
    %v3129 = vunpack.c.l.b16 %v2408
    %v3130 = vunpack.c.h.b16 %v2408
    %v3131 = vunpack.c.l.b16 %v2409
    %v3132 = vunpack.c.h.b16 %v2409
    %v3133 = vunpack.c.l.b16 %v2410
    %v3134 = vunpack.c.h.b16 %v2410
    %v3135 = vunpack.c.l.b16 %v2411
    %v3136 = vunpack.c.h.b16 %v2411
    %v3137 = vunpack.c.l.b16 %v2412
    %v3138 = vunpack.c.h.b16 %v2412
    %v3139 = vunpack.c.l.b16 %v2413
    %v3140 = vunpack.c.h.b16 %v2413
    %v3141 = vunpack.c.l.b16 %v2414
    %v3142 = vunpack.c.h.b16 %v2414
    %v3143 = vunpack.c.l.b16 %v2415
    %v3144 = vunpack.c.h.b16 %v2415
    %v3145 = vunpack.c.l.b16 %v2416
    %v3146 = vunpack.c.h.b16 %v2416
    %v3147 = vunpack.c.l.b16 %v2417
    %v3148 = vunpack.c.h.b16 %v2417
    %v3149 = vunpack.c.l.b16 %v2418
    %v3150 = vunpack.c.h.b16 %v2418
    %v3151 = vunpack.c.l.b16 %v2419
    %v3152 = vunpack.c.h.b16 %v2419
    %v3153 = vunpack.c.l.b16 %v2420
    %v3154 = vunpack.c.h.b16 %v2420
    %v3155 = vunpack.c.l.b16 %v2421
    %v3156 = vunpack.c.h.b16 %v2421
    %v3157 = vunpack.c.l.b16 %v2422
    %v3158 = vunpack.c.h.b16 %v2422
    %v3159 = vunpack.c.l.b16 %v2423
    %v3160 = vunpack.c.h.b16 %v2423
    %v3161 = vunpack.c.l.b16 %v2424
    %v3162 = vunpack.c.h.b16 %v2424
    %v3163 = vunpack.c.l.b16 %v2425
    %v3164 = vunpack.c.h.b16 %v2425
    %v3165 = vunpack.c.l.b16 %v2426
    %v3166 = vunpack.c.h.b16 %v2426
    %v3167 = vunpack.c.l.b16 %v2427
    %v3168 = vunpack.c.h.b16 %v2427
    %v3169 = vunpack.c.l.b16 %v2428
    %v3170 = vunpack.c.h.b16 %v2428
    %v3171 = vunpack.c.l.b16 %v2429
    %v3172 = vunpack.c.h.b16 %v2429
    %v3173 = vunpack.c.l.b16 %v2430
    %v3174 = vunpack.c.h.b16 %v2430
    %v3175 = vunpack.c.l.b16 %v2431
    %v3176 = vunpack.c.h.b16 %v2431
    %v3177 = vunpack.c.l.b16 %v2432
    %v3178 = vunpack.c.h.b16 %v2432
    %v3179 = vunpack.c.l.b16 %v2433
    %v3180 = vunpack.c.h.b16 %v2433
    %v3181 = vunpack.c.l.b16 %v2434
    %v3182 = vunpack.c.h.b16 %v2434
    %v3183 = vunpack.c.l.b16 %v2435
    %v3184 = vunpack.c.h.b16 %v2435
    %v3185 = vunpack.c.l.b16 %v2436
    %v3186 = vunpack.c.h.b16 %v2436
    %v3187 = vunpack.c.l.b16 %v2437
    %v3188 = vunpack.c.h.b16 %v2437
    %v3189 = vunpack.c.l.b16 %v2438
    %v3190 = vunpack.c.h.b16 %v2438
    %v3191 = vunpack.c.l.b16 %v2439
    %v3192 = vunpack.c.h.b16 %v2439
    %v3193 = vunpack.c.l.b16 %v2440
    %v3194 = vunpack.c.h.b16 %v2440
    %v3195 = vunpack.c.l.b16 %v2441
    %v3196 = vunpack.c.h.b16 %v2441
    %v3197 = vunpack.c.l.b16 %v2442
    %v3198 = vunpack.c.h.b16 %v2442
    %v3199 = vunpack.c.l.b16 %v2443
    %v3200 = vunpack.c.h.b16 %v2443
    %v3201 = vunpack.c.l.b16 %v2444
    %v3202 = vunpack.c.h.b16 %v2444
    %v3203 = vunpack.c.l.b16 %v2445
    %v3204 = vunpack.c.h.b16 %v2445
    %v3205 = vunpack.c.l.b16 %v2446
    %v3206 = vunpack.c.h.b16 %v2446
    %v3207 = vunpack.c.l.b16 %v2447
    %v3208 = vunpack.c.h.b16 %v2447
    %v3209 = vunpack.c.l.b16 %v2448
    %v3210 = vunpack.c.h.b16 %v2448
    %v3211 = vunpack.c.l.b16 %v2449
    %v3212 = vunpack.c.h.b16 %v2449
    %v3213 = vunpack.c.l.b16 %v2450
    %v3214 = vunpack.c.h.b16 %v2450
    %v3215 = vunpack.c.l.b16 %v2451
    %v3216 = vunpack.c.h.b16 %v2451
    %v3217 = vunpack.c.l.b16 %v2452
    %v3218 = vunpack.c.h.b16 %v2452
    %v3219 = vunpack.c.l.b16 %v2453
    %v3220 = vunpack.c.h.b16 %v2453
    %v3221 = vunpack.c.l.b16 %v2454
    %v3222 = vunpack.c.h.b16 %v2454
    %v3223 = vunpack.c.l.b16 %v2455
    %v3224 = vunpack.c.h.b16 %v2455
    %v3225 = vunpack.c.l.b16 %v2456
    %v3226 = vunpack.c.h.b16 %v2456
    %v3227 = vunpack.c.l.b16 %v2457
    %v3228 = vunpack.c.h.b16 %v2457
    %v3229 = vunpack.c.l.b16 %v2458
    %v3230 = vunpack.c.h.b16 %v2458
    %v3231 = vunpack.c.l.b16 %v2459
    %v3232 = vunpack.c.h.b16 %v2459
    %v3233 = vunpack.c.l.b16 %v2460
    %v3234 = vunpack.c.h.b16 %v2460
    %v3235 = vunpack.c.l.b16 %v2461
    %v3236 = vunpack.c.h.b16 %v2461
    %v3237 = vunpack.c.l.b16 %v2462
    %v3238 = vunpack.c.h.b16 %v2462
    %v3239 = vunpack.c.l.b16 %v2463
    %v3240 = vunpack.c.h.b16 %v2463
    %v3241 = vunpack.c.l.b16 %v2464
    %v3242 = vunpack.c.h.b16 %v2464
    %v3243 = vpack.c.b16 %v2735, %v2731
    %v3244 = vpack.c.b16 %v2736, %v2732
    %v3245 = vpack.c.b16 %v2737, %v2733
    %v3246 = vpack.c.b16 %v2738, %v2734
    %v3247 = vpack.c.b16 %v2743, %v2739
    %v3248 = vpack.c.b16 %v2744, %v2740
    %v3249 = vpack.c.b16 %v2745, %v2741
    %v3250 = vpack.c.b16 %v2746, %v2742
    %v3251 = vpack.c.b16 %v2751, %v2747
    %v3252 = vpack.c.b16 %v2752, %v2748
    %v3253 = vpack.c.b16 %v2753, %v2749
    %v3254 = vpack.c.b16 %v2754, %v2750
    %v3255 = vpack.c.b16 %v2759, %v2755
    %v3256 = vpack.c.b16 %v2760, %v2756
    %v3257 = vpack.c.b16 %v2761, %v2757
    %v3258 = vpack.c.b16 %v2762, %v2758
    %v3259 = vpack.c.b16 %v2767, %v2763
    %v3260 = vpack.c.b16 %v2768, %v2764
    %v3261 = vpack.c.b16 %v2769, %v2765
    %v3262 = vpack.c.b16 %v2770, %v2766
    %v3263 = vpack.c.b16 %v2775, %v2771
    %v3264 = vpack.c.b16 %v2776, %v2772
    %v3265 = vpack.c.b16 %v2777, %v2773
    %v3266 = vpack.c.b16 %v2778, %v2774
    %v3267 = vpack.c.b16 %v2783, %v2779
    %v3268 = vpack.c.b16 %v2784, %v2780
    %v3269 = vpack.c.b16 %v2785, %v2781
    %v3270 = vpack.c.b16 %v2786, %v2782
    %v3271 = vpack.c.b16 %v2791, %v2787
    %v3272 = vpack.c.b16 %v2792, %v2788
    %v3273 = vpack.c.b16 %v2793, %v2789
    %v3274 = vpack.c.b16 %v2794, %v2790
    %v3275 = vpack.c.b16 %v2799, %v2795
    %v3276 = vpack.c.b16 %v2800, %v2796
    %v3277 = vpack.c.b16 %v2801, %v2797
    %v3278 = vpack.c.b16 %v2802, %v2798
    %v3279 = vpack.c.b16 %v2807, %v2803
    %v3280 = vpack.c.b16 %v2808, %v2804
    %v3281 = vpack.c.b16 %v2809, %v2805
    %v3282 = vpack.c.b16 %v2810, %v2806
    %v3283 = vpack.c.b16 %v2815, %v2811
    %v3284 = vpack.c.b16 %v2816, %v2812
    %v3285 = vpack.c.b16 %v2817, %v2813
    %v3286 = vpack.c.b16 %v2818, %v2814
    %v3287 = vpack.c.b16 %v2823, %v2819
    %v3288 = vpack.c.b16 %v2824, %v2820
    %v3289 = vpack.c.b16 %v2825, %v2821
    %v3290 = vpack.c.b16 %v2826, %v2822
    %v3291 = vpack.c.b16 %v2831, %v2827
    %v3292 = vpack.c.b16 %v2832, %v2828
    %v3293 = vpack.c.b16 %v2833, %v2829
    %v3294 = vpack.c.b16 %v2834, %v2830
    %v3295 = vpack.c.b16 %v2839, %v2835
    %v3296 = vpack.c.b16 %v2840, %v2836
    %v3297 = vpack.c.b16 %v2841, %v2837
    %v3298 = vpack.c.b16 %v2842, %v2838
    %v3299 = vpack.c.b16 %v2847, %v2843
    %v3300 = vpack.c.b16 %v2848, %v2844
    %v3301 = vpack.c.b16 %v2849, %v2845
    %v3302 = vpack.c.b16 %v2850, %v2846
    %v3303 = vpack.c.b16 %v2855, %v2851
    %v3304 = vpack.c.b16 %v2856, %v2852
    %v3305 = vpack.c.b16 %v2857, %v2853
    %v3306 = vpack.c.b16 %v2858, %v2854
    %v3307 = vpack.c.b16 %v2863, %v2859
    %v3308 = vpack.c.b16 %v2864, %v2860
    %v3309 = vpack.c.b16 %v2865, %v2861
    %v3310 = vpack.c.b16 %v2866, %v2862
    %v3311 = vpack.c.b16 %v2871, %v2867
    %v3312 = vpack.c.b16 %v2872, %v2868
    %v3313 = vpack.c.b16 %v2873, %v2869
    %v3314 = vpack.c.b16 %v2874, %v2870
    %v3315 = vpack.c.b16 %v2879, %v2875
    %v3316 = vpack.c.b16 %v2880, %v2876
    %v3317 = vpack.c.b16 %v2881, %v2877
    %v3318 = vpack.c.b16 %v2882, %v2878
    %v3319 = vpack.c.b16 %v2887, %v2883
    %v3320 = vpack.c.b16 %v2888, %v2884
    %v3321 = vpack.c.b16 %v2889, %v2885
    %v3322 = vpack.c.b16 %v2890, %v2886
    %v3323 = vpack.c.b16 %v2895, %v2891
    %v3324 = vpack.c.b16 %v2896, %v2892
    %v3325 = vpack.c.b16 %v2897, %v2893
    %v3326 = vpack.c.b16 %v2898, %v2894
    %v3327 = vpack.c.b16 %v2903, %v2899
    %v3328 = vpack.c.b16 %v2904, %v2900
    %v3329 = vpack.c.b16 %v2905, %v2901
    %v3330 = vpack.c.b16 %v2906, %v2902
    %v3331 = vpack.c.b16 %v2911, %v2907
    %v3332 = vpack.c.b16 %v2912, %v2908
    %v3333 = vpack.c.b16 %v2913, %v2909
    %v3334 = vpack.c.b16 %v2914, %v2910
    %v3335 = vpack.c.b16 %v2919, %v2915
    %v3336 = vpack.c.b16 %v2920, %v2916
    %v3337 = vpack.c.b16 %v2921, %v2917
    %v3338 = vpack.c.b16 %v2922, %v2918
    %v3339 = vpack.c.b16 %v2927, %v2923
    %v3340 = vpack.c.b16 %v2928, %v2924
    %v3341 = vpack.c.b16 %v2929, %v2925
    %v3342 = vpack.c.b16 %v2930, %v2926
    %v3343 = vpack.c.b16 %v2935, %v2931
    %v3344 = vpack.c.b16 %v2936, %v2932
    %v3345 = vpack.c.b16 %v2937, %v2933
    %v3346 = vpack.c.b16 %v2938, %v2934
    %v3347 = vpack.c.b16 %v2943, %v2939
    %v3348 = vpack.c.b16 %v2944, %v2940
    %v3349 = vpack.c.b16 %v2945, %v2941
    %v3350 = vpack.c.b16 %v2946, %v2942
    %v3351 = vpack.c.b16 %v2951, %v2947
    %v3352 = vpack.c.b16 %v2952, %v2948
    %v3353 = vpack.c.b16 %v2953, %v2949
    %v3354 = vpack.c.b16 %v2954, %v2950
    %v3355 = vpack.c.b16 %v2959, %v2955
    %v3356 = vpack.c.b16 %v2960, %v2956
    %v3357 = vpack.c.b16 %v2961, %v2957
    %v3358 = vpack.c.b16 %v2962, %v2958
    %v3359 = vpack.c.b16 %v2967, %v2963
    %v3360 = vpack.c.b16 %v2968, %v2964
    %v3361 = vpack.c.b16 %v2969, %v2965
    %v3362 = vpack.c.b16 %v2970, %v2966
    %v3363 = vpack.c.b16 %v2975, %v2971
    %v3364 = vpack.c.b16 %v2976, %v2972
    %v3365 = vpack.c.b16 %v2977, %v2973
    %v3366 = vpack.c.b16 %v2978, %v2974
    %v3367 = vpack.c.b16 %v2983, %v2979
    %v3368 = vpack.c.b16 %v2984, %v2980
    %v3369 = vpack.c.b16 %v2985, %v2981
    %v3370 = vpack.c.b16 %v2986, %v2982
    %v3371 = vpack.c.b16 %v2991, %v2987
    %v3372 = vpack.c.b16 %v2992, %v2988
    %v3373 = vpack.c.b16 %v2993, %v2989
    %v3374 = vpack.c.b16 %v2994, %v2990
    %v3375 = vpack.c.b16 %v2999, %v2995
    %v3376 = vpack.c.b16 %v3000, %v2996
    %v3377 = vpack.c.b16 %v3001, %v2997
    %v3378 = vpack.c.b16 %v3002, %v2998
    %v3379 = vpack.c.b16 %v3007, %v3003
    %v3380 = vpack.c.b16 %v3008, %v3004
    %v3381 = vpack.c.b16 %v3009, %v3005
    %v3382 = vpack.c.b16 %v3010, %v3006
    %v3383 = vpack.c.b16 %v3015, %v3011
    %v3384 = vpack.c.b16 %v3016, %v3012
    %v3385 = vpack.c.b16 %v3017, %v3013
    %v3386 = vpack.c.b16 %v3018, %v3014
    %v3387 = vpack.c.b16 %v3023, %v3019
    %v3388 = vpack.c.b16 %v3024, %v3020
    %v3389 = vpack.c.b16 %v3025, %v3021
    %v3390 = vpack.c.b16 %v3026, %v3022
    %v3391 = vpack.c.b16 %v3031, %v3027
    %v3392 = vpack.c.b16 %v3032, %v3028
    %v3393 = vpack.c.b16 %v3033, %v3029
    %v3394 = vpack.c.b16 %v3034, %v3030
    %v3395 = vpack.c.b16 %v3039, %v3035
    %v3396 = vpack.c.b16 %v3040, %v3036
    %v3397 = vpack.c.b16 %v3041, %v3037
    %v3398 = vpack.c.b16 %v3042, %v3038
    %v3399 = vpack.c.b16 %v3047, %v3043
    %v3400 = vpack.c.b16 %v3048, %v3044
    %v3401 = vpack.c.b16 %v3049, %v3045
    %v3402 = vpack.c.b16 %v3050, %v3046
    %v3403 = vpack.c.b16 %v3055, %v3051
    %v3404 = vpack.c.b16 %v3056, %v3052
    %v3405 = vpack.c.b16 %v3057, %v3053
    %v3406 = vpack.c.b16 %v3058, %v3054
    %v3407 = vpack.c.b16 %v3063, %v3059
    %v3408 = vpack.c.b16 %v3064, %v3060
    %v3409 = vpack.c.b16 %v3065, %v3061
    %v3410 = vpack.c.b16 %v3066, %v3062
    %v3411 = vpack.c.b16 %v3071, %v3067
    %v3412 = vpack.c.b16 %v3072, %v3068
    %v3413 = vpack.c.b16 %v3073, %v3069
    %v3414 = vpack.c.b16 %v3074, %v3070
    %v3415 = vpack.c.b16 %v3079, %v3075
    %v3416 = vpack.c.b16 %v3080, %v3076
    %v3417 = vpack.c.b16 %v3081, %v3077
    %v3418 = vpack.c.b16 %v3082, %v3078
    %v3419 = vpack.c.b16 %v3087, %v3083
    %v3420 = vpack.c.b16 %v3088, %v3084
    %v3421 = vpack.c.b16 %v3089, %v3085
    %v3422 = vpack.c.b16 %v3090, %v3086
    %v3423 = vpack.c.b16 %v3095, %v3091
    %v3424 = vpack.c.b16 %v3096, %v3092
    %v3425 = vpack.c.b16 %v3097, %v3093
    %v3426 = vpack.c.b16 %v3098, %v3094
    %v3427 = vpack.c.b16 %v3103, %v3099
    %v3428 = vpack.c.b16 %v3104, %v3100
    %v3429 = vpack.c.b16 %v3105, %v3101
    %v3430 = vpack.c.b16 %v3106, %v3102
    %v3431 = vpack.c.b16 %v3111, %v3107
    %v3432 = vpack.c.b16 %v3112, %v3108
    %v3433 = vpack.c.b16 %v3113, %v3109
    %v3434 = vpack.c.b16 %v3114, %v3110
    %v3435 = vpack.c.b16 %v3119, %v3115
    %v3436 = vpack.c.b16 %v3120, %v3116
    %v3437 = vpack.c.b16 %v3121, %v3117
    %v3438 = vpack.c.b16 %v3122, %v3118
    %v3439 = vpack.c.b16 %v3127, %v3123
    %v3440 = vpack.c.b16 %v3128, %v3124
    %v3441 = vpack.c.b16 %v3129, %v3125
    %v3442 = vpack.c.b16 %v3130, %v3126
    %v3443 = vpack.c.b16 %v3135, %v3131
    %v3444 = vpack.c.b16 %v3136, %v3132
    %v3445 = vpack.c.b16 %v3137, %v3133
    %v3446 = vpack.c.b16 %v3138, %v3134
    %v3447 = vpack.c.b16 %v3143, %v3139
    %v3448 = vpack.c.b16 %v3144, %v3140
    %v3449 = vpack.c.b16 %v3145, %v3141
    %v3450 = vpack.c.b16 %v3146, %v3142
    %v3451 = vpack.c.b16 %v3151, %v3147
    %v3452 = vpack.c.b16 %v3152, %v3148
    %v3453 = vpack.c.b16 %v3153, %v3149
    %v3454 = vpack.c.b16 %v3154, %v3150
    %v3455 = vpack.c.b16 %v3159, %v3155
    %v3456 = vpack.c.b16 %v3160, %v3156
    %v3457 = vpack.c.b16 %v3161, %v3157
    %v3458 = vpack.c.b16 %v3162, %v3158
    %v3459 = vpack.c.b16 %v3167, %v3163
    %v3460 = vpack.c.b16 %v3168, %v3164
    %v3461 = vpack.c.b16 %v3169, %v3165
    %v3462 = vpack.c.b16 %v3170, %v3166
    %v3463 = vpack.c.b16 %v3175, %v3171
    %v3464 = vpack.c.b16 %v3176, %v3172
    %v3465 = vpack.c.b16 %v3177, %v3173
    %v3466 = vpack.c.b16 %v3178, %v3174
    %v3467 = vpack.c.b16 %v3183, %v3179
    %v3468 = vpack.c.b16 %v3184, %v3180
    %v3469 = vpack.c.b16 %v3185, %v3181
    %v3470 = vpack.c.b16 %v3186, %v3182
    %v3471 = vpack.c.b16 %v3191, %v3187
    %v3472 = vpack.c.b16 %v3192, %v3188
    %v3473 = vpack.c.b16 %v3193, %v3189
    %v3474 = vpack.c.b16 %v3194, %v3190
    %v3475 = vpack.c.b16 %v3199, %v3195
    %v3476 = vpack.c.b16 %v3200, %v3196
    %v3477 = vpack.c.b16 %v3201, %v3197
    %v3478 = vpack.c.b16 %v3202, %v3198
    %v3479 = vpack.c.b16 %v3207, %v3203
    %v3480 = vpack.c.b16 %v3208, %v3204
    %v3481 = vpack.c.b16 %v3209, %v3205
    %v3482 = vpack.c.b16 %v3210, %v3206
    %v3483 = vpack.c.b16 %v3215, %v3211
    %v3484 = vpack.c.b16 %v3216, %v3212
    %v3485 = vpack.c.b16 %v3217, %v3213
    %v3486 = vpack.c.b16 %v3218, %v3214
    %v3487 = vpack.c.b16 %v3223, %v3219
    %v3488 = vpack.c.b16 %v3224, %v3220
    %v3489 = vpack.c.b16 %v3225, %v3221
    %v3490 = vpack.c.b16 %v3226, %v3222
    %v3491 = vpack.c.b16 %v3231, %v3227
    %v3492 = vpack.c.b16 %v3232, %v3228
    %v3493 = vpack.c.b16 %v3233, %v3229
    %v3494 = vpack.c.b16 %v3234, %v3230
    %v3495 = vpack.c.b16 %v3239, %v3235
    %v3496 = vpack.c.b16 %v3240, %v3236
    %v3497 = vpack.c.b16 %v3241, %v3237
    %v3498 = vpack.c.b16 %v3242, %v3238
    %3755 = vmatpush.bf16.msra.mxu0 %v3271
    %3756 = vmatpush.bf16.msra.mxu0 %v3267
    %3757 = vmatpush.bf16.msra.mxu0 %v3263
    %3758 = vmatpush.bf16.msra.mxu0 %v3259
    %3759 = vmatpush.bf16.msra.mxu0 %v3255
    %3760 = vmatpush.bf16.msra.mxu0 %v3251
    %3761 = vmatpush.bf16.msra.mxu0 %v3247
    %3762 = vmatpush.bf16.msra.mxu0 %v3243
    %3763 = vmatmul.bf16.gmra.mxu0 %v2201
    %v3764 = vpop.f32.mrf.mxu0
    %v3765 = vadd.f32 %v2467, %v3764
    %v3766 = vpop.f32.mrf.mxu0
    %v3767 = vadd.f32 %v2467, %v3766
    %3768 = vdwg.mxu0
    %3769 = vmatpush.bf16.msra.mxu0 %v3303
    %3770 = vmatpush.bf16.msra.mxu0 %v3299
    %3771 = vmatpush.bf16.msra.mxu0 %v3295
    %3772 = vmatpush.bf16.msra.mxu0 %v3291
    %3773 = vmatpush.bf16.msra.mxu0 %v3287
    %3774 = vmatpush.bf16.msra.mxu0 %v3283
    %3775 = vmatpush.bf16.msra.mxu0 %v3279
    %3776 = vmatpush.bf16.msra.mxu0 %v3275
    %3777 = vmatmul.bf16.gmra.mxu0 %v2202
    %v3778 = vpop.f32.mrf.mxu0
    %v3779 = vadd.f32 %v3765, %v3778
    %v3780 = vpop.f32.mrf.mxu0
    %v3781 = vadd.f32 %v3767, %v3780
    %3782 = vdwg.mxu0
    %3783 = vmatpush.bf16.msra.mxu0 %v3335
    %3784 = vmatpush.bf16.msra.mxu0 %v3331
    %3785 = vmatpush.bf16.msra.mxu0 %v3327
    %3786 = vmatpush.bf16.msra.mxu0 %v3323
    %3787 = vmatpush.bf16.msra.mxu0 %v3319
    %3788 = vmatpush.bf16.msra.mxu0 %v3315
    %3789 = vmatpush.bf16.msra.mxu0 %v3311
    %3790 = vmatpush.bf16.msra.mxu0 %v3307
    %3791 = vmatmul.bf16.gmra.mxu0 %v2203
    %v3792 = vpop.f32.mrf.mxu0
    %v3793 = vadd.f32 %v3779, %v3792
    %v3794 = vpop.f32.mrf.mxu0
    %v3795 = vadd.f32 %v3781, %v3794
    %3796 = vdwg.mxu0
    %3797 = vmatpush.bf16.msra.mxu0 %v3367
    %3798 = vmatpush.bf16.msra.mxu0 %v3363
    %3799 = vmatpush.bf16.msra.mxu0 %v3359
    %3800 = vmatpush.bf16.msra.mxu0 %v3355
    %3801 = vmatpush.bf16.msra.mxu0 %v3351
    %3802 = vmatpush.bf16.msra.mxu0 %v3347
    %3803 = vmatpush.bf16.msra.mxu0 %v3343
    %3804 = vmatpush.bf16.msra.mxu0 %v3339
    %3805 = vmatmul.bf16.gmra.mxu0 %v2204
    %v3806 = vpop.f32.mrf.mxu0
    %v3807 = vadd.f32 %v3793, %v3806
    %v3808 = vpop.f32.mrf.mxu0
    %v3809 = vadd.f32 %v3795, %v3808
    %3810 = vdwg.mxu0
    %3811 = vmatpush.bf16.msra.mxu0 %v3399
    %3812 = vmatpush.bf16.msra.mxu0 %v3395
    %3813 = vmatpush.bf16.msra.mxu0 %v3391
    %3814 = vmatpush.bf16.msra.mxu0 %v3387
    %3815 = vmatpush.bf16.msra.mxu0 %v3383
    %3816 = vmatpush.bf16.msra.mxu0 %v3379
    %3817 = vmatpush.bf16.msra.mxu0 %v3375
    %3818 = vmatpush.bf16.msra.mxu0 %v3371
    %3819 = vmatmul.bf16.gmra.mxu0 %v2205
    %v3820 = vpop.f32.mrf.mxu0
    %v3821 = vadd.f32 %v3807, %v3820
    %v3822 = vpop.f32.mrf.mxu0
    %v3823 = vadd.f32 %v3809, %v3822
    %3824 = vdwg.mxu0
    %3825 = vmatpush.bf16.msra.mxu0 %v3431
    %3826 = vmatpush.bf16.msra.mxu0 %v3427
    %3827 = vmatpush.bf16.msra.mxu0 %v3423
    %3828 = vmatpush.bf16.msra.mxu0 %v3419
    %3829 = vmatpush.bf16.msra.mxu0 %v3415
    %3830 = vmatpush.bf16.msra.mxu0 %v3411
    %3831 = vmatpush.bf16.msra.mxu0 %v3407
    %3832 = vmatpush.bf16.msra.mxu0 %v3403
    %3833 = vmatmul.bf16.gmra.mxu0 %v2206
    %v3834 = vpop.f32.mrf.mxu0
    %v3835 = vadd.f32 %v3821, %v3834
    %v3836 = vpop.f32.mrf.mxu0
    %v3837 = vadd.f32 %v3823, %v3836
    %3838 = vdwg.mxu0
    %3839 = vmatpush.bf16.msra.mxu0 %v3463
    %3840 = vmatpush.bf16.msra.mxu0 %v3459
    %3841 = vmatpush.bf16.msra.mxu0 %v3455
    %3842 = vmatpush.bf16.msra.mxu0 %v3451
    %3843 = vmatpush.bf16.msra.mxu0 %v3447
    %3844 = vmatpush.bf16.msra.mxu0 %v3443
    %3845 = vmatpush.bf16.msra.mxu0 %v3439
    %3846 = vmatpush.bf16.msra.mxu0 %v3435
    %3847 = vmatmul.bf16.gmra.mxu0 %v2207
    %v3848 = vpop.f32.mrf.mxu0
    %v3849 = vadd.f32 %v3835, %v3848
    %v3850 = vpop.f32.mrf.mxu0
    %v3851 = vadd.f32 %v3837, %v3850
    %3852 = vdwg.mxu0
    %3853 = vmatpush.bf16.msra.mxu0 %v3495
    %3854 = vmatpush.bf16.msra.mxu0 %v3491
    %3855 = vmatpush.bf16.msra.mxu0 %v3487
    %3856 = vmatpush.bf16.msra.mxu0 %v3483
    %3857 = vmatpush.bf16.msra.mxu0 %v3479
    %3858 = vmatpush.bf16.msra.mxu0 %v3475
    %3859 = vmatpush.bf16.msra.mxu0 %v3471
    %3860 = vmatpush.bf16.msra.mxu0 %v3467
    %3861 = vmatmul.bf16.gmra.mxu0 %v2208
    %v3862 = vpop.f32.mrf.mxu0
    %v3863 = vadd.f32 %v3849, %v3862
    %v3864 = vpop.f32.mrf.mxu0
    %v3865 = vadd.f32 %v3851, %v3864
    %3866 = vdwg.mxu0
    %3867 = vmatpush.bf16.msra.mxu0 %v3272
    %3868 = vmatpush.bf16.msra.mxu0 %v3268
    %3869 = vmatpush.bf16.msra.mxu0 %v3264
    %3870 = vmatpush.bf16.msra.mxu0 %v3260
    %3871 = vmatpush.bf16.msra.mxu0 %v3256
    %3872 = vmatpush.bf16.msra.mxu0 %v3252
    %3873 = vmatpush.bf16.msra.mxu0 %v3248
    %3874 = vmatpush.bf16.msra.mxu0 %v3244
    %3875 = vmatmul.bf16.gmra.mxu0 %v2201
    %v3876 = vpop.f32.mrf.mxu0
    %v3877 = vadd.f32 %v2468, %v3876
    %v3878 = vpop.f32.mrf.mxu0
    %v3879 = vadd.f32 %v2468, %v3878
    %3880 = vdwg.mxu0
    %3881 = vmatpush.bf16.msra.mxu0 %v3304
    %3882 = vmatpush.bf16.msra.mxu0 %v3300
    %3883 = vmatpush.bf16.msra.mxu0 %v3296
    %3884 = vmatpush.bf16.msra.mxu0 %v3292
    %3885 = vmatpush.bf16.msra.mxu0 %v3288
    %3886 = vmatpush.bf16.msra.mxu0 %v3284
    %3887 = vmatpush.bf16.msra.mxu0 %v3280
    %3888 = vmatpush.bf16.msra.mxu0 %v3276
    %3889 = vmatmul.bf16.gmra.mxu0 %v2202
    %v3890 = vpop.f32.mrf.mxu0
    %v3891 = vadd.f32 %v3877, %v3890
    %v3892 = vpop.f32.mrf.mxu0
    %v3893 = vadd.f32 %v3879, %v3892
    %3894 = vdwg.mxu0
    %3895 = vmatpush.bf16.msra.mxu0 %v3336
    %3896 = vmatpush.bf16.msra.mxu0 %v3332
    %3897 = vmatpush.bf16.msra.mxu0 %v3328
    %3898 = vmatpush.bf16.msra.mxu0 %v3324
    %3899 = vmatpush.bf16.msra.mxu0 %v3320
    %3900 = vmatpush.bf16.msra.mxu0 %v3316
    %3901 = vmatpush.bf16.msra.mxu0 %v3312
    %3902 = vmatpush.bf16.msra.mxu0 %v3308
    %3903 = vmatmul.bf16.gmra.mxu0 %v2203
    %v3904 = vpop.f32.mrf.mxu0
    %v3905 = vadd.f32 %v3891, %v3904
    %v3906 = vpop.f32.mrf.mxu0
    %v3907 = vadd.f32 %v3893, %v3906
    %3908 = vdwg.mxu0
    %3909 = vmatpush.bf16.msra.mxu0 %v3368
    %3910 = vmatpush.bf16.msra.mxu0 %v3364
    %3911 = vmatpush.bf16.msra.mxu0 %v3360
    %3912 = vmatpush.bf16.msra.mxu0 %v3356
    %3913 = vmatpush.bf16.msra.mxu0 %v3352
    %3914 = vmatpush.bf16.msra.mxu0 %v3348
    %3915 = vmatpush.bf16.msra.mxu0 %v3344
    %3916 = vmatpush.bf16.msra.mxu0 %v3340
    %3917 = vmatmul.bf16.gmra.mxu0 %v2204
    %v3918 = vpop.f32.mrf.mxu0
    %v3919 = vadd.f32 %v3905, %v3918
    %v3920 = vpop.f32.mrf.mxu0
    %v3921 = vadd.f32 %v3907, %v3920
    %3922 = vdwg.mxu0
    %3923 = vmatpush.bf16.msra.mxu0 %v3400
    %3924 = vmatpush.bf16.msra.mxu0 %v3396
    %3925 = vmatpush.bf16.msra.mxu0 %v3392
    %3926 = vmatpush.bf16.msra.mxu0 %v3388
    %3927 = vmatpush.bf16.msra.mxu0 %v3384
    %3928 = vmatpush.bf16.msra.mxu0 %v3380
    %3929 = vmatpush.bf16.msra.mxu0 %v3376
    %3930 = vmatpush.bf16.msra.mxu0 %v3372
    %3931 = vmatmul.bf16.gmra.mxu0 %v2205
    %v3932 = vpop.f32.mrf.mxu0
    %v3933 = vadd.f32 %v3919, %v3932
    %v3934 = vpop.f32.mrf.mxu0
    %v3935 = vadd.f32 %v3921, %v3934
    %3936 = vdwg.mxu0
    %3937 = vmatpush.bf16.msra.mxu0 %v3432
    %3938 = vmatpush.bf16.msra.mxu0 %v3428
    %3939 = vmatpush.bf16.msra.mxu0 %v3424
    %3940 = vmatpush.bf16.msra.mxu0 %v3420
    %3941 = vmatpush.bf16.msra.mxu0 %v3416
    %3942 = vmatpush.bf16.msra.mxu0 %v3412
    %3943 = vmatpush.bf16.msra.mxu0 %v3408
    %3944 = vmatpush.bf16.msra.mxu0 %v3404
    %3945 = vmatmul.bf16.gmra.mxu0 %v2206
    %v3946 = vpop.f32.mrf.mxu0
    %v3947 = vadd.f32 %v3933, %v3946
    %v3948 = vpop.f32.mrf.mxu0
    %v3949 = vadd.f32 %v3935, %v3948
    %3950 = vdwg.mxu0
    %3951 = vmatpush.bf16.msra.mxu0 %v3464
    %3952 = vmatpush.bf16.msra.mxu0 %v3460
    %3953 = vmatpush.bf16.msra.mxu0 %v3456
    %3954 = vmatpush.bf16.msra.mxu0 %v3452
    %3955 = vmatpush.bf16.msra.mxu0 %v3448
    %3956 = vmatpush.bf16.msra.mxu0 %v3444
    %3957 = vmatpush.bf16.msra.mxu0 %v3440
    %3958 = vmatpush.bf16.msra.mxu0 %v3436
    %3959 = vmatmul.bf16.gmra.mxu0 %v2207
    %v3960 = vpop.f32.mrf.mxu0
    %v3961 = vadd.f32 %v3947, %v3960
    %v3962 = vpop.f32.mrf.mxu0
    %v3963 = vadd.f32 %v3949, %v3962
    %3964 = vdwg.mxu0
    %3965 = vmatpush.bf16.msra.mxu0 %v3496
    %3966 = vmatpush.bf16.msra.mxu0 %v3492
    %3967 = vmatpush.bf16.msra.mxu0 %v3488
    %3968 = vmatpush.bf16.msra.mxu0 %v3484
    %3969 = vmatpush.bf16.msra.mxu0 %v3480
    %3970 = vmatpush.bf16.msra.mxu0 %v3476
    %3971 = vmatpush.bf16.msra.mxu0 %v3472
    %3972 = vmatpush.bf16.msra.mxu0 %v3468
    %3973 = vmatmul.bf16.gmra.mxu0 %v2208
    %v3974 = vpop.f32.mrf.mxu0
    %v3975 = vadd.f32 %v3961, %v3974
    %v3976 = vpop.f32.mrf.mxu0
    %v3977 = vadd.f32 %v3963, %v3976
    %3978 = vdwg.mxu0
    %3979 = vmatpush.bf16.msra.mxu0 %v3273
    %3980 = vmatpush.bf16.msra.mxu0 %v3269
    %3981 = vmatpush.bf16.msra.mxu0 %v3265
    %3982 = vmatpush.bf16.msra.mxu0 %v3261
    %3983 = vmatpush.bf16.msra.mxu0 %v3257
    %3984 = vmatpush.bf16.msra.mxu0 %v3253
    %3985 = vmatpush.bf16.msra.mxu0 %v3249
    %3986 = vmatpush.bf16.msra.mxu0 %v3245
    %3987 = vmatmul.bf16.gmra.mxu0 %v2201
    %v3988 = vpop.f32.mrf.mxu0
    %v3989 = vadd.f32 %v2469, %v3988
    %v3990 = vpop.f32.mrf.mxu0
    %v3991 = vadd.f32 %v2469, %v3990
    %3992 = vdwg.mxu0
    %3993 = vmatpush.bf16.msra.mxu0 %v3305
    %3994 = vmatpush.bf16.msra.mxu0 %v3301
    %3995 = vmatpush.bf16.msra.mxu0 %v3297
    %3996 = vmatpush.bf16.msra.mxu0 %v3293
    %3997 = vmatpush.bf16.msra.mxu0 %v3289
    %3998 = vmatpush.bf16.msra.mxu0 %v3285
    %3999 = vmatpush.bf16.msra.mxu0 %v3281
    %4000 = vmatpush.bf16.msra.mxu0 %v3277
    %4001 = vmatmul.bf16.gmra.mxu0 %v2202
    %v4002 = vpop.f32.mrf.mxu0
    %v4003 = vadd.f32 %v3989, %v4002
    %v4004 = vpop.f32.mrf.mxu0
    %v4005 = vadd.f32 %v3991, %v4004
    %4006 = vdwg.mxu0
    %4007 = vmatpush.bf16.msra.mxu0 %v3337
    %4008 = vmatpush.bf16.msra.mxu0 %v3333
    %4009 = vmatpush.bf16.msra.mxu0 %v3329
    %4010 = vmatpush.bf16.msra.mxu0 %v3325
    %4011 = vmatpush.bf16.msra.mxu0 %v3321
    %4012 = vmatpush.bf16.msra.mxu0 %v3317
    %4013 = vmatpush.bf16.msra.mxu0 %v3313
    %4014 = vmatpush.bf16.msra.mxu0 %v3309
    %4015 = vmatmul.bf16.gmra.mxu0 %v2203
    %v4016 = vpop.f32.mrf.mxu0
    %v4017 = vadd.f32 %v4003, %v4016
    %v4018 = vpop.f32.mrf.mxu0
    %v4019 = vadd.f32 %v4005, %v4018
    %4020 = vdwg.mxu0
    %4021 = vmatpush.bf16.msra.mxu0 %v3369
    %4022 = vmatpush.bf16.msra.mxu0 %v3365
    %4023 = vmatpush.bf16.msra.mxu0 %v3361
    %4024 = vmatpush.bf16.msra.mxu0 %v3357
    %4025 = vmatpush.bf16.msra.mxu0 %v3353
    %4026 = vmatpush.bf16.msra.mxu0 %v3349
    %4027 = vmatpush.bf16.msra.mxu0 %v3345
    %4028 = vmatpush.bf16.msra.mxu0 %v3341
    %4029 = vmatmul.bf16.gmra.mxu0 %v2204
    %v4030 = vpop.f32.mrf.mxu0
    %v4031 = vadd.f32 %v4017, %v4030
    %v4032 = vpop.f32.mrf.mxu0
    %v4033 = vadd.f32 %v4019, %v4032
    %4034 = vdwg.mxu0
    %4035 = vmatpush.bf16.msra.mxu0 %v3401
    %4036 = vmatpush.bf16.msra.mxu0 %v3397
    %4037 = vmatpush.bf16.msra.mxu0 %v3393
    %4038 = vmatpush.bf16.msra.mxu0 %v3389
    %4039 = vmatpush.bf16.msra.mxu0 %v3385
    %4040 = vmatpush.bf16.msra.mxu0 %v3381
    %4041 = vmatpush.bf16.msra.mxu0 %v3377
    %4042 = vmatpush.bf16.msra.mxu0 %v3373
    %4043 = vmatmul.bf16.gmra.mxu0 %v2205
    %v4044 = vpop.f32.mrf.mxu0
    %v4045 = vadd.f32 %v4031, %v4044
    %v4046 = vpop.f32.mrf.mxu0
    %v4047 = vadd.f32 %v4033, %v4046
    %4048 = vdwg.mxu0
    %4049 = vmatpush.bf16.msra.mxu0 %v3433
    %4050 = vmatpush.bf16.msra.mxu0 %v3429
    %4051 = vmatpush.bf16.msra.mxu0 %v3425
    %4052 = vmatpush.bf16.msra.mxu0 %v3421
    %4053 = vmatpush.bf16.msra.mxu0 %v3417
    %4054 = vmatpush.bf16.msra.mxu0 %v3413
    %4055 = vmatpush.bf16.msra.mxu0 %v3409
    %4056 = vmatpush.bf16.msra.mxu0 %v3405
    %4057 = vmatmul.bf16.gmra.mxu0 %v2206
    %v4058 = vpop.f32.mrf.mxu0
    %v4059 = vadd.f32 %v4045, %v4058
    %v4060 = vpop.f32.mrf.mxu0
    %v4061 = vadd.f32 %v4047, %v4060
    %4062 = vdwg.mxu0
    %4063 = vmatpush.bf16.msra.mxu0 %v3465
    %4064 = vmatpush.bf16.msra.mxu0 %v3461
    %4065 = vmatpush.bf16.msra.mxu0 %v3457
    %4066 = vmatpush.bf16.msra.mxu0 %v3453
    %4067 = vmatpush.bf16.msra.mxu0 %v3449
    %4068 = vmatpush.bf16.msra.mxu0 %v3445
    %4069 = vmatpush.bf16.msra.mxu0 %v3441
    %4070 = vmatpush.bf16.msra.mxu0 %v3437
    %4071 = vmatmul.bf16.gmra.mxu0 %v2207
    %v4072 = vpop.f32.mrf.mxu0
    %v4073 = vadd.f32 %v4059, %v4072
    %v4074 = vpop.f32.mrf.mxu0
    %v4075 = vadd.f32 %v4061, %v4074
    %4076 = vdwg.mxu0
    %4077 = vmatpush.bf16.msra.mxu0 %v3497
    %4078 = vmatpush.bf16.msra.mxu0 %v3493
    %4079 = vmatpush.bf16.msra.mxu0 %v3489
    %4080 = vmatpush.bf16.msra.mxu0 %v3485
    %4081 = vmatpush.bf16.msra.mxu0 %v3481
    %4082 = vmatpush.bf16.msra.mxu0 %v3477
    %4083 = vmatpush.bf16.msra.mxu0 %v3473
    %4084 = vmatpush.bf16.msra.mxu0 %v3469
    %4085 = vmatmul.bf16.gmra.mxu0 %v2208
    %v4086 = vpop.f32.mrf.mxu0
    %v4087 = vadd.f32 %v4073, %v4086
    %v4088 = vpop.f32.mrf.mxu0
    %v4089 = vadd.f32 %v4075, %v4088
    %4090 = vdwg.mxu0
    %4091 = vmatpush.bf16.msra.mxu0 %v3274
    %4092 = vmatpush.bf16.msra.mxu0 %v3270
    %4093 = vmatpush.bf16.msra.mxu0 %v3266
    %4094 = vmatpush.bf16.msra.mxu0 %v3262
    %4095 = vmatpush.bf16.msra.mxu0 %v3258
    %4096 = vmatpush.bf16.msra.mxu0 %v3254
    %4097 = vmatpush.bf16.msra.mxu0 %v3250
    %4098 = vmatpush.bf16.msra.mxu0 %v3246
    %4099 = vmatmul.bf16.gmra.mxu0 %v2201
    %v4100 = vpop.f32.mrf.mxu0
    %v4101 = vadd.f32 %v2470, %v4100
    %v4102 = vpop.f32.mrf.mxu0
    %v4103 = vadd.f32 %v2470, %v4102
    %4104 = vdwg.mxu0
    %4105 = vmatpush.bf16.msra.mxu0 %v3306
    %4106 = vmatpush.bf16.msra.mxu0 %v3302
    %4107 = vmatpush.bf16.msra.mxu0 %v3298
    %4108 = vmatpush.bf16.msra.mxu0 %v3294
    %4109 = vmatpush.bf16.msra.mxu0 %v3290
    %4110 = vmatpush.bf16.msra.mxu0 %v3286
    %4111 = vmatpush.bf16.msra.mxu0 %v3282
    %4112 = vmatpush.bf16.msra.mxu0 %v3278
    %4113 = vmatmul.bf16.gmra.mxu0 %v2202
    %v4114 = vpop.f32.mrf.mxu0
    %v4115 = vadd.f32 %v4101, %v4114
    %v4116 = vpop.f32.mrf.mxu0
    %v4117 = vadd.f32 %v4103, %v4116
    %4118 = vdwg.mxu0
    %4119 = vmatpush.bf16.msra.mxu0 %v3338
    %4120 = vmatpush.bf16.msra.mxu0 %v3334
    %4121 = vmatpush.bf16.msra.mxu0 %v3330
    %4122 = vmatpush.bf16.msra.mxu0 %v3326
    %4123 = vmatpush.bf16.msra.mxu0 %v3322
    %4124 = vmatpush.bf16.msra.mxu0 %v3318
    %4125 = vmatpush.bf16.msra.mxu0 %v3314
    %4126 = vmatpush.bf16.msra.mxu0 %v3310
    %4127 = vmatmul.bf16.gmra.mxu0 %v2203
    %v4128 = vpop.f32.mrf.mxu0
    %v4129 = vadd.f32 %v4115, %v4128
    %v4130 = vpop.f32.mrf.mxu0
    %v4131 = vadd.f32 %v4117, %v4130
    %4132 = vdwg.mxu0
    %4133 = vmatpush.bf16.msra.mxu0 %v3370
    %4134 = vmatpush.bf16.msra.mxu0 %v3366
    %4135 = vmatpush.bf16.msra.mxu0 %v3362
    %4136 = vmatpush.bf16.msra.mxu0 %v3358
    %4137 = vmatpush.bf16.msra.mxu0 %v3354
    %4138 = vmatpush.bf16.msra.mxu0 %v3350
    %4139 = vmatpush.bf16.msra.mxu0 %v3346
    %4140 = vmatpush.bf16.msra.mxu0 %v3342
    %4141 = vmatmul.bf16.gmra.mxu0 %v2204
    %v4142 = vpop.f32.mrf.mxu0
    %v4143 = vadd.f32 %v4129, %v4142
    %v4144 = vpop.f32.mrf.mxu0
    %v4145 = vadd.f32 %v4131, %v4144
    %4146 = vdwg.mxu0
    %4147 = vmatpush.bf16.msra.mxu0 %v3402
    %4148 = vmatpush.bf16.msra.mxu0 %v3398
    %4149 = vmatpush.bf16.msra.mxu0 %v3394
    %4150 = vmatpush.bf16.msra.mxu0 %v3390
    %4151 = vmatpush.bf16.msra.mxu0 %v3386
    %4152 = vmatpush.bf16.msra.mxu0 %v3382
    %4153 = vmatpush.bf16.msra.mxu0 %v3378
    %4154 = vmatpush.bf16.msra.mxu0 %v3374
    %4155 = vmatmul.bf16.gmra.mxu0 %v2205
    %v4156 = vpop.f32.mrf.mxu0
    %v4157 = vadd.f32 %v4143, %v4156
    %v4158 = vpop.f32.mrf.mxu0
    %v4159 = vadd.f32 %v4145, %v4158
    %4160 = vdwg.mxu0
    %4161 = vmatpush.bf16.msra.mxu0 %v3434
    %4162 = vmatpush.bf16.msra.mxu0 %v3430
    %4163 = vmatpush.bf16.msra.mxu0 %v3426
    %4164 = vmatpush.bf16.msra.mxu0 %v3422
    %4165 = vmatpush.bf16.msra.mxu0 %v3418
    %4166 = vmatpush.bf16.msra.mxu0 %v3414
    %4167 = vmatpush.bf16.msra.mxu0 %v3410
    %4168 = vmatpush.bf16.msra.mxu0 %v3406
    %4169 = vmatmul.bf16.gmra.mxu0 %v2206
    %v4170 = vpop.f32.mrf.mxu0
    %v4171 = vadd.f32 %v4157, %v4170
    %v4172 = vpop.f32.mrf.mxu0
    %v4173 = vadd.f32 %v4159, %v4172
    %4174 = vdwg.mxu0
    %4175 = vmatpush.bf16.msra.mxu0 %v3466
    %4176 = vmatpush.bf16.msra.mxu0 %v3462
    %4177 = vmatpush.bf16.msra.mxu0 %v3458
    %4178 = vmatpush.bf16.msra.mxu0 %v3454
    %4179 = vmatpush.bf16.msra.mxu0 %v3450
    %4180 = vmatpush.bf16.msra.mxu0 %v3446
    %4181 = vmatpush.bf16.msra.mxu0 %v3442
    %4182 = vmatpush.bf16.msra.mxu0 %v3438
    %4183 = vmatmul.bf16.gmra.mxu0 %v2207
    %v4184 = vpop.f32.mrf.mxu0
    %v4185 = vadd.f32 %v4171, %v4184
    %v4186 = vpop.f32.mrf.mxu0
    %v4187 = vadd.f32 %v4173, %v4186
    %4188 = vdwg.mxu0
    %4189 = vmatpush.bf16.msra.mxu0 %v3498
    %4190 = vmatpush.bf16.msra.mxu0 %v3494
    %4191 = vmatpush.bf16.msra.mxu0 %v3490
    %4192 = vmatpush.bf16.msra.mxu0 %v3486
    %4193 = vmatpush.bf16.msra.mxu0 %v3482
    %4194 = vmatpush.bf16.msra.mxu0 %v3478
    %4195 = vmatpush.bf16.msra.mxu0 %v3474
    %4196 = vmatpush.bf16.msra.mxu0 %v3470
    %4197 = vmatmul.bf16.gmra.mxu0 %v2208
    %v4198 = vpop.f32.mrf.mxu0
    %v4199 = vadd.f32 %v4185, %v4198
    %v4200 = vpop.f32.mrf.mxu0
    %v4201 = vadd.f32 %v4187, %v4200
    %4202 = vdwg.mxu0
    %vm4203 = vcmp.gt.f32.partialorder %v3863, 0.0
    %vm4204 = vcmp.gt.f32.partialorder %v3975, 0.0
    %vm4205 = vcmp.gt.f32.partialorder %v4087, 0.0
    %vm4206 = vcmp.gt.f32.partialorder %v4199, 0.0
    %vm4207 = vcmp.gt.f32.partialorder %v3865, 0.0
    %vm4208 = vcmp.gt.f32.partialorder %v3977, 0.0
    %vm4209 = vcmp.gt.f32.partialorder %v4089, 0.0
    %vm4210 = vcmp.gt.f32.partialorder %v4201, 0.0
    %v4211 = vmul.f32 %v3863, 1.442695
    %v4212 = vpow.pop %v4211
    %v4213 = vmul.f32 %v3975, 1.442695
    %v4214 = vpow.pop %v4213
    %v4215 = vmul.f32 %v4087, 1.442695
    %v4216 = vpow.pop %v4215
    %v4217 = vmul.f32 %v4199, 1.442695
    %v4218 = vpow.pop %v4217
    %v4219 = vmul.f32 %v3865, 1.442695
    %v4220 = vpow.pop %v4219
    %v4221 = vmul.f32 %v3977, 1.442695
    %v4222 = vpow.pop %v4221
    %v4223 = vmul.f32 %v4089, 1.442695
    %v4224 = vpow.pop %v4223
    %v4225 = vmul.f32 %v4201, 1.442695
    %v4226 = vpow.pop %v4225
    %v4227 = vsub.f32 %v4212, 1.0
    %v4228 = vsub.f32 %v4214, 1.0
    %v4229 = vsub.f32 %v4216, 1.0
    %v4230 = vsub.f32 %v4218, 1.0
    %v4231 = vsub.f32 %v4220, 1.0
    %v4232 = vsub.f32 %v4222, 1.0
    %v4233 = vsub.f32 %v4224, 1.0
    %v4234 = vsub.f32 %v4226, 1.0
    %v4235 = vmul.f32 %v4227, 1.6732632
    %v4236 = vmul.f32 %v4228, 1.6732632
    %v4237 = vmul.f32 %v4229, 1.6732632
    %v4238 = vmul.f32 %v4230, 1.6732632
    %v4239 = vmul.f32 %v4231, 1.6732632
    %v4240 = vmul.f32 %v4232, 1.6732632
    %v4241 = vmul.f32 %v4233, 1.6732632
    %v4242 = vmul.f32 %v4234, 1.6732632
    %v4243 = vsel %vm4203, %v3863, %v4235
    %v4244 = vsel %vm4204, %v3975, %v4236
    %v4245 = vsel %vm4205, %v4087, %v4237
    %v4246 = vsel %vm4206, %v4199, %v4238
    %v4247 = vsel %vm4207, %v3865, %v4239
    %v4248 = vsel %vm4208, %v3977, %v4240
    %v4249 = vsel %vm4209, %v4089, %v4241
    %v4250 = vsel %vm4210, %v4201, %v4242
    %v4251 = vpack.c.bf16 %v4247, %v4243
    %v4252 = vpack.c.bf16 %v4248, %v4244
    %v4253 = vpack.c.bf16 %v4249, %v4245
    %v4254 = vpack.c.bf16 %v4250, %v4246
    %v4255 = vld [vmem:[#allocation6] sm:$0xf]
    %v4256 = vld [vmem:[#allocation6 + $0x4] sm:$0xf]
    %v4257 = vld [vmem:[#allocation6 + $0x8] sm:$0xf]
    %v4258 = vld [vmem:[#allocation6 + $0xc] sm:$0xf]
    %v4259 = vld [vmem:[#allocation6 + $0x10] sm:$0xf]
    %v4260 = vld [vmem:[#allocation6 + $0x14] sm:$0xf]
    %v4261 = vld [vmem:[#allocation6 + $0x18] sm:$0xf]
    %v4262 = vld [vmem:[#allocation6 + $0x1c] sm:$0xf]
    %v4263 = vld [vmem:[#allocation6 + $0x20] sm:$0xf]
    %v4264 = vld [vmem:[#allocation6 + $0x24] sm:$0xf]
    %v4265 = vld [vmem:[#allocation6 + $0x28] sm:$0xf]
    %v4266 = vld [vmem:[#allocation6 + $0x2c] sm:$0xf]
    %v4267 = vld [vmem:[#allocation6 + $0x30] sm:$0xf]
    %v4268 = vld [vmem:[#allocation6 + $0x34] sm:$0xf]
    %v4269 = vld [vmem:[#allocation6 + $0x38] sm:$0xf]
    %v4270 = vld [vmem:[#allocation6 + $0x3c] sm:$0xf]
    %v4271 = vld [vmem:[#allocation6 + $0x40] sm:$0xf]
    %v4272 = vld [vmem:[#allocation6 + $0x44] sm:$0xf]
    %v4273 = vld [vmem:[#allocation6 + $0x48] sm:$0xf]
    %v4274 = vld [vmem:[#allocation6 + $0x4c] sm:$0xf]
    %v4275 = vld [vmem:[#allocation6 + $0x50] sm:$0xf]
    %v4276 = vld [vmem:[#allocation6 + $0x54] sm:$0xf]
    %v4277 = vld [vmem:[#allocation6 + $0x58] sm:$0xf]
    %v4278 = vld [vmem:[#allocation6 + $0x5c] sm:$0xf]
    %v4279 = vld [vmem:[#allocation6 + $0x60] sm:$0xf]
    %v4280 = vld [vmem:[#allocation6 + $0x64] sm:$0xf]
    %v4281 = vld [vmem:[#allocation6 + $0x68] sm:$0xf]
    %v4282 = vld [vmem:[#allocation6 + $0x6c] sm:$0xf]
    %v4283 = vld [vmem:[#allocation6 + $0x70] sm:$0xf]
    %v4284 = vld [vmem:[#allocation6 + $0x74] sm:$0xf]
    %v4285 = vld [vmem:[#allocation6 + $0x78] sm:$0xf]
    %v4286 = vld [vmem:[#allocation6 + $0x7c] sm:$0xf]
    %v4287 = vld [vmem:[#allocation6 + $0x80] sm:$0xf]
    %v4288 = vld [vmem:[#allocation6 + $0x84] sm:$0xf]
    %v4289 = vld [vmem:[#allocation6 + $0x88] sm:$0xf]
    %v4290 = vld [vmem:[#allocation6 + $0x8c] sm:$0xf]
    %v4291 = vld [vmem:[#allocation6 + $0x90] sm:$0xf]
    %v4292 = vld [vmem:[#allocation6 + $0x94] sm:$0xf]
    %v4293 = vld [vmem:[#allocation6 + $0x98] sm:$0xf]
    %v4294 = vld [vmem:[#allocation6 + $0x9c] sm:$0xf]
    %v4295 = vld [vmem:[#allocation6 + $0xa0] sm:$0xf]
    %v4296 = vld [vmem:[#allocation6 + $0xa4] sm:$0xf]
    %v4297 = vld [vmem:[#allocation6 + $0xa8] sm:$0xf]
    %v4298 = vld [vmem:[#allocation6 + $0xac] sm:$0xf]
    %v4299 = vld [vmem:[#allocation6 + $0xb0] sm:$0xf]
    %v4300 = vld [vmem:[#allocation6 + $0xb4] sm:$0xf]
    %v4301 = vld [vmem:[#allocation6 + $0xb8] sm:$0xf]
    %v4302 = vld [vmem:[#allocation6 + $0xbc] sm:$0xf]
    %v4303 = vld [vmem:[#allocation6 + $0xc0] sm:$0xf]
    %v4304 = vld [vmem:[#allocation6 + $0xc4] sm:$0xf]
    %v4305 = vld [vmem:[#allocation6 + $0xc8] sm:$0xf]
    %v4306 = vld [vmem:[#allocation6 + $0xcc] sm:$0xf]
    %v4307 = vld [vmem:[#allocation6 + $0xd0] sm:$0xf]
    %v4308 = vld [vmem:[#allocation6 + $0xd4] sm:$0xf]
    %v4309 = vld [vmem:[#allocation6 + $0xd8] sm:$0xf]
    %v4310 = vld [vmem:[#allocation6 + $0xdc] sm:$0xf]
    %v4311 = vld [vmem:[#allocation6 + $0xe0] sm:$0xf]
    %v4312 = vld [vmem:[#allocation6 + $0xe4] sm:$0xf]
    %v4313 = vld [vmem:[#allocation6 + $0xe8] sm:$0xf]
    %v4314 = vld [vmem:[#allocation6 + $0xec] sm:$0xf]
    %v4315 = vld [vmem:[#allocation6 + $0xf0] sm:$0xf]
    %v4316 = vld [vmem:[#allocation6 + $0xf4] sm:$0xf]
    %v4317 = vld [vmem:[#allocation6 + $0xf8] sm:$0xf]
    %v4318 = vld [vmem:[#allocation6 + $0xfc] sm:$0xf]
    %v4319 = vld [vmem:[%s6] sm:$0x1]
    %v4321 = vperm.slane %v4319, 0
    %v4387 = vunpack.c.l.b16 %v4255
    %v4388 = vunpack.c.l.b16 %v4256
    %v4389 = vunpack.c.l.b16 %v4257
    %v4390 = vunpack.c.l.b16 %v4258
    %v4391 = vunpack.c.l.b16 %v4259
    %v4392 = vunpack.c.l.b16 %v4260
    %v4393 = vunpack.c.l.b16 %v4261
    %v4394 = vunpack.c.l.b16 %v4262
    %v4395 = vunpack.c.l.b16 %v4263
    %v4396 = vunpack.c.l.b16 %v4264
    %v4397 = vunpack.c.l.b16 %v4265
    %v4398 = vunpack.c.l.b16 %v4266
    %v4399 = vunpack.c.l.b16 %v4267
    %v4400 = vunpack.c.l.b16 %v4268
    %v4401 = vunpack.c.l.b16 %v4269
    %v4402 = vunpack.c.l.b16 %v4270
    %v4403 = vunpack.c.l.b16 %v4271
    %v4404 = vunpack.c.l.b16 %v4272
    %v4405 = vunpack.c.l.b16 %v4273
    %v4406 = vunpack.c.l.b16 %v4274
    %v4407 = vunpack.c.l.b16 %v4275
    %v4408 = vunpack.c.l.b16 %v4276
    %v4409 = vunpack.c.l.b16 %v4277
    %v4410 = vunpack.c.l.b16 %v4278
    %v4411 = vunpack.c.l.b16 %v4279
    %v4412 = vunpack.c.l.b16 %v4280
    %v4413 = vunpack.c.l.b16 %v4281
    %v4414 = vunpack.c.l.b16 %v4282
    %v4415 = vunpack.c.l.b16 %v4283
    %v4416 = vunpack.c.l.b16 %v4284
    %v4417 = vunpack.c.l.b16 %v4285
    %v4418 = vunpack.c.l.b16 %v4286
    %v4419 = vunpack.c.l.b16 %v4287
    %v4420 = vunpack.c.l.b16 %v4288
    %v4421 = vunpack.c.l.b16 %v4289
    %v4422 = vunpack.c.l.b16 %v4290
    %v4423 = vunpack.c.l.b16 %v4291
    %v4424 = vunpack.c.l.b16 %v4292
    %v4425 = vunpack.c.l.b16 %v4293
    %v4426 = vunpack.c.l.b16 %v4294
    %v4427 = vunpack.c.l.b16 %v4295
    %v4428 = vunpack.c.l.b16 %v4296
    %v4429 = vunpack.c.l.b16 %v4297
    %v4430 = vunpack.c.l.b16 %v4298
    %v4431 = vunpack.c.l.b16 %v4299
    %v4432 = vunpack.c.l.b16 %v4300
    %v4433 = vunpack.c.l.b16 %v4301
    %v4434 = vunpack.c.l.b16 %v4302
    %v4435 = vunpack.c.l.b16 %v4303
    %v4436 = vunpack.c.l.b16 %v4304
    %v4437 = vunpack.c.l.b16 %v4305
    %v4438 = vunpack.c.l.b16 %v4306
    %v4439 = vunpack.c.l.b16 %v4307
    %v4440 = vunpack.c.l.b16 %v4308
    %v4441 = vunpack.c.l.b16 %v4309
    %v4442 = vunpack.c.l.b16 %v4310
    %v4443 = vunpack.c.l.b16 %v4311
    %v4444 = vunpack.c.l.b16 %v4312
    %v4445 = vunpack.c.l.b16 %v4313
    %v4446 = vunpack.c.l.b16 %v4314
    %v4447 = vunpack.c.l.b16 %v4315
    %v4448 = vunpack.c.l.b16 %v4316
    %v4449 = vunpack.c.l.b16 %v4317
    %v4450 = vunpack.c.l.b16 %v4318
    %v4451 = vpack.c.b16 %v4388, %v4387
    %v4452 = vpack.c.b16 %v4390, %v4389
    %v4453 = vpack.c.b16 %v4392, %v4391
    %v4454 = vpack.c.b16 %v4394, %v4393
    %v4455 = vpack.c.b16 %v4396, %v4395
    %v4456 = vpack.c.b16 %v4398, %v4397
    %v4457 = vpack.c.b16 %v4400, %v4399
    %v4458 = vpack.c.b16 %v4402, %v4401
    %v4459 = vpack.c.b16 %v4404, %v4403
    %v4460 = vpack.c.b16 %v4406, %v4405
    %v4461 = vpack.c.b16 %v4408, %v4407
    %v4462 = vpack.c.b16 %v4410, %v4409
    %v4463 = vpack.c.b16 %v4412, %v4411
    %v4464 = vpack.c.b16 %v4414, %v4413
    %v4465 = vpack.c.b16 %v4416, %v4415
    %v4466 = vpack.c.b16 %v4418, %v4417
    %v4467 = vpack.c.b16 %v4420, %v4419
    %v4468 = vpack.c.b16 %v4422, %v4421
    %v4469 = vpack.c.b16 %v4424, %v4423
    %v4470 = vpack.c.b16 %v4426, %v4425
    %v4471 = vpack.c.b16 %v4428, %v4427
    %v4472 = vpack.c.b16 %v4430, %v4429
    %v4473 = vpack.c.b16 %v4432, %v4431
    %v4474 = vpack.c.b16 %v4434, %v4433
    %v4475 = vpack.c.b16 %v4436, %v4435
    %v4476 = vpack.c.b16 %v4438, %v4437
    %v4477 = vpack.c.b16 %v4440, %v4439
    %v4478 = vpack.c.b16 %v4442, %v4441
    %v4479 = vpack.c.b16 %v4444, %v4443
    %v4480 = vpack.c.b16 %v4446, %v4445
    %v4481 = vpack.c.b16 %v4448, %v4447
    %v4482 = vpack.c.b16 %v4450, %v4449
    %4515 = vmatpush.bf16.msra.mxu0 %v4458
    %4516 = vmatpush.bf16.msra.mxu0 %v4457
    %4517 = vmatpush.bf16.msra.mxu0 %v4456
    %4518 = vmatpush.bf16.msra.mxu0 %v4455
    %4519 = vmatpush.bf16.msra.mxu0 %v4454
    %4520 = vmatpush.bf16.msra.mxu0 %v4453
    %4521 = vmatpush.bf16.msra.mxu0 %v4452
    %4522 = vmatpush.bf16.msra.mxu0 %v4451
    %4523 = vmatmul.bf16.gmra.mxu0 %v4251
    %v4524 = vpop.f32.mrf.mxu0
    %v4525 = vadd.f32 %v4321, %v4524
    %v4526 = vpop.f32.mrf.mxu0
    %v4527 = vadd.f32 %v4321, %v4526
    %4528 = vdwg.mxu0
    %4529 = vmatpush.bf16.msra.mxu0 %v4466
    %4530 = vmatpush.bf16.msra.mxu0 %v4465
    %4531 = vmatpush.bf16.msra.mxu0 %v4464
    %4532 = vmatpush.bf16.msra.mxu0 %v4463
    %4533 = vmatpush.bf16.msra.mxu0 %v4462
    %4534 = vmatpush.bf16.msra.mxu0 %v4461
    %4535 = vmatpush.bf16.msra.mxu0 %v4460
    %4536 = vmatpush.bf16.msra.mxu0 %v4459
    %4537 = vmatmul.bf16.gmra.mxu0 %v4252
    %v4538 = vpop.f32.mrf.mxu0
    %v4539 = vadd.f32 %v4525, %v4538
    %v4540 = vpop.f32.mrf.mxu0
    %v4541 = vadd.f32 %v4527, %v4540
    %4542 = vdwg.mxu0
    %4543 = vmatpush.bf16.msra.mxu0 %v4474
    %4544 = vmatpush.bf16.msra.mxu0 %v4473
    %4545 = vmatpush.bf16.msra.mxu0 %v4472
    %4546 = vmatpush.bf16.msra.mxu0 %v4471
    %4547 = vmatpush.bf16.msra.mxu0 %v4470
    %4548 = vmatpush.bf16.msra.mxu0 %v4469
    %4549 = vmatpush.bf16.msra.mxu0 %v4468
    %4550 = vmatpush.bf16.msra.mxu0 %v4467
    %4551 = vmatmul.bf16.gmra.mxu0 %v4253
    %v4552 = vpop.f32.mrf.mxu0
    %v4553 = vadd.f32 %v4539, %v4552
    %v4554 = vpop.f32.mrf.mxu0
    %v4555 = vadd.f32 %v4541, %v4554
    %4556 = vdwg.mxu0
    %4557 = vmatpush.bf16.msra.mxu0 %v4482
    %4558 = vmatpush.bf16.msra.mxu0 %v4481
    %4559 = vmatpush.bf16.msra.mxu0 %v4480
    %4560 = vmatpush.bf16.msra.mxu0 %v4479
    %4561 = vmatpush.bf16.msra.mxu0 %v4478
    %4562 = vmatpush.bf16.msra.mxu0 %v4477
    %4563 = vmatpush.bf16.msra.mxu0 %v4476
    %4564 = vmatpush.bf16.msra.mxu0 %v4475
    %4565 = vmatmul.bf16.gmra.mxu0 %v4254
    %v4566 = vpop.f32.mrf.mxu0
    %v4567 = vadd.f32 %v4553, %v4566
    %v4568 = vpop.f32.mrf.mxu0
    %v4569 = vadd.f32 %v4555, %v4568
    %4570 = vdwg.mxu0
    %vm4571 = vcmp.gt.f32.partialorder %v4567, 0.0
    %vm4572 = vcmp.gt.f32.partialorder %v4569, 0.0
    %v4573 = vmul.f32 %v4567, 1.442695
    %v4574 = vpow.pop %v4573
    %v4575 = vmul.f32 %v4569, 1.442695
    %v4576 = vpow.pop %v4575
    %v4577 = vsub.f32 %v4574, 1.0
    %v4578 = vsub.f32 %v4576, 1.0
    %v4579 = vmul.f32 %v4577, 1.6732632
    %v4580 = vmul.f32 %v4578, 1.6732632
    %v4581 = vsel %vm4571, %v4567, %v4579
    %v4582 = vsel %vm4572, %v4569, %v4580
    %v4583 = vpack.c.bf16 %v4582, %v4581
    %v4584 = vld [vmem:[%s7] sm:$0xf]
    %v4585 = vld [vmem:[%s7 + $0x4] sm:$0xf]
    %v4586 = vld [vmem:[%s7 + $0x8] sm:$0xf]
    %v4587 = vld [vmem:[%s7 + $0xc] sm:$0xf]
    %v4588 = vld [vmem:[%s7 + $0x10] sm:$0xf]
    %v4589 = vld [vmem:[%s7 + $0x14] sm:$0xf]
    %v4590 = vld [vmem:[%s7 + $0x18] sm:$0xf]
    %v4591 = vld [vmem:[%s7 + $0x1c] sm:$0xf]
    %v4592 = vld [vmem:[%s7 + $0x20] sm:$0xf]
    %v4593 = vld [vmem:[%s7 + $0x24] sm:$0xf]
    %v4594 = vld [vmem:[%s7 + $0x28] sm:$0xf]
    %v4595 = vld [vmem:[%s7 + $0x2c] sm:$0xf]
    %v4596 = vld [vmem:[%s7 + $0x30] sm:$0xf]
    %v4597 = vld [vmem:[%s7 + $0x34] sm:$0xf]
    %v4598 = vld [vmem:[%s7 + $0x38] sm:$0xf]
    %v4599 = vld [vmem:[%s7 + $0x3c] sm:$0xf]
    %v4600 = vld [vmem:[%s8] sm:$0x1]
    %v4602 = vperm.slane %v4600, 0
    %v4620 = vunpack.c.l.b16 %v4584
    %v4621 = vunpack.c.l.b16 %v4585
    %v4622 = vunpack.c.l.b16 %v4586
    %v4623 = vunpack.c.l.b16 %v4587
    %v4624 = vunpack.c.l.b16 %v4588
    %v4625 = vunpack.c.l.b16 %v4589
    %v4626 = vunpack.c.l.b16 %v4590
    %v4627 = vunpack.c.l.b16 %v4591
    %v4628 = vunpack.c.l.b16 %v4592
    %v4629 = vunpack.c.l.b16 %v4593
    %v4630 = vunpack.c.l.b16 %v4594
    %v4631 = vunpack.c.l.b16 %v4595
    %v4632 = vunpack.c.l.b16 %v4596
    %v4633 = vunpack.c.l.b16 %v4597
    %v4634 = vunpack.c.l.b16 %v4598
    %v4635 = vunpack.c.l.b16 %v4599
    %v4636 = vpack.c.b16 %v4621, %v4620
    %v4637 = vpack.c.b16 %v4623, %v4622
    %v4638 = vpack.c.b16 %v4625, %v4624
    %v4639 = vpack.c.b16 %v4627, %v4626
    %v4640 = vpack.c.b16 %v4629, %v4628
    %v4641 = vpack.c.b16 %v4631, %v4630
    %v4642 = vpack.c.b16 %v4633, %v4632
    %v4643 = vpack.c.b16 %v4635, %v4634
    %4652 = vmatpush.bf16.msra.mxu0 %v4643
    %4653 = vmatpush.bf16.msra.mxu0 %v4642
    %4654 = vmatpush.bf16.msra.mxu0 %v4641
    %4655 = vmatpush.bf16.msra.mxu0 %v4640
    %4656 = vmatpush.bf16.msra.mxu0 %v4639
    %4657 = vmatpush.bf16.msra.mxu0 %v4638
    %4658 = vmatpush.bf16.msra.mxu0 %v4637
    %4659 = vmatpush.bf16.msra.mxu0 %v4636
    %4660 = vmatmul.bf16.gmra.mxu0 %v4583
    %v4661 = vpop.f32.mrf.mxu0
    %v4662 = vadd.f32 %v4602, %v4661
    %v4663 = vpop.f32.mrf.mxu0
    %v4664 = vadd.f32 %v4602, %v4663
    %4665 = vdwg.mxu0
    %4666 = vst [vmem:[%s9] sm:$0xff] %v4662
    %4667 = vst [vmem:[%s9 + $0x8] sm:$0xff] %v4664
    // Predicated region
    $region50: #{_forward_padded.1} parent=1 // pred_check
      _
    $region51: #{_forward_padded.1} parent=1 // pred_check_branch
      %4669 = sbr.rel (0) target = $region53
    $region52: #{_forward_padded.1} parent=1 // pred_region
      _
    $region53: #{_forward_padded.1} parent=1 // pred_fallthru
      _
    // Predicated region
    $region54: #{_forward_padded.1} parent=1 // pred_check
      _
    $region55: #{_forward_padded.1} parent=1 // pred_check_branch
      %4671 = sbr.rel (0) target = $region57
    $region56: #{_forward_padded.1} parent=1 // pred_region
      _
    $region57: #{_forward_padded.1} parent=1 // pred_fallthru
      _
    %4672 = vsyncpa [#allocation3], 1
    %4673 = vsyncpa [#allocation5], 1

</llo_original>
